<compile_context>
chip_gen: v7x
topology: tpu7x:2x2x1
jax: 0.10.0
libtpu: 0.0.40
codegen_flags: <defaults>
</compile_context>

<pallas_src>
import jax
import jax.numpy as jnp
from jax.experimental import pallas as pl
from jax.experimental.pallas import tpu as pltpu


def _round_up(a, b):
    return (a + b - 1) // b * b


def _fit(a, axis, size):
    """Zero-pad or trim `a` along `axis` to exactly `size`."""
    cur = a.shape[axis]
    if cur == size:
        return a
    if cur > size:
        idx = [slice(None)] * a.ndim
        idx[axis] = slice(0, size)
        return a[tuple(idx)]
    pad = [(0, 0)] * a.ndim
    pad[axis] = (0, size - cur)
    return jnp.pad(a, pad)


def _downsample_kernel(ee_ref, eo_ref, oe_ref, oo_ref, een_ref, eon_ref,
                       w_ref, b_ref, o_ref):
    # ee_ref : (1, TH, Wo+1, C)  input rows 2*ho   , even input cols
    # eo_ref : (1, TH, Wo,   C)  input rows 2*ho   , odd  input cols
    # oe_ref : (1, TH, Wo+1, C)  input rows 2*ho+1 , even input cols
    # oo_ref : (1, TH, Wo,   C)  input rows 2*ho+1 , odd  input cols
    # een/eon: next row tile of ee/eo (supplies the +1 halo row for kh=2)
    # w_ref  : (9, C, Cp)  tap-major weights (kh*3+kw), VMEM-resident
    # b_ref  : (1, Cp)     f32 bias, VMEM-resident
    # o_ref  : (1, TH, Wo, Cp) f32 output tile
    th, wo = o_ref.shape[1], o_ref.shape[2]
    bias = b_ref[...]                                     # (1, Cp) f32

    for r in range(th):                                   # static unroll
        if r + 1 < th:
            e2, o2, r2 = ee_ref, eo_ref, r + 1            # +1 row inside the tile
        else:
            e2, o2, r2 = een_ref, eon_ref, 0              # +1 row = next tile, row 0
        taps = (
            ee_ref[0, r, 0:wo], eo_ref[0, r], ee_ref[0, r, 1:wo + 1],   # kh = 0
            oe_ref[0, r, 0:wo], oo_ref[0, r], oe_ref[0, r, 1:wo + 1],   # kh = 1
            e2[0, r2, 0:wo],    o2[0, r2],    e2[0, r2, 1:wo + 1],      # kh = 2
        )
        acc = bias                                        # bias folded into init
        for t in range(9):
            acc = acc + jnp.dot(taps[t], w_ref[t],
                                preferred_element_type=jnp.float32)
        o_ref[0, r] = acc.astype(o_ref.dtype)


def downsample_forward(x_nchw, weight, bias, *, compute_dtype=jnp.bfloat16):
    """DownSample.forward: F.pad(x, (0,1,0,1)) -> Conv2d(C, C, 3, stride=2, padding=0)."""
    B, C, H, W = x_nchw.shape
    Hp, Wp = H + 1, W + 1
    Ho = (Hp - 3) // 2 + 1
    Wo = (Wp - 3) // 2 + 1
    assert Ho >= 1 and Wo >= 1

    # ---- layout glue (XLA): NCHW -> NHWC bf16, pad bottom/right by 1 ----
    x = jnp.transpose(x_nchw, (0, 2, 3, 1)).astype(compute_dtype)
    x = jnp.pad(x, ((0, 0), (0, 1), (0, 1), (0, 0)))

    # ---- stride-2 parity de-interleave (combined volume ~= 1x input) ----
    xe, xo = x[:, 0::2], x[:, 1::2]
    ee, eo = xe[:, :, 0::2, :], xe[:, :, 1::2, :]
    oe, oo = xo[:, :, 0::2, :], xo[:, :, 1::2, :]

    Cp = _round_up(C, 128)                       # lane-dense output channels

    # ---- row-tile size (amortize per-grid-step overhead, respect VMEM) ----
    TH = min(8, Ho)

    def ws_bytes(th):  # double-buffered per-step working set estimate
        in_blk = th * C * (3 * (Wo + 1) + 3 * Wo) * 2        # 6 bf16 input tiles
        out_blk = th * Wo * Cp * 4                           # f32 output tile
        wb = 9 * C * Cp * 2 + Cp * 4                         # resident weights + bias
        return 2 * (in_blk + out_blk + wb)

    try:
        vmem_cap = int(pltpu.get_tpu_info().vmem_capacity_bytes)
    except Exception:
        vmem_cap = 64 << 20
    budget = min(max(vmem_cap // 3, 16 << 20), 40 << 20)
    while TH > 1 and ws_bytes(TH) > budget:
        TH = max(1, TH // 2)
    # keep >= 2 grid steps so both v7x TensorCores get work
    while TH > 1 and B * pl.cdiv(Ho, TH) < 2:
        TH = max(1, TH // 2)

    n_tiles = pl.cdiv(Ho, TH)
    HT = n_tiles * TH

    # Exact extents the kernel indexes.  Zero padding only feeds output rows
    # >= Ho (sliced off below); the +TH extra rows of ee/eo make block i+1
    # (the halo view) valid for the last row tile.
    ee = _fit(_fit(ee, 1, HT + TH), 2, Wo + 1)
    eo = _fit(_fit(eo, 1, HT + TH), 2, Wo)
    oe = _fit(_fit(oe, 1, HT), 2, Wo + 1)
    oo = _fit(_fit(oo, 1, HT), 2, Wo)

    # weights: (cout, cin, kh, kw) -> (kh*3+kw, cin, cout_pad); bias -> (1, cout_pad)
    w_taps = jnp.transpose(weight, (2, 3, 1, 0)).reshape(9, C, C).astype(compute_dtype)
    w_taps = jnp.pad(w_taps, ((0, 0), (0, 0), (0, Cp - C)))
    b2 = jnp.pad(bias.astype(jnp.float32).reshape(1, C), ((0, 0), (0, Cp - C)))

    vmem_limit = int(min(max(ws_bytes(TH) + (4 << 20), 32 << 20), 48 << 20))

    out = pl.pallas_call(
        _downsample_kernel,
        out_shape=jax.ShapeDtypeStruct((B, HT, Wo, Cp), jnp.float32),
        grid_spec=pltpu.PrefetchScalarGridSpec(
            num_scalar_prefetch=0,
            grid=(B, n_tiles),
            in_specs=[
                pl.BlockSpec((1, TH, Wo + 1, C), lambda b, i: (b, i, 0, 0)),      # ee
                pl.BlockSpec((1, TH, Wo,     C), lambda b, i: (b, i, 0, 0)),      # eo
                pl.BlockSpec((1, TH, Wo + 1, C), lambda b, i: (b, i, 0, 0)),      # oe
                pl.BlockSpec((1, TH, Wo,     C), lambda b, i: (b, i, 0, 0)),      # oo
                pl.BlockSpec((1, TH, Wo + 1, C), lambda b, i: (b, i + 1, 0, 0)),  # ee halo view
                pl.BlockSpec((1, TH, Wo,     C), lambda b, i: (b, i + 1, 0, 0)),  # eo halo view
                pl.BlockSpec((9, C, Cp), lambda b, i: (0, 0, 0)),                 # weights (resident)
                pl.BlockSpec((1, Cp), lambda b, i: (0, 0)),                       # bias (resident)
            ],
            out_specs=pl.BlockSpec((1, TH, Wo, Cp), lambda b, i: (b, i, 0, 0)),
        ),
        compiler_params=pltpu.CompilerParams(
            dimension_semantics=("parallel", "parallel"),
            vmem_limit_bytes=vmem_limit,
        ),
    )(ee, eo, oe, oo, ee, eo, w_taps, b2)

    out = out[:, :Ho, :, :C]                                # (B, Ho, Wo, C) f32
    return jnp.transpose(out, (0, 3, 1, 2)).astype(x_nchw.dtype)


def _reference(x, weight, bias):
    """Same semantics, same bf16-operand / f32-accumulate numerics as the kernel."""
    C = x.shape[1]
    x_pad = jnp.pad(x, ((0, 0), (0, 0), (0, 1), (0, 1)))
    y = jax.lax.conv_general_dilated(
        x_pad.astype(jnp.bfloat16), weight.astype(jnp.bfloat16),
        window_strides=(2, 2), padding="VALID",
        dimension_numbers=("NCHW", "OIHW", "NCHW"),
        preferred_element_type=jnp.float32,
    ) + bias.reshape(1, C, 1, 1)
    return y


if __name__ == "__main__":
    key = jax.random.PRNGKey(0)

    # Test 1: the nominal small shape (single row tile per image).
    k1, k2, k3, key = jax.random.split(key, 4)
    B, C, H, W = 2, 4, 16, 16
    x = jax.random.normal(k1, (B, C, H, W), dtype=jnp.float32)
    bound = 1.0 / ((C * 9) ** 0.5)
    weight = jax.random.uniform(k2, (C, C, 3, 3), jnp.float32, -bound, bound)
    bias = jax.random.uniform(k3, (C,), jnp.float32, -bound, bound)
    y = jax.block_until_ready(downsample_forward(x, weight, bias))
    assert y.shape == (B, C, 8, 8), y.shape
    assert jnp.allclose(y, _reference(x, weight, bias), rtol=1e-2, atol=1e-2), \
        "mismatch vs reference conv (test 1)"

    # Test 2: odd spatial dims + multiple row tiles (exercises the halo path).
    k1, k2, k3, key = jax.random.split(key, 4)
    B, C, H, W = 1, 8, 9, 11
    x = jax.random.normal(k1, (B, C, H, W), dtype=jnp.float32)
    bound = 1.0 / ((C * 9) ** 0.5)
    weight = jax.random.uniform(k2, (C, C, 3, 3), jnp.float32, -bound, bound)
    bias = jax.random.uniform(k3, (C,), jnp.float32, -bound, bound)
    y = jax.block_until_ready(downsample_forward(x, weight, bias))
    y_ref = _reference(x, weight, bias)
    assert y.shape == y_ref.shape, (y.shape, y_ref.shape)
    assert jnp.allclose(y, y_ref, rtol=1e-2, atol=1e-2), \
        "mismatch vs reference conv (test 2)"

    print("KERNEL_OK")
</pallas_src>

<mosaic_0001>
module attributes {stable_mosaic.version = 11 : i64} {
  func.func @_downsample_kernel(%arg0: i32, %arg1: i32, %arg2: memref<1x8x9x4xbf16, #tpu.memory_space<vmem>>, %arg3: memref<1x8x8x4xbf16, #tpu.memory_space<vmem>>, %arg4: memref<1x8x9x4xbf16, #tpu.memory_space<vmem>>, %arg5: memref<1x8x8x4xbf16, #tpu.memory_space<vmem>>, %arg6: memref<1x8x9x4xbf16, #tpu.memory_space<vmem>>, %arg7: memref<1x8x8x4xbf16, #tpu.memory_space<vmem>>, %arg8: memref<9x4x128xbf16, #tpu.memory_space<vmem>>, %arg9: memref<1x128xf32, #tpu.memory_space<vmem>>, %arg10: memref<1x8x8x128xf32, #tpu.memory_space<vmem>>) attributes {dimension_semantics = [#tpu.dimension_semantics<parallel>, #tpu.dimension_semantics<parallel>], iteration_bounds = array<i64: 2, 1>, scalar_prefetch = 0 : i64, scratch_operands = 0 : i64, tpu.core_type = #tpu.core_type<tc>, window_params = [{transform_indices = @transform_0, window_bounds = array<i64: 1, 8, 9, 4>}, {transform_indices = @transform_1, window_bounds = array<i64: 1, 8, 8, 4>}, {transform_indices = @transform_2, window_bounds = array<i64: 1, 8, 9, 4>}, {transform_indices = @transform_3, window_bounds = array<i64: 1, 8, 8, 4>}, {transform_indices = @transform_4, window_bounds = array<i64: 1, 8, 9, 4>}, {transform_indices = @transform_5, window_bounds = array<i64: 1, 8, 8, 4>}, {pipeline_mode = #tpu.pipeline_mode<synchronous>, transform_indices = @transform_6, window_bounds = array<i64: 9, 4, 128>}, {pipeline_mode = #tpu.pipeline_mode<synchronous>, transform_indices = @transform_7, window_bounds = array<i64: 1, 128>}, {transform_indices = @transform_8, window_bounds = array<i64: 1, 8, 8, 128>}]} {
    %c0 = arith.constant 0 : index
    %c0_0 = arith.constant 0 : index
    %0 = vector.load %arg9[%c0, %c0_0] : memref<1x128xf32, #tpu.memory_space<vmem>>, vector<1x128xf32>
    %c0_1 = arith.constant 0 : index
    %c0_2 = arith.constant 0 : index
    %c0_3 = arith.constant 0 : index
    %c0_4 = arith.constant 0 : index
    %1 = vector.load %arg2[%c0_1, %c0_2, %c0_3, %c0_4] : memref<1x8x9x4xbf16, #tpu.memory_space<vmem>>, vector<1x1x8x4xbf16>
    %2 = vector.shape_cast %1 : vector<1x1x8x4xbf16> to vector<8x4xbf16>
    %c0_5 = arith.constant 0 : index
    %c0_6 = arith.constant 0 : index
    %c0_7 = arith.constant 0 : index
    %c0_8 = arith.constant 0 : index
    %3 = vector.load %arg3[%c0_5, %c0_6, %c0_7, %c0_8] : memref<1x8x8x4xbf16, #tpu.memory_space<vmem>>, vector<1x1x8x4xbf16>
    %4 = vector.shape_cast %3 : vector<1x1x8x4xbf16> to vector<8x4xbf16>
    %c0_9 = arith.constant 0 : index
    %c0_10 = arith.constant 0 : index
    %c1 = arith.constant 1 : index
    %c0_11 = arith.constant 0 : index
    %5 = vector.load %arg2[%c0_9, %c0_10, %c1, %c0_11] : memref<1x8x9x4xbf16, #tpu.memory_space<vmem>>, vector<1x1x8x4xbf16>
    %6 = vector.shape_cast %5 : vector<1x1x8x4xbf16> to vector<8x4xbf16>
    %c0_12 = arith.constant 0 : index
    %c0_13 = arith.constant 0 : index
    %c0_14 = arith.constant 0 : index
    %c0_15 = arith.constant 0 : index
    %7 = vector.load %arg4[%c0_12, %c0_13, %c0_14, %c0_15] : memref<1x8x9x4xbf16, #tpu.memory_space<vmem>>, vector<1x1x8x4xbf16>
    %8 = vector.shape_cast %7 : vector<1x1x8x4xbf16> to vector<8x4xbf16>
    %c0_16 = arith.constant 0 : index
    %c0_17 = arith.constant 0 : index
    %c0_18 = arith.constant 0 : index
    %c0_19 = arith.constant 0 : index
    %9 = vector.load %arg5[%c0_16, %c0_17, %c0_18, %c0_19] : memref<1x8x8x4xbf16, #tpu.memory_space<vmem>>, vector<1x1x8x4xbf16>
    %10 = vector.shape_cast %9 : vector<1x1x8x4xbf16> to vector<8x4xbf16>
    %c0_20 = arith.constant 0 : index
    %c0_21 = arith.constant 0 : index
    %c1_22 = arith.constant 1 : index
    %c0_23 = arith.constant 0 : index
    %11 = vector.load %arg4[%c0_20, %c0_21, %c1_22, %c0_23] : memref<1x8x9x4xbf16, #tpu.memory_space<vmem>>, vector<1x1x8x4xbf16>
    %12 = vector.shape_cast %11 : vector<1x1x8x4xbf16> to vector<8x4xbf16>
    %c0_24 = arith.constant 0 : index
    %c1_25 = arith.constant 1 : index
    %c0_26 = arith.constant 0 : index
    %c0_27 = arith.constant 0 : index
    %13 = vector.load %arg2[%c0_24, %c1_25, %c0_26, %c0_27] : memref<1x8x9x4xbf16, #tpu.memory_space<vmem>>, vector<1x1x8x4xbf16>
    %14 = vector.shape_cast %13 : vector<1x1x8x4xbf16> to vector<8x4xbf16>
    %c0_28 = arith.constant 0 : index
    %c1_29 = arith.constant 1 : index
    %c0_30 = arith.constant 0 : index
    %c0_31 = arith.constant 0 : index
    %15 = vector.load %arg3[%c0_28, %c1_29, %c0_30, %c0_31] : memref<1x8x8x4xbf16, #tpu.memory_space<vmem>>, vector<1x1x8x4xbf16>
    %16 = vector.shape_cast %15 : vector<1x1x8x4xbf16> to vector<8x4xbf16>
    %c0_32 = arith.constant 0 : index
    %c1_33 = arith.constant 1 : index
    %c1_34 = arith.constant 1 : index
    %c0_35 = arith.constant 0 : index
    %17 = vector.load %arg2[%c0_32, %c1_33, %c1_34, %c0_35] : memref<1x8x9x4xbf16, #tpu.memory_space<vmem>>, vector<1x1x8x4xbf16>
    %18 = vector.shape_cast %17 : vector<1x1x8x4xbf16> to vector<8x4xbf16>
    %c0_36 = arith.constant 0 : index
    %c0_37 = arith.constant 0 : index
    %c0_38 = arith.constant 0 : index
    %19 = vector.load %arg8[%c0_36, %c0_37, %c0_38] : memref<9x4x128xbf16, #tpu.memory_space<vmem>>, vector<1x4x128xbf16>
    %20 = vector.shape_cast %19 : vector<1x4x128xbf16> to vector<4x128xbf16>
    %cst = arith.constant dense<0.000000e+00> : vector<8x128xf32>
    %21 = tpu.matmul %2, %20, %cst {dimension_numbers = #tpu.dot_dimension_numbers<[1], [0], [0], [1], [0, 0, 1, 1], [], []>} : vector<8x4xbf16>, vector<4x128xbf16>, vector<8x128xf32> -> vector<8x128xf32>
    %22 = vector.broadcast %0 : vector<1x128xf32> to vector<8x128xf32>
    %23 = arith.addf %22, %21 : vector<8x128xf32>
    %c1_39 = arith.constant 1 : index
    %c0_40 = arith.constant 0 : index
    %c0_41 = arith.constant 0 : index
    %24 = vector.load %arg8[%c1_39, %c0_40, %c0_41] : memref<9x4x128xbf16, #tpu.memory_space<vmem>>, vector<1x4x128xbf16>
    %25 = vector.shape_cast %24 : vector<1x4x128xbf16> to vector<4x128xbf16>
    %cst_42 = arith.constant dense<0.000000e+00> : vector<8x128xf32>
    %26 = tpu.matmul %4, %25, %cst_42 {dimension_numbers = #tpu.dot_dimension_numbers<[1], [0], [0], [1], [0, 0, 1, 1], [], []>} : vector<8x4xbf16>, vector<4x128xbf16>, vector<8x128xf32> -> vector<8x128xf32>
    %27 = arith.addf %23, %26 : vector<8x128xf32>
    %c2 = arith.constant 2 : index
    %c0_43 = arith.constant 0 : index
    %c0_44 = arith.constant 0 : index
    %28 = vector.load %arg8[%c2, %c0_43, %c0_44] : memref<9x4x128xbf16, #tpu.memory_space<vmem>>, vector<1x4x128xbf16>
    %29 = vector.shape_cast %28 : vector<1x4x128xbf16> to vector<4x128xbf16>
    %cst_45 = arith.constant dense<0.000000e+00> : vector<8x128xf32>
    %30 = tpu.matmul %6, %29, %cst_45 {dimension_numbers = #tpu.dot_dimension_numbers<[1], [0], [0], [1], [0, 0, 1, 1], [], []>} : vector<8x4xbf16>, vector<4x128xbf16>, vector<8x128xf32> -> vector<8x128xf32>
    %31 = arith.addf %27, %30 : vector<8x128xf32>
    %c3 = arith.constant 3 : index
    %c0_46 = arith.constant 0 : index
    %c0_47 = arith.constant 0 : index
    %32 = vector.load %arg8[%c3, %c0_46, %c0_47] : memref<9x4x128xbf16, #tpu.memory_space<vmem>>, vector<1x4x128xbf16>
    %33 = vector.shape_cast %32 : vector<1x4x128xbf16> to vector<4x128xbf16>
    %cst_48 = arith.constant dense<0.000000e+00> : vector<8x128xf32>
    %34 = tpu.matmul %8, %33, %cst_48 {dimension_numbers = #tpu.dot_dimension_numbers<[1], [0], [0], [1], [0, 0, 1, 1], [], []>} : vector<8x4xbf16>, vector<4x128xbf16>, vector<8x128xf32> -> vector<8x128xf32>
    %35 = arith.addf %31, %34 : vector<8x128xf32>
    %c4 = arith.constant 4 : index
    %c0_49 = arith.constant 0 : index
    %c0_50 = arith.constant 0 : index
    %36 = vector.load %arg8[%c4, %c0_49, %c0_50] : memref<9x4x128xbf16, #tpu.memory_space<vmem>>, vector<1x4x128xbf16>
    %37 = vector.shape_cast %36 : vector<1x4x128xbf16> to vector<4x128xbf16>
    %cst_51 = arith.constant dense<0.000000e+00> : vector<8x128xf32>
    %38 = tpu.matmul %10, %37, %cst_51 {dimension_numbers = #tpu.dot_dimension_numbers<[1], [0], [0], [1], [0, 0, 1, 1], [], []>} : vector<8x4xbf16>, vector<4x128xbf16>, vector<8x128xf32> -> vector<8x128xf32>
    %39 = arith.addf %35, %38 : vector<8x128xf32>
    %c5 = arith.constant 5 : index
    %c0_52 = arith.constant 0 : index
    %c0_53 = arith.constant 0 : index
    %40 = vector.load %arg8[%c5, %c0_52, %c0_53] : memref<9x4x128xbf16, #tpu.memory_space<vmem>>, vector<1x4x128xbf16>
    %41 = vector.shape_cast %40 : vector<1x4x128xbf16> to vector<4x128xbf16>
    %cst_54 = arith.constant dense<0.000000e+00> : vector<8x128xf32>
    %42 = tpu.matmul %12, %41, %cst_54 {dimension_numbers = #tpu.dot_dimension_numbers<[1], [0], [0], [1], [0, 0, 1, 1], [], []>} : vector<8x4xbf16>, vector<4x128xbf16>, vector<8x128xf32> -> vector<8x128xf32>
    %43 = arith.addf %39, %42 : vector<8x128xf32>
    %c6 = arith.constant 6 : index
    %c0_55 = arith.constant 0 : index
    %c0_56 = arith.constant 0 : index
    %44 = vector.load %arg8[%c6, %c0_55, %c0_56] : memref<9x4x128xbf16, #tpu.memory_space<vmem>>, vector<1x4x128xbf16>
    %45 = vector.shape_cast %44 : vector<1x4x128xbf16> to vector<4x128xbf16>
    %cst_57 = arith.constant dense<0.000000e+00> : vector<8x128xf32>
    %46 = tpu.matmul %14, %45, %cst_57 {dimension_numbers = #tpu.dot_dimension_numbers<[1], [0], [0], [1], [0, 0, 1, 1], [], []>} : vector<8x4xbf16>, vector<4x128xbf16>, vector<8x128xf32> -> vector<8x128xf32>
    %47 = arith.addf %43, %46 : vector<8x128xf32>
    %c7 = arith.constant 7 : index
    %c0_58 = arith.constant 0 : index
    %c0_59 = arith.constant 0 : index
    %48 = vector.load %arg8[%c7, %c0_58, %c0_59] : memref<9x4x128xbf16, #tpu.memory_space<vmem>>, vector<1x4x128xbf16>
    %49 = vector.shape_cast %48 : vector<1x4x128xbf16> to vector<4x128xbf16>
    %cst_60 = arith.constant dense<0.000000e+00> : vector<8x128xf32>
    %50 = tpu.matmul %16, %49, %cst_60 {dimension_numbers = #tpu.dot_dimension_numbers<[1], [0], [0], [1], [0, 0, 1, 1], [], []>} : vector<8x4xbf16>, vector<4x128xbf16>, vector<8x128xf32> -> vector<8x128xf32>
    %51 = arith.addf %47, %50 : vector<8x128xf32>
    %c8 = arith.constant 8 : index
    %c0_61 = arith.constant 0 : index
    %c0_62 = arith.constant 0 : index
    %52 = vector.load %arg8[%c8, %c0_61, %c0_62] : memref<9x4x128xbf16, #tpu.memory_space<vmem>>, vector<1x4x128xbf16>
    %53 = vector.shape_cast %52 : vector<1x4x128xbf16> to vector<4x128xbf16>
    %cst_63 = arith.constant dense<0.000000e+00> : vector<8x128xf32>
    %54 = tpu.matmul %18, %53, %cst_63 {dimension_numbers = #tpu.dot_dimension_numbers<[1], [0], [0], [1], [0, 0, 1, 1], [], []>} : vector<8x4xbf16>, vector<4x128xbf16>, vector<8x128xf32> -> vector<8x128xf32>
    %55 = arith.addf %51, %54 : vector<8x128xf32>
    %c0_64 = arith.constant 0 : index
    %c0_65 = arith.constant 0 : index
    %c0_66 = arith.constant 0 : index
    %c0_67 = arith.constant 0 : index
    %56 = vector.load %arg10[%c0_64, %c0_65, %c0_66, %c0_67] : memref<1x8x8x128xf32, #tpu.memory_space<vmem>>, vector<1x1x8x128xf32>
    %57 = vector.shape_cast %56 : vector<1x1x8x128xf32> to vector<8x128xf32>
    %58 = vector.shape_cast %55 : vector<8x128xf32> to vector<1x1x8x128xf32>
    tpu.vector_store %arg10[%c0_64, %c0_65, %c0_66, %c0_67], %58 {strides = array<i32>} : memref<1x8x8x128xf32, #tpu.memory_space<vmem>>, vector<1x1x8x128xf32>,
    %c0_68 = arith.constant 0 : index
    %c1_69 = arith.constant 1 : index
    %c0_70 = arith.constant 0 : index
    %c0_71 = arith.constant 0 : index
    %59 = vector.load %arg2[%c0_68, %c1_69, %c0_70, %c0_71] : memref<1x8x9x4xbf16, #tpu.memory_space<vmem>>, vector<1x1x8x4xbf16>
    %60 = vector.shape_cast %59 : vector<1x1x8x4xbf16> to vector<8x4xbf16>
    %c0_72 = arith.constant 0 : index
    %c1_73 = arith.constant 1 : index
    %c0_74 = arith.constant 0 : index
    %c0_75 = arith.constant 0 : index
    %61 = vector.load %arg3[%c0_72, %c1_73, %c0_74, %c0_75] : memref<1x8x8x4xbf16, #tpu.memory_space<vmem>>, vector<1x1x8x4xbf16>
    %62 = vector.shape_cast %61 : vector<1x1x8x4xbf16> to vector<8x4xbf16>
    %c0_76 = arith.constant 0 : index
    %c1_77 = arith.constant 1 : index
    %c1_78 = arith.constant 1 : index
    %c0_79 = arith.constant 0 : index
    %63 = vector.load %arg2[%c0_76, %c1_77, %c1_78, %c0_79] : memref<1x8x9x4xbf16, #tpu.memory_space<vmem>>, vector<1x1x8x4xbf16>
    %64 = vector.shape_cast %63 : vector<1x1x8x4xbf16> to vector<8x4xbf16>
    %c0_80 = arith.constant 0 : index
    %c1_81 = arith.constant 1 : index
    %c0_82 = arith.constant 0 : index
    %c0_83 = arith.constant 0 : index
    %65 = vector.load %arg4[%c0_80, %c1_81, %c0_82, %c0_83] : memref<1x8x9x4xbf16, #tpu.memory_space<vmem>>, vector<1x1x8x4xbf16>
    %66 = vector.shape_cast %65 : vector<1x1x8x4xbf16> to vector<8x4xbf16>
    %c0_84 = arith.constant 0 : index
    %c1_85 = arith.constant 1 : index
    %c0_86 = arith.constant 0 : index
    %c0_87 = arith.constant 0 : index
    %67 = vector.load %arg5[%c0_84, %c1_85, %c0_86, %c0_87] : memref<1x8x8x4xbf16, #tpu.memory_space<vmem>>, vector<1x1x8x4xbf16>
    %68 = vector.shape_cast %67 : vector<1x1x8x4xbf16> to vector<8x4xbf16>
    %c0_88 = arith.constant 0 : index
    %c1_89 = arith.constant 1 : index
    %c1_90 = arith.constant 1 : index
    %c0_91 = arith.constant 0 : index
    %69 = vector.load %arg4[%c0_88, %c1_89, %c1_90, %c0_91] : memref<1x8x9x4xbf16, #tpu.memory_space<vmem>>, vector<1x1x8x4xbf16>
    %70 = vector.shape_cast %69 : vector<1x1x8x4xbf16> to vector<8x4xbf16>
    %c0_92 = arith.constant 0 : index
    %c2_93 = arith.constant 2 : index
    %c0_94 = arith.constant 0 : index
    %c0_95 = arith.constant 0 : index
    %71 = vector.load %arg2[%c0_92, %c2_93, %c0_94, %c0_95] : memref<1x8x9x4xbf16, #tpu.memory_space<vmem>>, vector<1x1x8x4xbf16>
    %72 = vector.shape_cast %71 : vector<1x1x8x4xbf16> to vector<8x4xbf16>
    %c0_96 = arith.constant 0 : index
    %c2_97 = arith.constant 2 : index
    %c0_98 = arith.constant 0 : index
    %c0_99 = arith.constant 0 : index
    %73 = vector.load %arg3[%c0_96, %c2_97, %c0_98, %c0_99] : memref<1x8x8x4xbf16, #tpu.memory_space<vmem>>, vector<1x1x8x4xbf16>
    %74 = vector.shape_cast %73 : vector<1x1x8x4xbf16> to vector<8x4xbf16>
    %c0_100 = arith.constant 0 : index
    %c2_101 = arith.constant 2 : index
    %c1_102 = arith.constant 1 : index
    %c0_103 = arith.constant 0 : index
    %75 = vector.load %arg2[%c0_100, %c2_101, %c1_102, %c0_103] : memref<1x8x9x4xbf16, #tpu.memory_space<vmem>>, vector<1x1x8x4xbf16>
    %76 = vector.shape_cast %75 : vector<1x1x8x4xbf16> to vector<8x4xbf16>
    %c0_104 = arith.constant 0 : index
    %c0_105 = arith.constant 0 : index
    %c0_106 = arith.constant 0 : index
    %77 = vector.load %arg8[%c0_104, %c0_105, %c0_106] : memref<9x4x128xbf16, #tpu.memory_space<vmem>>, vector<1x4x128xbf16>
    %78 = vector.shape_cast %77 : vector<1x4x128xbf16> to vector<4x128xbf16>
    %cst_107 = arith.constant dense<0.000000e+00> : vector<8x128xf32>
    %79 = tpu.matmul %60, %78, %cst_107 {dimension_numbers = #tpu.dot_dimension_numbers<[1], [0], [0], [1], [0, 0, 1, 1], [], []>} : vector<8x4xbf16>, vector<4x128xbf16>, vector<8x128xf32> -> vector<8x128xf32>
    %80 = vector.broadcast %0 : vector<1x128xf32> to vector<8x128xf32>
    %81 = arith.addf %80, %79 : vector<8x128xf32>
    %c1_108 = arith.constant 1 : index
    %c0_109 = arith.constant 0 : index
    %c0_110 = arith.constant 0 : index
    %82 = vector.load %arg8[%c1_108, %c0_109, %c0_110] : memref<9x4x128xbf16, #tpu.memory_space<vmem>>, vector<1x4x128xbf16>
    %83 = vector.shape_cast %82 : vector<1x4x128xbf16> to vector<4x128xbf16>
    %cst_111 = arith.constant dense<0.000000e+00> : vector<8x128xf32>
    %84 = tpu.matmul %62, %83, %cst_111 {dimension_numbers = #tpu.dot_dimension_numbers<[1], [0], [0], [1], [0, 0, 1, 1], [], []>} : vector<8x4xbf16>, vector<4x128xbf16>, vector<8x128xf32> -> vector<8x128xf32>
    %85 = arith.addf %81, %84 : vector<8x128xf32>
    %c2_112 = arith.constant 2 : index
    %c0_113 = arith.constant 0 : index
    %c0_114 = arith.constant 0 : index
    %86 = vector.load %arg8[%c2_112, %c0_113, %c0_114] : memref<9x4x128xbf16, #tpu.memory_space<vmem>>, vector<1x4x128xbf16>
    %87 = vector.shape_cast %86 : vector<1x4x128xbf16> to vector<4x128xbf16>
    %cst_115 = arith.constant dense<0.000000e+00> : vector<8x128xf32>
    %88 = tpu.matmul %64, %87, %cst_115 {dimension_numbers = #tpu.dot_dimension_numbers<[1], [0], [0], [1], [0, 0, 1, 1], [], []>} : vector<8x4xbf16>, vector<4x128xbf16>, vector<8x128xf32> -> vector<8x128xf32>
    %89 = arith.addf %85, %88 : vector<8x128xf32>
    %c3_116 = arith.constant 3 : index
    %c0_117 = arith.constant 0 : index
    %c0_118 = arith.constant 0 : index
    %90 = vector.load %arg8[%c3_116, %c0_117, %c0_118] : memref<9x4x128xbf16, #tpu.memory_space<vmem>>, vector<1x4x128xbf16>
    %91 = vector.shape_cast %90 : vector<1x4x128xbf16> to vector<4x128xbf16>
    %cst_119 = arith.constant dense<0.000000e+00> : vector<8x128xf32>
    %92 = tpu.matmul %66, %91, %cst_119 {dimension_numbers = #tpu.dot_dimension_numbers<[1], [0], [0], [1], [0, 0, 1, 1], [], []>} : vector<8x4xbf16>, vector<4x128xbf16>, vector<8x128xf32> -> vector<8x128xf32>
    %93 = arith.addf %89, %92 : vector<8x128xf32>
    %c4_120 = arith.constant 4 : index
    %c0_121 = arith.constant 0 : index
    %c0_122 = arith.constant 0 : index
    %94 = vector.load %arg8[%c4_120, %c0_121, %c0_122] : memref<9x4x128xbf16, #tpu.memory_space<vmem>>, vector<1x4x128xbf16>
    %95 = vector.shape_cast %94 : vector<1x4x128xbf16> to vector<4x128xbf16>
    %cst_123 = arith.constant dense<0.000000e+00> : vector<8x128xf32>
    %96 = tpu.matmul %68, %95, %cst_123 {dimension_numbers = #tpu.dot_dimension_numbers<[1], [0], [0], [1], [0, 0, 1, 1], [], []>} : vector<8x4xbf16>, vector<4x128xbf16>, vector<8x128xf32> -> vector<8x128xf32>
    %97 = arith.addf %93, %96 : vector<8x128xf32>
    %c5_124 = arith.constant 5 : index
    %c0_125 = arith.constant 0 : index
    %c0_126 = arith.constant 0 : index
    %98 = vector.load %arg8[%c5_124, %c0_125, %c0_126] : memref<9x4x128xbf16, #tpu.memory_space<vmem>>, vector<1x4x128xbf16>
    %99 = vector.shape_cast %98 : vector<1x4x128xbf16> to vector<4x128xbf16>
    %cst_127 = arith.constant dense<0.000000e+00> : vector<8x128xf32>
    %100 = tpu.matmul %70, %99, %cst_127 {dimension_numbers = #tpu.dot_dimension_numbers<[1], [0], [0], [1], [0, 0, 1, 1], [], []>} : vector<8x4xbf16>, vector<4x128xbf16>, vector<8x128xf32> -> vector<8x128xf32>
    %101 = arith.addf %97, %100 : vector<8x128xf32>
    %c6_128 = arith.constant 6 : index
    %c0_129 = arith.constant 0 : index
    %c0_130 = arith.constant 0 : index
    %102 = vector.load %arg8[%c6_128, %c0_129, %c0_130] : memref<9x4x128xbf16, #tpu.memory_space<vmem>>, vector<1x4x128xbf16>
    %103 = vector.shape_cast %102 : vector<1x4x128xbf16> to vector<4x128xbf16>
    %cst_131 = arith.constant dense<0.000000e+00> : vector<8x128xf32>
    %104 = tpu.matmul %72, %103, %cst_131 {dimension_numbers = #tpu.dot_dimension_numbers<[1], [0], [0], [1], [0, 0, 1, 1], [], []>} : vector<8x4xbf16>, vector<4x128xbf16>, vector<8x128xf32> -> vector<8x128xf32>
    %105 = arith.addf %101, %104 : vector<8x128xf32>
    %c7_132 = arith.constant 7 : index
    %c0_133 = arith.constant 0 : index
    %c0_134 = arith.constant 0 : index
    %106 = vector.load %arg8[%c7_132, %c0_133, %c0_134] : memref<9x4x128xbf16, #tpu.memory_space<vmem>>, vector<1x4x128xbf16>
    %107 = vector.shape_cast %106 : vector<1x4x128xbf16> to vector<4x128xbf16>
    %cst_135 = arith.constant dense<0.000000e+00> : vector<8x128xf32>
    %108 = tpu.matmul %74, %107, %cst_135 {dimension_numbers = #tpu.dot_dimension_numbers<[1], [0], [0], [1], [0, 0, 1, 1], [], []>} : vector<8x4xbf16>, vector<4x128xbf16>, vector<8x128xf32> -> vector<8x128xf32>
    %109 = arith.addf %105, %108 : vector<8x128xf32>
    %c8_136 = arith.constant 8 : index
    %c0_137 = arith.constant 0 : index
    %c0_138 = arith.constant 0 : index
    %110 = vector.load %arg8[%c8_136, %c0_137, %c0_138] : memref<9x4x128xbf16, #tpu.memory_space<vmem>>, vector<1x4x128xbf16>
    %111 = vector.shape_cast %110 : vector<1x4x128xbf16> to vector<4x128xbf16>
    %cst_139 = arith.constant dense<0.000000e+00> : vector<8x128xf32>
    %112 = tpu.matmul %76, %111, %cst_139 {dimension_numbers = #tpu.dot_dimension_numbers<[1], [0], [0], [1], [0, 0, 1, 1], [], []>} : vector<8x4xbf16>, vector<4x128xbf16>, vector<8x128xf32> -> vector<8x128xf32>
    %113 = arith.addf %109, %112 : vector<8x128xf32>
    %c0_140 = arith.constant 0 : index
    %c1_141 = arith.constant 1 : index
    %c0_142 = arith.constant 0 : index
    %c0_143 = arith.constant 0 : index
    %114 = vector.load %arg10[%c0_140, %c1_141, %c0_142, %c0_143] : memref<1x8x8x128xf32, #tpu.memory_space<vmem>>, vector<1x1x8x128xf32>
    %115 = vector.shape_cast %114 : vector<1x1x8x128xf32> to vector<8x128xf32>
    %116 = vector.shape_cast %113 : vector<8x128xf32> to vector<1x1x8x128xf32>
    tpu.vector_store %arg10[%c0_140, %c1_141, %c0_142, %c0_143], %116 {strides = array<i32>} : memref<1x8x8x128xf32, #tpu.memory_space<vmem>>, vector<1x1x8x128xf32>,
    %c0_144 = arith.constant 0 : index
    %c2_145 = arith.constant 2 : index
    %c0_146 = arith.constant 0 : index
    %c0_147 = arith.constant 0 : index
    %117 = vector.load %arg2[%c0_144, %c2_145, %c0_146, %c0_147] : memref<1x8x9x4xbf16, #tpu.memory_space<vmem>>, vector<1x1x8x4xbf16>
    %118 = vector.shape_cast %117 : vector<1x1x8x4xbf16> to vector<8x4xbf16>
    %c0_148 = arith.constant 0 : index
    %c2_149 = arith.constant 2 : index
    %c0_150 = arith.constant 0 : index
    %c0_151 = arith.constant 0 : index
    %119 = vector.load %arg3[%c0_148, %c2_149, %c0_150, %c0_151] : memref<1x8x8x4xbf16, #tpu.memory_space<vmem>>, vector<1x1x8x4xbf16>
    %120 = vector.shape_cast %119 : vector<1x1x8x4xbf16> to vector<8x4xbf16>
    %c0_152 = arith.constant 0 : index
    %c2_153 = arith.constant 2 : index
    %c1_154 = arith.constant 1 : index
    %c0_155 = arith.constant 0 : index
    %121 = vector.load %arg2[%c0_152, %c2_153, %c1_154, %c0_155] : memref<1x8x9x4xbf16, #tpu.memory_space<vmem>>, vector<1x1x8x4xbf16>
    %122 = vector.shape_cast %121 : vector<1x1x8x4xbf16> to vector<8x4xbf16>
    %c0_156 = arith.constant 0 : index
    %c2_157 = arith.constant 2 : index
    %c0_158 = arith.constant 0 : index
    %c0_159 = arith.constant 0 : index
    %123 = vector.load %arg4[%c0_156, %c2_157, %c0_158, %c0_159] : memref<1x8x9x4xbf16, #tpu.memory_space<vmem>>, vector<1x1x8x4xbf16>
    %124 = vector.shape_cast %123 : vector<1x1x8x4xbf16> to vector<8x4xbf16>
    %c0_160 = arith.constant 0 : index
    %c2_161 = arith.constant 2 : index
    %c0_162 = arith.constant 0 : index
    %c0_163 = arith.constant 0 : index
    %125 = vector.load %arg5[%c0_160, %c2_161, %c0_162, %c0_163] : memref<1x8x8x4xbf16, #tpu.memory_space<vmem>>, vector<1x1x8x4xbf16>
    %126 = vector.shape_cast %125 : vector<1x1x8x4xbf16> to vector<8x4xbf16>
    %c0_164 = arith.constant 0 : index
    %c2_165 = arith.constant 2 : index
    %c1_166 = arith.constant 1 : index
    %c0_167 = arith.constant 0 : index
    %127 = vector.load %arg4[%c0_164, %c2_165, %c1_166, %c0_167] : memref<1x8x9x4xbf16, #tpu.memory_space<vmem>>, vector<1x1x8x4xbf16>
    %128 = vector.shape_cast %127 : vector<1x1x8x4xbf16> to vector<8x4xbf16>
    %c0_168 = arith.constant 0 : index
    %c3_169 = arith.constant 3 : index
    %c0_170 = arith.constant 0 : index
    %c0_171 = arith.constant 0 : index
    %129 = vector.load %arg2[%c0_168, %c3_169, %c0_170, %c0_171] : memref<1x8x9x4xbf16, #tpu.memory_space<vmem>>, vector<1x1x8x4xbf16>
    %130 = vector.shape_cast %129 : vector<1x1x8x4xbf16> to vector<8x4xbf16>
    %c0_172 = arith.constant 0 : index
    %c3_173 = arith.constant 3 : index
    %c0_174 = arith.constant 0 : index
    %c0_175 = arith.constant 0 : index
    %131 = vector.load %arg3[%c0_172, %c3_173, %c0_174, %c0_175] : memref<1x8x8x4xbf16, #tpu.memory_space<vmem>>, vector<1x1x8x4xbf16>
    %132 = vector.shape_cast %131 : vector<1x1x8x4xbf16> to vector<8x4xbf16>
    %c0_176 = arith.constant 0 : index
    %c3_177 = arith.constant 3 : index
    %c1_178 = arith.constant 1 : index
    %c0_179 = arith.constant 0 : index
    %133 = vector.load %arg2[%c0_176, %c3_177, %c1_178, %c0_179] : memref<1x8x9x4xbf16, #tpu.memory_space<vmem>>, vector<1x1x8x4xbf16>
    %134 = vector.shape_cast %133 : vector<1x1x8x4xbf16> to vector<8x4xbf16>
    %c0_180 = arith.constant 0 : index
    %c0_181 = arith.constant 0 : index
    %c0_182 = arith.constant 0 : index
    %135 = vector.load %arg8[%c0_180, %c0_181, %c0_182] : memref<9x4x128xbf16, #tpu.memory_space<vmem>>, vector<1x4x128xbf16>
    %136 = vector.shape_cast %135 : vector<1x4x128xbf16> to vector<4x128xbf16>
    %cst_183 = arith.constant dense<0.000000e+00> : vector<8x128xf32>
    %137 = tpu.matmul %118, %136, %cst_183 {dimension_numbers = #tpu.dot_dimension_numbers<[1], [0], [0], [1], [0, 0, 1, 1], [], []>} : vector<8x4xbf16>, vector<4x128xbf16>, vector<8x128xf32> -> vector<8x128xf32>
    %138 = vector.broadcast %0 : vector<1x128xf32> to vector<8x128xf32>
    %139 = arith.addf %138, %137 : vector<8x128xf32>
    %c1_184 = arith.constant 1 : index
    %c0_185 = arith.constant 0 : index
    %c0_186 = arith.constant 0 : index
    %140 = vector.load %arg8[%c1_184, %c0_185, %c0_186] : memref<9x4x128xbf16, #tpu.memory_space<vmem>>, vector<1x4x128xbf16>
    %141 = vector.shape_cast %140 : vector<1x4x128xbf16> to vector<4x128xbf16>
    %cst_187 = arith.constant dense<0.000000e+00> : vector<8x128xf32>
    %142 = tpu.matmul %120, %141, %cst_187 {dimension_numbers = #tpu.dot_dimension_numbers<[1], [0], [0], [1], [0, 0, 1, 1], [], []>} : vector<8x4xbf16>, vector<4x128xbf16>, vector<8x128xf32> -> vector<8x128xf32>
    %143 = arith.addf %139, %142 : vector<8x128xf32>
    %c2_188 = arith.constant 2 : index
    %c0_189 = arith.constant 0 : index
    %c0_190 = arith.constant 0 : index
    %144 = vector.load %arg8[%c2_188, %c0_189, %c0_190] : memref<9x4x128xbf16, #tpu.memory_space<vmem>>, vector<1x4x128xbf16>
    %145 = vector.shape_cast %144 : vector<1x4x128xbf16> to vector<4x128xbf16>
    %cst_191 = arith.constant dense<0.000000e+00> : vector<8x128xf32>
    %146 = tpu.matmul %122, %145, %cst_191 {dimension_numbers = #tpu.dot_dimension_numbers<[1], [0], [0], [1], [0, 0, 1, 1], [], []>} : vector<8x4xbf16>, vector<4x128xbf16>, vector<8x128xf32> -> vector<8x128xf32>
    %147 = arith.addf %143, %146 : vector<8x128xf32>
    %c3_192 = arith.constant 3 : index
    %c0_193 = arith.constant 0 : index
    %c0_194 = arith.constant 0 : index
    %148 = vector.load %arg8[%c3_192, %c0_193, %c0_194] : memref<9x4x128xbf16, #tpu.memory_space<vmem>>, vector<1x4x128xbf16>
    %149 = vector.shape_cast %148 : vector<1x4x128xbf16> to vector<4x128xbf16>
    %cst_195 = arith.constant dense<0.000000e+00> : vector<8x128xf32>
    %150 = tpu.matmul %124, %149, %cst_195 {dimension_numbers = #tpu.dot_dimension_numbers<[1], [0], [0], [1], [0, 0, 1, 1], [], []>} : vector<8x4xbf16>, vector<4x128xbf16>, vector<8x128xf32> -> vector<8x128xf32>
    %151 = arith.addf %147, %150 : vector<8x128xf32>
    %c4_196 = arith.constant 4 : index
    %c0_197 = arith.constant 0 : index
    %c0_198 = arith.constant 0 : index
    %152 = vector.load %arg8[%c4_196, %c0_197, %c0_198] : memref<9x4x128xbf16, #tpu.memory_space<vmem>>, vector<1x4x128xbf16>
    %153 = vector.shape_cast %152 : vector<1x4x128xbf16> to vector<4x128xbf16>
    %cst_199 = arith.constant dense<0.000000e+00> : vector<8x128xf32>
    %154 = tpu.matmul %126, %153, %cst_199 {dimension_numbers = #tpu.dot_dimension_numbers<[1], [0], [0], [1], [0, 0, 1, 1], [], []>} : vector<8x4xbf16>, vector<4x128xbf16>, vector<8x128xf32> -> vector<8x128xf32>
    %155 = arith.addf %151, %154 : vector<8x128xf32>
    %c5_200 = arith.constant 5 : index
    %c0_201 = arith.constant 0 : index
    %c0_202 = arith.constant 0 : index
    %156 = vector.load %arg8[%c5_200, %c0_201, %c0_202] : memref<9x4x128xbf16, #tpu.memory_space<vmem>>, vector<1x4x128xbf16>
    %157 = vector.shape_cast %156 : vector<1x4x128xbf16> to vector<4x128xbf16>
    %cst_203 = arith.constant dense<0.000000e+00> : vector<8x128xf32>
    %158 = tpu.matmul %128, %157, %cst_203 {dimension_numbers = #tpu.dot_dimension_numbers<[1], [0], [0], [1], [0, 0, 1, 1], [], []>} : vector<8x4xbf16>, vector<4x128xbf16>, vector<8x128xf32> -> vector<8x128xf32>
    %159 = arith.addf %155, %158 : vector<8x128xf32>
    %c6_204 = arith.constant 6 : index
    %c0_205 = arith.constant 0 : index
    %c0_206 = arith.constant 0 : index
    %160 = vector.load %arg8[%c6_204, %c0_205, %c0_206] : memref<9x4x128xbf16, #tpu.memory_space<vmem>>, vector<1x4x128xbf16>
    %161 = vector.shape_cast %160 : vector<1x4x128xbf16> to vector<4x128xbf16>
    %cst_207 = arith.constant dense<0.000000e+00> : vector<8x128xf32>
    %162 = tpu.matmul %130, %161, %cst_207 {dimension_numbers = #tpu.dot_dimension_numbers<[1], [0], [0], [1], [0, 0, 1, 1], [], []>} : vector<8x4xbf16>, vector<4x128xbf16>, vector<8x128xf32> -> vector<8x128xf32>
    %163 = arith.addf %159, %162 : vector<8x128xf32>
    %c7_208 = arith.constant 7 : index
    %c0_209 = arith.constant 0 : index
    %c0_210 = arith.constant 0 : index
    %164 = vector.load %arg8[%c7_208, %c0_209, %c0_210] : memref<9x4x128xbf16, #tpu.memory_space<vmem>>, vector<1x4x128xbf16>
    %165 = vector.shape_cast %164 : vector<1x4x128xbf16> to vector<4x128xbf16>
    %cst_211 = arith.constant dense<0.000000e+00> : vector<8x128xf32>
    %166 = tpu.matmul %132, %165, %cst_211 {dimension_numbers = #tpu.dot_dimension_numbers<[1], [0], [0], [1], [0, 0, 1, 1], [], []>} : vector<8x4xbf16>, vector<4x128xbf16>, vector<8x128xf32> -> vector<8x128xf32>
    %167 = arith.addf %163, %166 : vector<8x128xf32>
    %c8_212 = arith.constant 8 : index
    %c0_213 = arith.constant 0 : index
    %c0_214 = arith.constant 0 : index
    %168 = vector.load %arg8[%c8_212, %c0_213, %c0_214] : memref<9x4x128xbf16, #tpu.memory_space<vmem>>, vector<1x4x128xbf16>
    %169 = vector.shape_cast %168 : vector<1x4x128xbf16> to vector<4x128xbf16>
    %cst_215 = arith.constant dense<0.000000e+00> : vector<8x128xf32>
    %170 = tpu.matmul %134, %169, %cst_215 {dimension_numbers = #tpu.dot_dimension_numbers<[1], [0], [0], [1], [0, 0, 1, 1], [], []>} : vector<8x4xbf16>, vector<4x128xbf16>, vector<8x128xf32> -> vector<8x128xf32>
    %171 = arith.addf %167, %170 : vector<8x128xf32>
    %c0_216 = arith.constant 0 : index
    %c2_217 = arith.constant 2 : index
    %c0_218 = arith.constant 0 : index
    %c0_219 = arith.constant 0 : index
    %172 = vector.load %arg10[%c0_216, %c2_217, %c0_218, %c0_219] : memref<1x8x8x128xf32, #tpu.memory_space<vmem>>, vector<1x1x8x128xf32>
    %173 = vector.shape_cast %172 : vector<1x1x8x128xf32> to vector<8x128xf32>
    %174 = vector.shape_cast %171 : vector<8x128xf32> to vector<1x1x8x128xf32>
    tpu.vector_store %arg10[%c0_216, %c2_217, %c0_218, %c0_219], %174 {strides = array<i32>} : memref<1x8x8x128xf32, #tpu.memory_space<vmem>>, vector<1x1x8x128xf32>,
    %c0_220 = arith.constant 0 : index
    %c3_221 = arith.constant 3 : index
    %c0_222 = arith.constant 0 : index
    %c0_223 = arith.constant 0 : index
    %175 = vector.load %arg2[%c0_220, %c3_221, %c0_222, %c0_223] : memref<1x8x9x4xbf16, #tpu.memory_space<vmem>>, vector<1x1x8x4xbf16>
    %176 = vector.shape_cast %175 : vector<1x1x8x4xbf16> to vector<8x4xbf16>
    %c0_224 = arith.constant 0 : index
    %c3_225 = arith.constant 3 : index
    %c0_226 = arith.constant 0 : index
    %c0_227 = arith.constant 0 : index
    %177 = vector.load %arg3[%c0_224, %c3_225, %c0_226, %c0_227] : memref<1x8x8x4xbf16, #tpu.memory_space<vmem>>, vector<1x1x8x4xbf16>
    %178 = vector.shape_cast %177 : vector<1x1x8x4xbf16> to vector<8x4xbf16>
    %c0_228 = arith.constant 0 : index
    %c3_229 = arith.constant 3 : index
    %c1_230 = arith.constant 1 : index
    %c0_231 = arith.constant 0 : index
    %179 = vector.load %arg2[%c0_228, %c3_229, %c1_230, %c0_231] : memref<1x8x9x4xbf16, #tpu.memory_space<vmem>>, vector<1x1x8x4xbf16>
    %180 = vector.shape_cast %179 : vector<1x1x8x4xbf16> to vector<8x4xbf16>
    %c0_232 = arith.constant 0 : index
    %c3_233 = arith.constant 3 : index
    %c0_234 = arith.constant 0 : index
    %c0_235 = arith.constant 0 : index
    %181 = vector.load %arg4[%c0_232, %c3_233, %c0_234, %c0_235] : memref<1x8x9x4xbf16, #tpu.memory_space<vmem>>, vector<1x1x8x4xbf16>
    %182 = vector.shape_cast %181 : vector<1x1x8x4xbf16> to vector<8x4xbf16>
    %c0_236 = arith.constant 0 : index
    %c3_237 = arith.constant 3 : index
    %c0_238 = arith.constant 0 : index
    %c0_239 = arith.constant 0 : index
    %183 = vector.load %arg5[%c0_236, %c3_237, %c0_238, %c0_239] : memref<1x8x8x4xbf16, #tpu.memory_space<vmem>>, vector<1x1x8x4xbf16>
    %184 = vector.shape_cast %183 : vector<1x1x8x4xbf16> to vector<8x4xbf16>
    %c0_240 = arith.constant 0 : index
    %c3_241 = arith.constant 3 : index
    %c1_242 = arith.constant 1 : index
    %c0_243 = arith.constant 0 : index
    %185 = vector.load %arg4[%c0_240, %c3_241, %c1_242, %c0_243] : memref<1x8x9x4xbf16, #tpu.memory_space<vmem>>, vector<1x1x8x4xbf16>
    %186 = vector.shape_cast %185 : vector<1x1x8x4xbf16> to vector<8x4xbf16>
    %c0_244 = arith.constant 0 : index
    %c4_245 = arith.constant 4 : index
    %c0_246 = arith.constant 0 : index
    %c0_247 = arith.constant 0 : index
    %187 = vector.load %arg2[%c0_244, %c4_245, %c0_246, %c0_247] : memref<1x8x9x4xbf16, #tpu.memory_space<vmem>>, vector<1x1x8x4xbf16>
    %188 = vector.shape_cast %187 : vector<1x1x8x4xbf16> to vector<8x4xbf16>
    %c0_248 = arith.constant 0 : index
    %c4_249 = arith.constant 4 : index
    %c0_250 = arith.constant 0 : index
    %c0_251 = arith.constant 0 : index
    %189 = vector.load %arg3[%c0_248, %c4_249, %c0_250, %c0_251] : memref<1x8x8x4xbf16, #tpu.memory_space<vmem>>, vector<1x1x8x4xbf16>
    %190 = vector.shape_cast %189 : vector<1x1x8x4xbf16> to vector<8x4xbf16>
    %c0_252 = arith.constant 0 : index
    %c4_253 = arith.constant 4 : index
    %c1_254 = arith.constant 1 : index
    %c0_255 = arith.constant 0 : index
    %191 = vector.load %arg2[%c0_252, %c4_253, %c1_254, %c0_255] : memref<1x8x9x4xbf16, #tpu.memory_space<vmem>>, vector<1x1x8x4xbf16>
    %192 = vector.shape_cast %191 : vector<1x1x8x4xbf16> to vector<8x4xbf16>
    %c0_256 = arith.constant 0 : index
    %c0_257 = arith.constant 0 : index
    %c0_258 = arith.constant 0 : index
    %193 = vector.load %arg8[%c0_256, %c0_257, %c0_258] : memref<9x4x128xbf16, #tpu.memory_space<vmem>>, vector<1x4x128xbf16>
    %194 = vector.shape_cast %193 : vector<1x4x128xbf16> to vector<4x128xbf16>
    %cst_259 = arith.constant dense<0.000000e+00> : vector<8x128xf32>
    %195 = tpu.matmul %176, %194, %cst_259 {dimension_numbers = #tpu.dot_dimension_numbers<[1], [0], [0], [1], [0, 0, 1, 1], [], []>} : vector<8x4xbf16>, vector<4x128xbf16>, vector<8x128xf32> -> vector<8x128xf32>
    %196 = vector.broadcast %0 : vector<1x128xf32> to vector<8x128xf32>
    %197 = arith.addf %196, %195 : vector<8x128xf32>
    %c1_260 = arith.constant 1 : index
    %c0_261 = arith.constant 0 : index
    %c0_262 = arith.constant 0 : index
    %198 = vector.load %arg8[%c1_260, %c0_261, %c0_262] : memref<9x4x128xbf16, #tpu.memory_space<vmem>>, vector<1x4x128xbf16>
    %199 = vector.shape_cast %198 : vector<1x4x128xbf16> to vector<4x128xbf16>
    %cst_263 = arith.constant dense<0.000000e+00> : vector<8x128xf32>
    %200 = tpu.matmul %178, %199, %cst_263 {dimension_numbers = #tpu.dot_dimension_numbers<[1], [0], [0], [1], [0, 0, 1, 1], [], []>} : vector<8x4xbf16>, vector<4x128xbf16>, vector<8x128xf32> -> vector<8x128xf32>
    %201 = arith.addf %197, %200 : vector<8x128xf32>
    %c2_264 = arith.constant 2 : index
    %c0_265 = arith.constant 0 : index
    %c0_266 = arith.constant 0 : index
    %202 = vector.load %arg8[%c2_264, %c0_265, %c0_266] : memref<9x4x128xbf16, #tpu.memory_space<vmem>>, vector<1x4x128xbf16>
    %203 = vector.shape_cast %202 : vector<1x4x128xbf16> to vector<4x128xbf16>
    %cst_267 = arith.constant dense<0.000000e+00> : vector<8x128xf32>
    %204 = tpu.matmul %180, %203, %cst_267 {dimension_numbers = #tpu.dot_dimension_numbers<[1], [0], [0], [1], [0, 0, 1, 1], [], []>} : vector<8x4xbf16>, vector<4x128xbf16>, vector<8x128xf32> -> vector<8x128xf32>
    %205 = arith.addf %201, %204 : vector<8x128xf32>
    %c3_268 = arith.constant 3 : index
    %c0_269 = arith.constant 0 : index
    %c0_270 = arith.constant 0 : index
    %206 = vector.load %arg8[%c3_268, %c0_269, %c0_270] : memref<9x4x128xbf16, #tpu.memory_space<vmem>>, vector<1x4x128xbf16>
    %207 = vector.shape_cast %206 : vector<1x4x128xbf16> to vector<4x128xbf16>
    %cst_271 = arith.constant dense<0.000000e+00> : vector<8x128xf32>
    %208 = tpu.matmul %182, %207, %cst_271 {dimension_numbers = #tpu.dot_dimension_numbers<[1], [0], [0], [1], [0, 0, 1, 1], [], []>} : vector<8x4xbf16>, vector<4x128xbf16>, vector<8x128xf32> -> vector<8x128xf32>
    %209 = arith.addf %205, %208 : vector<8x128xf32>
    %c4_272 = arith.constant 4 : index
    %c0_273 = arith.constant 0 : index
    %c0_274 = arith.constant 0 : index
    %210 = vector.load %arg8[%c4_272, %c0_273, %c0_274] : memref<9x4x128xbf16, #tpu.memory_space<vmem>>, vector<1x4x128xbf16>
    %211 = vector.shape_cast %210 : vector<1x4x128xbf16> to vector<4x128xbf16>
    %cst_275 = arith.constant dense<0.000000e+00> : vector<8x128xf32>
    %212 = tpu.matmul %184, %211, %cst_275 {dimension_numbers = #tpu.dot_dimension_numbers<[1], [0], [0], [1], [0, 0, 1, 1], [], []>} : vector<8x4xbf16>, vector<4x128xbf16>, vector<8x128xf32> -> vector<8x128xf32>
    %213 = arith.addf %209, %212 : vector<8x128xf32>
    %c5_276 = arith.constant 5 : index
    %c0_277 = arith.constant 0 : index
    %c0_278 = arith.constant 0 : index
    %214 = vector.load %arg8[%c5_276, %c0_277, %c0_278] : memref<9x4x128xbf16, #tpu.memory_space<vmem>>, vector<1x4x128xbf16>
    %215 = vector.shape_cast %214 : vector<1x4x128xbf16> to vector<4x128xbf16>
    %cst_279 = arith.constant dense<0.000000e+00> : vector<8x128xf32>
    %216 = tpu.matmul %186, %215, %cst_279 {dimension_numbers = #tpu.dot_dimension_numbers<[1], [0], [0], [1], [0, 0, 1, 1], [], []>} : vector<8x4xbf16>, vector<4x128xbf16>, vector<8x128xf32> -> vector<8x128xf32>
    %217 = arith.addf %213, %216 : vector<8x128xf32>
    %c6_280 = arith.constant 6 : index
    %c0_281 = arith.constant 0 : index
    %c0_282 = arith.constant 0 : index
    %218 = vector.load %arg8[%c6_280, %c0_281, %c0_282] : memref<9x4x128xbf16, #tpu.memory_space<vmem>>, vector<1x4x128xbf16>
    %219 = vector.shape_cast %218 : vector<1x4x128xbf16> to vector<4x128xbf16>
    %cst_283 = arith.constant dense<0.000000e+00> : vector<8x128xf32>
    %220 = tpu.matmul %188, %219, %cst_283 {dimension_numbers = #tpu.dot_dimension_numbers<[1], [0], [0], [1], [0, 0, 1, 1], [], []>} : vector<8x4xbf16>, vector<4x128xbf16>, vector<8x128xf32> -> vector<8x128xf32>
    %221 = arith.addf %217, %220 : vector<8x128xf32>
    %c7_284 = arith.constant 7 : index
    %c0_285 = arith.constant 0 : index
    %c0_286 = arith.constant 0 : index
    %222 = vector.load %arg8[%c7_284, %c0_285, %c0_286] : memref<9x4x128xbf16, #tpu.memory_space<vmem>>, vector<1x4x128xbf16>
    %223 = vector.shape_cast %222 : vector<1x4x128xbf16> to vector<4x128xbf16>
    %cst_287 = arith.constant dense<0.000000e+00> : vector<8x128xf32>
    %224 = tpu.matmul %190, %223, %cst_287 {dimension_numbers = #tpu.dot_dimension_numbers<[1], [0], [0], [1], [0, 0, 1, 1], [], []>} : vector<8x4xbf16>, vector<4x128xbf16>, vector<8x128xf32> -> vector<8x128xf32>
    %225 = arith.addf %221, %224 : vector<8x128xf32>
    %c8_288 = arith.constant 8 : index
    %c0_289 = arith.constant 0 : index
    %c0_290 = arith.constant 0 : index
    %226 = vector.load %arg8[%c8_288, %c0_289, %c0_290] : memref<9x4x128xbf16, #tpu.memory_space<vmem>>, vector<1x4x128xbf16>
    %227 = vector.shape_cast %226 : vector<1x4x128xbf16> to vector<4x128xbf16>
    %cst_291 = arith.constant dense<0.000000e+00> : vector<8x128xf32>
    %228 = tpu.matmul %192, %227, %cst_291 {dimension_numbers = #tpu.dot_dimension_numbers<[1], [0], [0], [1], [0, 0, 1, 1], [], []>} : vector<8x4xbf16>, vector<4x128xbf16>, vector<8x128xf32> -> vector<8x128xf32>
    %229 = arith.addf %225, %228 : vector<8x128xf32>
    %c0_292 = arith.constant 0 : index
    %c3_293 = arith.constant 3 : index
    %c0_294 = arith.constant 0 : index
    %c0_295 = arith.constant 0 : index
    %230 = vector.load %arg10[%c0_292, %c3_293, %c0_294, %c0_295] : memref<1x8x8x128xf32, #tpu.memory_space<vmem>>, vector<1x1x8x128xf32>
    %231 = vector.shape_cast %230 : vector<1x1x8x128xf32> to vector<8x128xf32>
    %232 = vector.shape_cast %229 : vector<8x128xf32> to vector<1x1x8x128xf32>
    tpu.vector_store %arg10[%c0_292, %c3_293, %c0_294, %c0_295], %232 {strides = array<i32>} : memref<1x8x8x128xf32, #tpu.memory_space<vmem>>, vector<1x1x8x128xf32>,
    %c0_296 = arith.constant 0 : index
    %c4_297 = arith.constant 4 : index
    %c0_298 = arith.constant 0 : index
    %c0_299 = arith.constant 0 : index
    %233 = vector.load %arg2[%c0_296, %c4_297, %c0_298, %c0_299] : memref<1x8x9x4xbf16, #tpu.memory_space<vmem>>, vector<1x1x8x4xbf16>
    %234 = vector.shape_cast %233 : vector<1x1x8x4xbf16> to vector<8x4xbf16>
    %c0_300 = arith.constant 0 : index
    %c4_301 = arith.constant 4 : index
    %c0_302 = arith.constant 0 : index
    %c0_303 = arith.constant 0 : index
    %235 = vector.load %arg3[%c0_300, %c4_301, %c0_302, %c0_303] : memref<1x8x8x4xbf16, #tpu.memory_space<vmem>>, vector<1x1x8x4xbf16>
    %236 = vector.shape_cast %235 : vector<1x1x8x4xbf16> to vector<8x4xbf16>
    %c0_304 = arith.constant 0 : index
    %c4_305 = arith.constant 4 : index
    %c1_306 = arith.constant 1 : index
    %c0_307 = arith.constant 0 : index
    %237 = vector.load %arg2[%c0_304, %c4_305, %c1_306, %c0_307] : memref<1x8x9x4xbf16, #tpu.memory_space<vmem>>, vector<1x1x8x4xbf16>
    %238 = vector.shape_cast %237 : vector<1x1x8x4xbf16> to vector<8x4xbf16>
    %c0_308 = arith.constant 0 : index
    %c4_309 = arith.constant 4 : index
    %c0_310 = arith.constant 0 : index
    %c0_311 = arith.constant 0 : index
    %239 = vector.load %arg4[%c0_308, %c4_309, %c0_310, %c0_311] : memref<1x8x9x4xbf16, #tpu.memory_space<vmem>>, vector<1x1x8x4xbf16>
    %240 = vector.shape_cast %239 : vector<1x1x8x4xbf16> to vector<8x4xbf16>
    %c0_312 = arith.constant 0 : index
    %c4_313 = arith.constant 4 : index
    %c0_314 = arith.constant 0 : index
    %c0_315 = arith.constant 0 : index
    %241 = vector.load %arg5[%c0_312, %c4_313, %c0_314, %c0_315] : memref<1x8x8x4xbf16, #tpu.memory_space<vmem>>, vector<1x1x8x4xbf16>
    %242 = vector.shape_cast %241 : vector<1x1x8x4xbf16> to vector<8x4xbf16>
    %c0_316 = arith.constant 0 : index
    %c4_317 = arith.constant 4 : index
    %c1_318 = arith.constant 1 : index
    %c0_319 = arith.constant 0 : index
    %243 = vector.load %arg4[%c0_316, %c4_317, %c1_318, %c0_319] : memref<1x8x9x4xbf16, #tpu.memory_space<vmem>>, vector<1x1x8x4xbf16>
    %244 = vector.shape_cast %243 : vector<1x1x8x4xbf16> to vector<8x4xbf16>
    %c0_320 = arith.constant 0 : index
    %c5_321 = arith.constant 5 : index
    %c0_322 = arith.constant 0 : index
    %c0_323 = arith.constant 0 : index
    %245 = vector.load %arg2[%c0_320, %c5_321, %c0_322, %c0_323] : memref<1x8x9x4xbf16, #tpu.memory_space<vmem>>, vector<1x1x8x4xbf16>
    %246 = vector.shape_cast %245 : vector<1x1x8x4xbf16> to vector<8x4xbf16>
    %c0_324 = arith.constant 0 : index
    %c5_325 = arith.constant 5 : index
    %c0_326 = arith.constant 0 : index
    %c0_327 = arith.constant 0 : index
    %247 = vector.load %arg3[%c0_324, %c5_325, %c0_326, %c0_327] : memref<1x8x8x4xbf16, #tpu.memory_space<vmem>>, vector<1x1x8x4xbf16>
    %248 = vector.shape_cast %247 : vector<1x1x8x4xbf16> to vector<8x4xbf16>
    %c0_328 = arith.constant 0 : index
    %c5_329 = arith.constant 5 : index
    %c1_330 = arith.constant 1 : index
    %c0_331 = arith.constant 0 : index
    %249 = vector.load %arg2[%c0_328, %c5_329, %c1_330, %c0_331] : memref<1x8x9x4xbf16, #tpu.memory_space<vmem>>, vector<1x1x8x4xbf16>
    %250 = vector.shape_cast %249 : vector<1x1x8x4xbf16> to vector<8x4xbf16>
    %c0_332 = arith.constant 0 : index
    %c0_333 = arith.constant 0 : index
    %c0_334 = arith.constant 0 : index
    %251 = vector.load %arg8[%c0_332, %c0_333, %c0_334] : memref<9x4x128xbf16, #tpu.memory_space<vmem>>, vector<1x4x128xbf16>
    %252 = vector.shape_cast %251 : vector<1x4x128xbf16> to vector<4x128xbf16>
    %cst_335 = arith.constant dense<0.000000e+00> : vector<8x128xf32>
    %253 = tpu.matmul %234, %252, %cst_335 {dimension_numbers = #tpu.dot_dimension_numbers<[1], [0], [0], [1], [0, 0, 1, 1], [], []>} : vector<8x4xbf16>, vector<4x128xbf16>, vector<8x128xf32> -> vector<8x128xf32>
    %254 = vector.broadcast %0 : vector<1x128xf32> to vector<8x128xf32>
    %255 = arith.addf %254, %253 : vector<8x128xf32>
    %c1_336 = arith.constant 1 : index
    %c0_337 = arith.constant 0 : index
    %c0_338 = arith.constant 0 : index
    %256 = vector.load %arg8[%c1_336, %c0_337, %c0_338] : memref<9x4x128xbf16, #tpu.memory_space<vmem>>, vector<1x4x128xbf16>
    %257 = vector.shape_cast %256 : vector<1x4x128xbf16> to vector<4x128xbf16>
    %cst_339 = arith.constant dense<0.000000e+00> : vector<8x128xf32>
    %258 = tpu.matmul %236, %257, %cst_339 {dimension_numbers = #tpu.dot_dimension_numbers<[1], [0], [0], [1], [0, 0, 1, 1], [], []>} : vector<8x4xbf16>, vector<4x128xbf16>, vector<8x128xf32> -> vector<8x128xf32>
    %259 = arith.addf %255, %258 : vector<8x128xf32>
    %c2_340 = arith.constant 2 : index
    %c0_341 = arith.constant 0 : index
    %c0_342 = arith.constant 0 : index
    %260 = vector.load %arg8[%c2_340, %c0_341, %c0_342] : memref<9x4x128xbf16, #tpu.memory_space<vmem>>, vector<1x4x128xbf16>
    %261 = vector.shape_cast %260 : vector<1x4x128xbf16> to vector<4x128xbf16>
    %cst_343 = arith.constant dense<0.000000e+00> : vector<8x128xf32>
    %262 = tpu.matmul %238, %261, %cst_343 {dimension_numbers = #tpu.dot_dimension_numbers<[1], [0], [0], [1], [0, 0, 1, 1], [], []>} : vector<8x4xbf16>, vector<4x128xbf16>, vector<8x128xf32> -> vector<8x128xf32>
    %263 = arith.addf %259, %262 : vector<8x128xf32>
    %c3_344 = arith.constant 3 : index
    %c0_345 = arith.constant 0 : index
    %c0_346 = arith.constant 0 : index
    %264 = vector.load %arg8[%c3_344, %c0_345, %c0_346] : memref<9x4x128xbf16, #tpu.memory_space<vmem>>, vector<1x4x128xbf16>
    %265 = vector.shape_cast %264 : vector<1x4x128xbf16> to vector<4x128xbf16>
    %cst_347 = arith.constant dense<0.000000e+00> : vector<8x128xf32>
    %266 = tpu.matmul %240, %265, %cst_347 {dimension_numbers = #tpu.dot_dimension_numbers<[1], [0], [0], [1], [0, 0, 1, 1], [], []>} : vector<8x4xbf16>, vector<4x128xbf16>, vector<8x128xf32> -> vector<8x128xf32>
    %267 = arith.addf %263, %266 : vector<8x128xf32>
    %c4_348 = arith.constant 4 : index
    %c0_349 = arith.constant 0 : index
    %c0_350 = arith.constant 0 : index
    %268 = vector.load %arg8[%c4_348, %c0_349, %c0_350] : memref<9x4x128xbf16, #tpu.memory_space<vmem>>, vector<1x4x128xbf16>
    %269 = vector.shape_cast %268 : vector<1x4x128xbf16> to vector<4x128xbf16>
    %cst_351 = arith.constant dense<0.000000e+00> : vector<8x128xf32>
    %270 = tpu.matmul %242, %269, %cst_351 {dimension_numbers = #tpu.dot_dimension_numbers<[1], [0], [0], [1], [0, 0, 1, 1], [], []>} : vector<8x4xbf16>, vector<4x128xbf16>, vector<8x128xf32> -> vector<8x128xf32>
    %271 = arith.addf %267, %270 : vector<8x128xf32>
    %c5_352 = arith.constant 5 : index
    %c0_353 = arith.constant 0 : index
    %c0_354 = arith.constant 0 : index
    %272 = vector.load %arg8[%c5_352, %c0_353, %c0_354] : memref<9x4x128xbf16, #tpu.memory_space<vmem>>, vector<1x4x128xbf16>
    %273 = vector.shape_cast %272 : vector<1x4x128xbf16> to vector<4x128xbf16>
    %cst_355 = arith.constant dense<0.000000e+00> : vector<8x128xf32>
    %274 = tpu.matmul %244, %273, %cst_355 {dimension_numbers = #tpu.dot_dimension_numbers<[1], [0], [0], [1], [0, 0, 1, 1], [], []>} : vector<8x4xbf16>, vector<4x128xbf16>, vector<8x128xf32> -> vector<8x128xf32>
    %275 = arith.addf %271, %274 : vector<8x128xf32>
    %c6_356 = arith.constant 6 : index
    %c0_357 = arith.constant 0 : index
    %c0_358 = arith.constant 0 : index
    %276 = vector.load %arg8[%c6_356, %c0_357, %c0_358] : memref<9x4x128xbf16, #tpu.memory_space<vmem>>, vector<1x4x128xbf16>
    %277 = vector.shape_cast %276 : vector<1x4x128xbf16> to vector<4x128xbf16>
    %cst_359 = arith.constant dense<0.000000e+00> : vector<8x128xf32>
    %278 = tpu.matmul %246, %277, %cst_359 {dimension_numbers = #tpu.dot_dimension_numbers<[1], [0], [0], [1], [0, 0, 1, 1], [], []>} : vector<8x4xbf16>, vector<4x128xbf16>, vector<8x128xf32> -> vector<8x128xf32>
    %279 = arith.addf %275, %278 : vector<8x128xf32>
    %c7_360 = arith.constant 7 : index
    %c0_361 = arith.constant 0 : index
    %c0_362 = arith.constant 0 : index
    %280 = vector.load %arg8[%c7_360, %c0_361, %c0_362] : memref<9x4x128xbf16, #tpu.memory_space<vmem>>, vector<1x4x128xbf16>
    %281 = vector.shape_cast %280 : vector<1x4x128xbf16> to vector<4x128xbf16>
    %cst_363 = arith.constant dense<0.000000e+00> : vector<8x128xf32>
    %282 = tpu.matmul %248, %281, %cst_363 {dimension_numbers = #tpu.dot_dimension_numbers<[1], [0], [0], [1], [0, 0, 1, 1], [], []>} : vector<8x4xbf16>, vector<4x128xbf16>, vector<8x128xf32> -> vector<8x128xf32>
    %283 = arith.addf %279, %282 : vector<8x128xf32>
    %c8_364 = arith.constant 8 : index
    %c0_365 = arith.constant 0 : index
    %c0_366 = arith.constant 0 : index
    %284 = vector.load %arg8[%c8_364, %c0_365, %c0_366] : memref<9x4x128xbf16, #tpu.memory_space<vmem>>, vector<1x4x128xbf16>
    %285 = vector.shape_cast %284 : vector<1x4x128xbf16> to vector<4x128xbf16>
    %cst_367 = arith.constant dense<0.000000e+00> : vector<8x128xf32>
    %286 = tpu.matmul %250, %285, %cst_367 {dimension_numbers = #tpu.dot_dimension_numbers<[1], [0], [0], [1], [0, 0, 1, 1], [], []>} : vector<8x4xbf16>, vector<4x128xbf16>, vector<8x128xf32> -> vector<8x128xf32>
    %287 = arith.addf %283, %286 : vector<8x128xf32>
    %c0_368 = arith.constant 0 : index
    %c4_369 = arith.constant 4 : index
    %c0_370 = arith.constant 0 : index
    %c0_371 = arith.constant 0 : index
    %288 = vector.load %arg10[%c0_368, %c4_369, %c0_370, %c0_371] : memref<1x8x8x128xf32, #tpu.memory_space<vmem>>, vector<1x1x8x128xf32>
    %289 = vector.shape_cast %288 : vector<1x1x8x128xf32> to vector<8x128xf32>
    %290 = vector.shape_cast %287 : vector<8x128xf32> to vector<1x1x8x128xf32>
    tpu.vector_store %arg10[%c0_368, %c4_369, %c0_370, %c0_371], %290 {strides = array<i32>} : memref<1x8x8x128xf32, #tpu.memory_space<vmem>>, vector<1x1x8x128xf32>,
    %c0_372 = arith.constant 0 : index
    %c5_373 = arith.constant 5 : index
    %c0_374 = arith.constant 0 : index
    %c0_375 = arith.constant 0 : index
    %291 = vector.load %arg2[%c0_372, %c5_373, %c0_374, %c0_375] : memref<1x8x9x4xbf16, #tpu.memory_space<vmem>>, vector<1x1x8x4xbf16>
    %292 = vector.shape_cast %291 : vector<1x1x8x4xbf16> to vector<8x4xbf16>
    %c0_376 = arith.constant 0 : index
    %c5_377 = arith.constant 5 : index
    %c0_378 = arith.constant 0 : index
    %c0_379 = arith.constant 0 : index
    %293 = vector.load %arg3[%c0_376, %c5_377, %c0_378, %c0_379] : memref<1x8x8x4xbf16, #tpu.memory_space<vmem>>, vector<1x1x8x4xbf16>
    %294 = vector.shape_cast %293 : vector<1x1x8x4xbf16> to vector<8x4xbf16>
    %c0_380 = arith.constant 0 : index
    %c5_381 = arith.constant 5 : index
    %c1_382 = arith.constant 1 : index
    %c0_383 = arith.constant 0 : index
    %295 = vector.load %arg2[%c0_380, %c5_381, %c1_382, %c0_383] : memref<1x8x9x4xbf16, #tpu.memory_space<vmem>>, vector<1x1x8x4xbf16>
    %296 = vector.shape_cast %295 : vector<1x1x8x4xbf16> to vector<8x4xbf16>
    %c0_384 = arith.constant 0 : index
    %c5_385 = arith.constant 5 : index
    %c0_386 = arith.constant 0 : index
    %c0_387 = arith.constant 0 : index
    %297 = vector.load %arg4[%c0_384, %c5_385, %c0_386, %c0_387] : memref<1x8x9x4xbf16, #tpu.memory_space<vmem>>, vector<1x1x8x4xbf16>
    %298 = vector.shape_cast %297 : vector<1x1x8x4xbf16> to vector<8x4xbf16>
    %c0_388 = arith.constant 0 : index
    %c5_389 = arith.constant 5 : index
    %c0_390 = arith.constant 0 : index
    %c0_391 = arith.constant 0 : index
    %299 = vector.load %arg5[%c0_388, %c5_389, %c0_390, %c0_391] : memref<1x8x8x4xbf16, #tpu.memory_space<vmem>>, vector<1x1x8x4xbf16>
    %300 = vector.shape_cast %299 : vector<1x1x8x4xbf16> to vector<8x4xbf16>
    %c0_392 = arith.constant 0 : index
    %c5_393 = arith.constant 5 : index
    %c1_394 = arith.constant 1 : index
    %c0_395 = arith.constant 0 : index
    %301 = vector.load %arg4[%c0_392, %c5_393, %c1_394, %c0_395] : memref<1x8x9x4xbf16, #tpu.memory_space<vmem>>, vector<1x1x8x4xbf16>
    %302 = vector.shape_cast %301 : vector<1x1x8x4xbf16> to vector<8x4xbf16>
    %c0_396 = arith.constant 0 : index
    %c6_397 = arith.constant 6 : index
    %c0_398 = arith.constant 0 : index
    %c0_399 = arith.constant 0 : index
    %303 = vector.load %arg2[%c0_396, %c6_397, %c0_398, %c0_399] : memref<1x8x9x4xbf16, #tpu.memory_space<vmem>>, vector<1x1x8x4xbf16>
    %304 = vector.shape_cast %303 : vector<1x1x8x4xbf16> to vector<8x4xbf16>
    %c0_400 = arith.constant 0 : index
    %c6_401 = arith.constant 6 : index
    %c0_402 = arith.constant 0 : index
    %c0_403 = arith.constant 0 : index
    %305 = vector.load %arg3[%c0_400, %c6_401, %c0_402, %c0_403] : memref<1x8x8x4xbf16, #tpu.memory_space<vmem>>, vector<1x1x8x4xbf16>
    %306 = vector.shape_cast %305 : vector<1x1x8x4xbf16> to vector<8x4xbf16>
    %c0_404 = arith.constant 0 : index
    %c6_405 = arith.constant 6 : index
    %c1_406 = arith.constant 1 : index
    %c0_407 = arith.constant 0 : index
    %307 = vector.load %arg2[%c0_404, %c6_405, %c1_406, %c0_407] : memref<1x8x9x4xbf16, #tpu.memory_space<vmem>>, vector<1x1x8x4xbf16>
    %308 = vector.shape_cast %307 : vector<1x1x8x4xbf16> to vector<8x4xbf16>
    %c0_408 = arith.constant 0 : index
    %c0_409 = arith.constant 0 : index
    %c0_410 = arith.constant 0 : index
    %309 = vector.load %arg8[%c0_408, %c0_409, %c0_410] : memref<9x4x128xbf16, #tpu.memory_space<vmem>>, vector<1x4x128xbf16>
    %310 = vector.shape_cast %309 : vector<1x4x128xbf16> to vector<4x128xbf16>
    %cst_411 = arith.constant dense<0.000000e+00> : vector<8x128xf32>
    %311 = tpu.matmul %292, %310, %cst_411 {dimension_numbers = #tpu.dot_dimension_numbers<[1], [0], [0], [1], [0, 0, 1, 1], [], []>} : vector<8x4xbf16>, vector<4x128xbf16>, vector<8x128xf32> -> vector<8x128xf32>
    %312 = vector.broadcast %0 : vector<1x128xf32> to vector<8x128xf32>
    %313 = arith.addf %312, %311 : vector<8x128xf32>
    %c1_412 = arith.constant 1 : index
    %c0_413 = arith.constant 0 : index
    %c0_414 = arith.constant 0 : index
    %314 = vector.load %arg8[%c1_412, %c0_413, %c0_414] : memref<9x4x128xbf16, #tpu.memory_space<vmem>>, vector<1x4x128xbf16>
    %315 = vector.shape_cast %314 : vector<1x4x128xbf16> to vector<4x128xbf16>
    %cst_415 = arith.constant dense<0.000000e+00> : vector<8x128xf32>
    %316 = tpu.matmul %294, %315, %cst_415 {dimension_numbers = #tpu.dot_dimension_numbers<[1], [0], [0], [1], [0, 0, 1, 1], [], []>} : vector<8x4xbf16>, vector<4x128xbf16>, vector<8x128xf32> -> vector<8x128xf32>
    %317 = arith.addf %313, %316 : vector<8x128xf32>
    %c2_416 = arith.constant 2 : index
    %c0_417 = arith.constant 0 : index
    %c0_418 = arith.constant 0 : index
    %318 = vector.load %arg8[%c2_416, %c0_417, %c0_418] : memref<9x4x128xbf16, #tpu.memory_space<vmem>>, vector<1x4x128xbf16>
    %319 = vector.shape_cast %318 : vector<1x4x128xbf16> to vector<4x128xbf16>
    %cst_419 = arith.constant dense<0.000000e+00> : vector<8x128xf32>
    %320 = tpu.matmul %296, %319, %cst_419 {dimension_numbers = #tpu.dot_dimension_numbers<[1], [0], [0], [1], [0, 0, 1, 1], [], []>} : vector<8x4xbf16>, vector<4x128xbf16>, vector<8x128xf32> -> vector<8x128xf32>
    %321 = arith.addf %317, %320 : vector<8x128xf32>
    %c3_420 = arith.constant 3 : index
    %c0_421 = arith.constant 0 : index
    %c0_422 = arith.constant 0 : index
    %322 = vector.load %arg8[%c3_420, %c0_421, %c0_422] : memref<9x4x128xbf16, #tpu.memory_space<vmem>>, vector<1x4x128xbf16>
    %323 = vector.shape_cast %322 : vector<1x4x128xbf16> to vector<4x128xbf16>
    %cst_423 = arith.constant dense<0.000000e+00> : vector<8x128xf32>
    %324 = tpu.matmul %298, %323, %cst_423 {dimension_numbers = #tpu.dot_dimension_numbers<[1], [0], [0], [1], [0, 0, 1, 1], [], []>} : vector<8x4xbf16>, vector<4x128xbf16>, vector<8x128xf32> -> vector<8x128xf32>
    %325 = arith.addf %321, %324 : vector<8x128xf32>
    %c4_424 = arith.constant 4 : index
    %c0_425 = arith.constant 0 : index
    %c0_426 = arith.constant 0 : index
    %326 = vector.load %arg8[%c4_424, %c0_425, %c0_426] : memref<9x4x128xbf16, #tpu.memory_space<vmem>>, vector<1x4x128xbf16>
    %327 = vector.shape_cast %326 : vector<1x4x128xbf16> to vector<4x128xbf16>
    %cst_427 = arith.constant dense<0.000000e+00> : vector<8x128xf32>
    %328 = tpu.matmul %300, %327, %cst_427 {dimension_numbers = #tpu.dot_dimension_numbers<[1], [0], [0], [1], [0, 0, 1, 1], [], []>} : vector<8x4xbf16>, vector<4x128xbf16>, vector<8x128xf32> -> vector<8x128xf32>
    %329 = arith.addf %325, %328 : vector<8x128xf32>
    %c5_428 = arith.constant 5 : index
    %c0_429 = arith.constant 0 : index
    %c0_430 = arith.constant 0 : index
    %330 = vector.load %arg8[%c5_428, %c0_429, %c0_430] : memref<9x4x128xbf16, #tpu.memory_space<vmem>>, vector<1x4x128xbf16>
    %331 = vector.shape_cast %330 : vector<1x4x128xbf16> to vector<4x128xbf16>
    %cst_431 = arith.constant dense<0.000000e+00> : vector<8x128xf32>
    %332 = tpu.matmul %302, %331, %cst_431 {dimension_numbers = #tpu.dot_dimension_numbers<[1], [0], [0], [1], [0, 0, 1, 1], [], []>} : vector<8x4xbf16>, vector<4x128xbf16>, vector<8x128xf32> -> vector<8x128xf32>
    %333 = arith.addf %329, %332 : vector<8x128xf32>
    %c6_432 = arith.constant 6 : index
    %c0_433 = arith.constant 0 : index
    %c0_434 = arith.constant 0 : index
    %334 = vector.load %arg8[%c6_432, %c0_433, %c0_434] : memref<9x4x128xbf16, #tpu.memory_space<vmem>>, vector<1x4x128xbf16>
    %335 = vector.shape_cast %334 : vector<1x4x128xbf16> to vector<4x128xbf16>
    %cst_435 = arith.constant dense<0.000000e+00> : vector<8x128xf32>
    %336 = tpu.matmul %304, %335, %cst_435 {dimension_numbers = #tpu.dot_dimension_numbers<[1], [0], [0], [1], [0, 0, 1, 1], [], []>} : vector<8x4xbf16>, vector<4x128xbf16>, vector<8x128xf32> -> vector<8x128xf32>
    %337 = arith.addf %333, %336 : vector<8x128xf32>
    %c7_436 = arith.constant 7 : index
    %c0_437 = arith.constant 0 : index
    %c0_438 = arith.constant 0 : index
    %338 = vector.load %arg8[%c7_436, %c0_437, %c0_438] : memref<9x4x128xbf16, #tpu.memory_space<vmem>>, vector<1x4x128xbf16>
    %339 = vector.shape_cast %338 : vector<1x4x128xbf16> to vector<4x128xbf16>
    %cst_439 = arith.constant dense<0.000000e+00> : vector<8x128xf32>
    %340 = tpu.matmul %306, %339, %cst_439 {dimension_numbers = #tpu.dot_dimension_numbers<[1], [0], [0], [1], [0, 0, 1, 1], [], []>} : vector<8x4xbf16>, vector<4x128xbf16>, vector<8x128xf32> -> vector<8x128xf32>
    %341 = arith.addf %337, %340 : vector<8x128xf32>
    %c8_440 = arith.constant 8 : index
    %c0_441 = arith.constant 0 : index
    %c0_442 = arith.constant 0 : index
    %342 = vector.load %arg8[%c8_440, %c0_441, %c0_442] : memref<9x4x128xbf16, #tpu.memory_space<vmem>>, vector<1x4x128xbf16>
    %343 = vector.shape_cast %342 : vector<1x4x128xbf16> to vector<4x128xbf16>
    %cst_443 = arith.constant dense<0.000000e+00> : vector<8x128xf32>
    %344 = tpu.matmul %308, %343, %cst_443 {dimension_numbers = #tpu.dot_dimension_numbers<[1], [0], [0], [1], [0, 0, 1, 1], [], []>} : vector<8x4xbf16>, vector<4x128xbf16>, vector<8x128xf32> -> vector<8x128xf32>
    %345 = arith.addf %341, %344 : vector<8x128xf32>
    %c0_444 = arith.constant 0 : index
    %c5_445 = arith.constant 5 : index
    %c0_446 = arith.constant 0 : index
    %c0_447 = arith.constant 0 : index
    %346 = vector.load %arg10[%c0_444, %c5_445, %c0_446, %c0_447] : memref<1x8x8x128xf32, #tpu.memory_space<vmem>>, vector<1x1x8x128xf32>
    %347 = vector.shape_cast %346 : vector<1x1x8x128xf32> to vector<8x128xf32>
    %348 = vector.shape_cast %345 : vector<8x128xf32> to vector<1x1x8x128xf32>
    tpu.vector_store %arg10[%c0_444, %c5_445, %c0_446, %c0_447], %348 {strides = array<i32>} : memref<1x8x8x128xf32, #tpu.memory_space<vmem>>, vector<1x1x8x128xf32>,
    %c0_448 = arith.constant 0 : index
    %c6_449 = arith.constant 6 : index
    %c0_450 = arith.constant 0 : index
    %c0_451 = arith.constant 0 : index
    %349 = vector.load %arg2[%c0_448, %c6_449, %c0_450, %c0_451] : memref<1x8x9x4xbf16, #tpu.memory_space<vmem>>, vector<1x1x8x4xbf16>
    %350 = vector.shape_cast %349 : vector<1x1x8x4xbf16> to vector<8x4xbf16>
    %c0_452 = arith.constant 0 : index
    %c6_453 = arith.constant 6 : index
    %c0_454 = arith.constant 0 : index
    %c0_455 = arith.constant 0 : index
    %351 = vector.load %arg3[%c0_452, %c6_453, %c0_454, %c0_455] : memref<1x8x8x4xbf16, #tpu.memory_space<vmem>>, vector<1x1x8x4xbf16>
    %352 = vector.shape_cast %351 : vector<1x1x8x4xbf16> to vector<8x4xbf16>
    %c0_456 = arith.constant 0 : index
    %c6_457 = arith.constant 6 : index
    %c1_458 = arith.constant 1 : index
    %c0_459 = arith.constant 0 : index
    %353 = vector.load %arg2[%c0_456, %c6_457, %c1_458, %c0_459] : memref<1x8x9x4xbf16, #tpu.memory_space<vmem>>, vector<1x1x8x4xbf16>
    %354 = vector.shape_cast %353 : vector<1x1x8x4xbf16> to vector<8x4xbf16>
    %c0_460 = arith.constant 0 : index
    %c6_461 = arith.constant 6 : index
    %c0_462 = arith.constant 0 : index
    %c0_463 = arith.constant 0 : index
    %355 = vector.load %arg4[%c0_460, %c6_461, %c0_462, %c0_463] : memref<1x8x9x4xbf16, #tpu.memory_space<vmem>>, vector<1x1x8x4xbf16>
    %356 = vector.shape_cast %355 : vector<1x1x8x4xbf16> to vector<8x4xbf16>
    %c0_464 = arith.constant 0 : index
    %c6_465 = arith.constant 6 : index
    %c0_466 = arith.constant 0 : index
    %c0_467 = arith.constant 0 : index
    %357 = vector.load %arg5[%c0_464, %c6_465, %c0_466, %c0_467] : memref<1x8x8x4xbf16, #tpu.memory_space<vmem>>, vector<1x1x8x4xbf16>
    %358 = vector.shape_cast %357 : vector<1x1x8x4xbf16> to vector<8x4xbf16>
    %c0_468 = arith.constant 0 : index
    %c6_469 = arith.constant 6 : index
    %c1_470 = arith.constant 1 : index
    %c0_471 = arith.constant 0 : index
    %359 = vector.load %arg4[%c0_468, %c6_469, %c1_470, %c0_471] : memref<1x8x9x4xbf16, #tpu.memory_space<vmem>>, vector<1x1x8x4xbf16>
    %360 = vector.shape_cast %359 : vector<1x1x8x4xbf16> to vector<8x4xbf16>
    %c0_472 = arith.constant 0 : index
    %c7_473 = arith.constant 7 : index
    %c0_474 = arith.constant 0 : index
    %c0_475 = arith.constant 0 : index
    %361 = vector.load %arg2[%c0_472, %c7_473, %c0_474, %c0_475] : memref<1x8x9x4xbf16, #tpu.memory_space<vmem>>, vector<1x1x8x4xbf16>
    %362 = vector.shape_cast %361 : vector<1x1x8x4xbf16> to vector<8x4xbf16>
    %c0_476 = arith.constant 0 : index
    %c7_477 = arith.constant 7 : index
    %c0_478 = arith.constant 0 : index
    %c0_479 = arith.constant 0 : index
    %363 = vector.load %arg3[%c0_476, %c7_477, %c0_478, %c0_479] : memref<1x8x8x4xbf16, #tpu.memory_space<vmem>>, vector<1x1x8x4xbf16>
    %364 = vector.shape_cast %363 : vector<1x1x8x4xbf16> to vector<8x4xbf16>
    %c0_480 = arith.constant 0 : index
    %c7_481 = arith.constant 7 : index
    %c1_482 = arith.constant 1 : index
    %c0_483 = arith.constant 0 : index
    %365 = vector.load %arg2[%c0_480, %c7_481, %c1_482, %c0_483] : memref<1x8x9x4xbf16, #tpu.memory_space<vmem>>, vector<1x1x8x4xbf16>
    %366 = vector.shape_cast %365 : vector<1x1x8x4xbf16> to vector<8x4xbf16>
    %c0_484 = arith.constant 0 : index
    %c0_485 = arith.constant 0 : index
    %c0_486 = arith.constant 0 : index
    %367 = vector.load %arg8[%c0_484, %c0_485, %c0_486] : memref<9x4x128xbf16, #tpu.memory_space<vmem>>, vector<1x4x128xbf16>
    %368 = vector.shape_cast %367 : vector<1x4x128xbf16> to vector<4x128xbf16>
    %cst_487 = arith.constant dense<0.000000e+00> : vector<8x128xf32>
    %369 = tpu.matmul %350, %368, %cst_487 {dimension_numbers = #tpu.dot_dimension_numbers<[1], [0], [0], [1], [0, 0, 1, 1], [], []>} : vector<8x4xbf16>, vector<4x128xbf16>, vector<8x128xf32> -> vector<8x128xf32>
    %370 = vector.broadcast %0 : vector<1x128xf32> to vector<8x128xf32>
    %371 = arith.addf %370, %369 : vector<8x128xf32>
    %c1_488 = arith.constant 1 : index
    %c0_489 = arith.constant 0 : index
    %c0_490 = arith.constant 0 : index
    %372 = vector.load %arg8[%c1_488, %c0_489, %c0_490] : memref<9x4x128xbf16, #tpu.memory_space<vmem>>, vector<1x4x128xbf16>
    %373 = vector.shape_cast %372 : vector<1x4x128xbf16> to vector<4x128xbf16>
    %cst_491 = arith.constant dense<0.000000e+00> : vector<8x128xf32>
    %374 = tpu.matmul %352, %373, %cst_491 {dimension_numbers = #tpu.dot_dimension_numbers<[1], [0], [0], [1], [0, 0, 1, 1], [], []>} : vector<8x4xbf16>, vector<4x128xbf16>, vector<8x128xf32> -> vector<8x128xf32>
    %375 = arith.addf %371, %374 : vector<8x128xf32>
    %c2_492 = arith.constant 2 : index
    %c0_493 = arith.constant 0 : index
    %c0_494 = arith.constant 0 : index
    %376 = vector.load %arg8[%c2_492, %c0_493, %c0_494] : memref<9x4x128xbf16, #tpu.memory_space<vmem>>, vector<1x4x128xbf16>
    %377 = vector.shape_cast %376 : vector<1x4x128xbf16> to vector<4x128xbf16>
    %cst_495 = arith.constant dense<0.000000e+00> : vector<8x128xf32>
    %378 = tpu.matmul %354, %377, %cst_495 {dimension_numbers = #tpu.dot_dimension_numbers<[1], [0], [0], [1], [0, 0, 1, 1], [], []>} : vector<8x4xbf16>, vector<4x128xbf16>, vector<8x128xf32> -> vector<8x128xf32>
    %379 = arith.addf %375, %378 : vector<8x128xf32>
    %c3_496 = arith.constant 3 : index
    %c0_497 = arith.constant 0 : index
    %c0_498 = arith.constant 0 : index
    %380 = vector.load %arg8[%c3_496, %c0_497, %c0_498] : memref<9x4x128xbf16, #tpu.memory_space<vmem>>, vector<1x4x128xbf16>
    %381 = vector.shape_cast %380 : vector<1x4x128xbf16> to vector<4x128xbf16>
    %cst_499 = arith.constant dense<0.000000e+00> : vector<8x128xf32>
    %382 = tpu.matmul %356, %381, %cst_499 {dimension_numbers = #tpu.dot_dimension_numbers<[1], [0], [0], [1], [0, 0, 1, 1], [], []>} : vector<8x4xbf16>, vector<4x128xbf16>, vector<8x128xf32> -> vector<8x128xf32>
    %383 = arith.addf %379, %382 : vector<8x128xf32>
    %c4_500 = arith.constant 4 : index
    %c0_501 = arith.constant 0 : index
    %c0_502 = arith.constant 0 : index
    %384 = vector.load %arg8[%c4_500, %c0_501, %c0_502] : memref<9x4x128xbf16, #tpu.memory_space<vmem>>, vector<1x4x128xbf16>
    %385 = vector.shape_cast %384 : vector<1x4x128xbf16> to vector<4x128xbf16>
    %cst_503 = arith.constant dense<0.000000e+00> : vector<8x128xf32>
    %386 = tpu.matmul %358, %385, %cst_503 {dimension_numbers = #tpu.dot_dimension_numbers<[1], [0], [0], [1], [0, 0, 1, 1], [], []>} : vector<8x4xbf16>, vector<4x128xbf16>, vector<8x128xf32> -> vector<8x128xf32>
    %387 = arith.addf %383, %386 : vector<8x128xf32>
    %c5_504 = arith.constant 5 : index
    %c0_505 = arith.constant 0 : index
    %c0_506 = arith.constant 0 : index
    %388 = vector.load %arg8[%c5_504, %c0_505, %c0_506] : memref<9x4x128xbf16, #tpu.memory_space<vmem>>, vector<1x4x128xbf16>
    %389 = vector.shape_cast %388 : vector<1x4x128xbf16> to vector<4x128xbf16>
    %cst_507 = arith.constant dense<0.000000e+00> : vector<8x128xf32>
    %390 = tpu.matmul %360, %389, %cst_507 {dimension_numbers = #tpu.dot_dimension_numbers<[1], [0], [0], [1], [0, 0, 1, 1], [], []>} : vector<8x4xbf16>, vector<4x128xbf16>, vector<8x128xf32> -> vector<8x128xf32>
    %391 = arith.addf %387, %390 : vector<8x128xf32>
    %c6_508 = arith.constant 6 : index
    %c0_509 = arith.constant 0 : index
    %c0_510 = arith.constant 0 : index
    %392 = vector.load %arg8[%c6_508, %c0_509, %c0_510] : memref<9x4x128xbf16, #tpu.memory_space<vmem>>, vector<1x4x128xbf16>
    %393 = vector.shape_cast %392 : vector<1x4x128xbf16> to vector<4x128xbf16>
    %cst_511 = arith.constant dense<0.000000e+00> : vector<8x128xf32>
    %394 = tpu.matmul %362, %393, %cst_511 {dimension_numbers = #tpu.dot_dimension_numbers<[1], [0], [0], [1], [0, 0, 1, 1], [], []>} : vector<8x4xbf16>, vector<4x128xbf16>, vector<8x128xf32> -> vector<8x128xf32>
    %395 = arith.addf %391, %394 : vector<8x128xf32>
    %c7_512 = arith.constant 7 : index
    %c0_513 = arith.constant 0 : index
    %c0_514 = arith.constant 0 : index
    %396 = vector.load %arg8[%c7_512, %c0_513, %c0_514] : memref<9x4x128xbf16, #tpu.memory_space<vmem>>, vector<1x4x128xbf16>
    %397 = vector.shape_cast %396 : vector<1x4x128xbf16> to vector<4x128xbf16>
    %cst_515 = arith.constant dense<0.000000e+00> : vector<8x128xf32>
    %398 = tpu.matmul %364, %397, %cst_515 {dimension_numbers = #tpu.dot_dimension_numbers<[1], [0], [0], [1], [0, 0, 1, 1], [], []>} : vector<8x4xbf16>, vector<4x128xbf16>, vector<8x128xf32> -> vector<8x128xf32>
    %399 = arith.addf %395, %398 : vector<8x128xf32>
    %c8_516 = arith.constant 8 : index
    %c0_517 = arith.constant 0 : index
    %c0_518 = arith.constant 0 : index
    %400 = vector.load %arg8[%c8_516, %c0_517, %c0_518] : memref<9x4x128xbf16, #tpu.memory_space<vmem>>, vector<1x4x128xbf16>
    %401 = vector.shape_cast %400 : vector<1x4x128xbf16> to vector<4x128xbf16>
    %cst_519 = arith.constant dense<0.000000e+00> : vector<8x128xf32>
    %402 = tpu.matmul %366, %401, %cst_519 {dimension_numbers = #tpu.dot_dimension_numbers<[1], [0], [0], [1], [0, 0, 1, 1], [], []>} : vector<8x4xbf16>, vector<4x128xbf16>, vector<8x128xf32> -> vector<8x128xf32>
    %403 = arith.addf %399, %402 : vector<8x128xf32>
    %c0_520 = arith.constant 0 : index
    %c6_521 = arith.constant 6 : index
    %c0_522 = arith.constant 0 : index
    %c0_523 = arith.constant 0 : index
    %404 = vector.load %arg10[%c0_520, %c6_521, %c0_522, %c0_523] : memref<1x8x8x128xf32, #tpu.memory_space<vmem>>, vector<1x1x8x128xf32>
    %405 = vector.shape_cast %404 : vector<1x1x8x128xf32> to vector<8x128xf32>
    %406 = vector.shape_cast %403 : vector<8x128xf32> to vector<1x1x8x128xf32>
    tpu.vector_store %arg10[%c0_520, %c6_521, %c0_522, %c0_523], %406 {strides = array<i32>} : memref<1x8x8x128xf32, #tpu.memory_space<vmem>>, vector<1x1x8x128xf32>,
    %c0_524 = arith.constant 0 : index
    %c7_525 = arith.constant 7 : index
    %c0_526 = arith.constant 0 : index
    %c0_527 = arith.constant 0 : index
    %407 = vector.load %arg2[%c0_524, %c7_525, %c0_526, %c0_527] : memref<1x8x9x4xbf16, #tpu.memory_space<vmem>>, vector<1x1x8x4xbf16>
    %408 = vector.shape_cast %407 : vector<1x1x8x4xbf16> to vector<8x4xbf16>
    %c0_528 = arith.constant 0 : index
    %c7_529 = arith.constant 7 : index
    %c0_530 = arith.constant 0 : index
    %c0_531 = arith.constant 0 : index
    %409 = vector.load %arg3[%c0_528, %c7_529, %c0_530, %c0_531] : memref<1x8x8x4xbf16, #tpu.memory_space<vmem>>, vector<1x1x8x4xbf16>
    %410 = vector.shape_cast %409 : vector<1x1x8x4xbf16> to vector<8x4xbf16>
    %c0_532 = arith.constant 0 : index
    %c7_533 = arith.constant 7 : index
    %c1_534 = arith.constant 1 : index
    %c0_535 = arith.constant 0 : index
    %411 = vector.load %arg2[%c0_532, %c7_533, %c1_534, %c0_535] : memref<1x8x9x4xbf16, #tpu.memory_space<vmem>>, vector<1x1x8x4xbf16>
    %412 = vector.shape_cast %411 : vector<1x1x8x4xbf16> to vector<8x4xbf16>
    %c0_536 = arith.constant 0 : index
    %c7_537 = arith.constant 7 : index
    %c0_538 = arith.constant 0 : index
    %c0_539 = arith.constant 0 : index
    %413 = vector.load %arg4[%c0_536, %c7_537, %c0_538, %c0_539] : memref<1x8x9x4xbf16, #tpu.memory_space<vmem>>, vector<1x1x8x4xbf16>
    %414 = vector.shape_cast %413 : vector<1x1x8x4xbf16> to vector<8x4xbf16>
    %c0_540 = arith.constant 0 : index
    %c7_541 = arith.constant 7 : index
    %c0_542 = arith.constant 0 : index
    %c0_543 = arith.constant 0 : index
    %415 = vector.load %arg5[%c0_540, %c7_541, %c0_542, %c0_543] : memref<1x8x8x4xbf16, #tpu.memory_space<vmem>>, vector<1x1x8x4xbf16>
    %416 = vector.shape_cast %415 : vector<1x1x8x4xbf16> to vector<8x4xbf16>
    %c0_544 = arith.constant 0 : index
    %c7_545 = arith.constant 7 : index
    %c1_546 = arith.constant 1 : index
    %c0_547 = arith.constant 0 : index
    %417 = vector.load %arg4[%c0_544, %c7_545, %c1_546, %c0_547] : memref<1x8x9x4xbf16, #tpu.memory_space<vmem>>, vector<1x1x8x4xbf16>
    %418 = vector.shape_cast %417 : vector<1x1x8x4xbf16> to vector<8x4xbf16>
    %c0_548 = arith.constant 0 : index
    %c0_549 = arith.constant 0 : index
    %c0_550 = arith.constant 0 : index
    %c0_551 = arith.constant 0 : index
    %419 = vector.load %arg6[%c0_548, %c0_549, %c0_550, %c0_551] : memref<1x8x9x4xbf16, #tpu.memory_space<vmem>>, vector<1x1x8x4xbf16>
    %420 = vector.shape_cast %419 : vector<1x1x8x4xbf16> to vector<8x4xbf16>
    %c0_552 = arith.constant 0 : index
    %c0_553 = arith.constant 0 : index
    %c0_554 = arith.constant 0 : index
    %c0_555 = arith.constant 0 : index
    %421 = vector.load %arg7[%c0_552, %c0_553, %c0_554, %c0_555] : memref<1x8x8x4xbf16, #tpu.memory_space<vmem>>, vector<1x1x8x4xbf16>
    %422 = vector.shape_cast %421 : vector<1x1x8x4xbf16> to vector<8x4xbf16>
    %c0_556 = arith.constant 0 : index
    %c0_557 = arith.constant 0 : index
    %c1_558 = arith.constant 1 : index
    %c0_559 = arith.constant 0 : index
    %423 = vector.load %arg6[%c0_556, %c0_557, %c1_558, %c0_559] : memref<1x8x9x4xbf16, #tpu.memory_space<vmem>>, vector<1x1x8x4xbf16>
    %424 = vector.shape_cast %423 : vector<1x1x8x4xbf16> to vector<8x4xbf16>
    %c0_560 = arith.constant 0 : index
    %c0_561 = arith.constant 0 : index
    %c0_562 = arith.constant 0 : index
    %425 = vector.load %arg8[%c0_560, %c0_561, %c0_562] : memref<9x4x128xbf16, #tpu.memory_space<vmem>>, vector<1x4x128xbf16>
    %426 = vector.shape_cast %425 : vector<1x4x128xbf16> to vector<4x128xbf16>
    %cst_563 = arith.constant dense<0.000000e+00> : vector<8x128xf32>
    %427 = tpu.matmul %408, %426, %cst_563 {dimension_numbers = #tpu.dot_dimension_numbers<[1], [0], [0], [1], [0, 0, 1, 1], [], []>} : vector<8x4xbf16>, vector<4x128xbf16>, vector<8x128xf32> -> vector<8x128xf32>
    %428 = vector.broadcast %0 : vector<1x128xf32> to vector<8x128xf32>
    %429 = arith.addf %428, %427 : vector<8x128xf32>
    %c1_564 = arith.constant 1 : index
    %c0_565 = arith.constant 0 : index
    %c0_566 = arith.constant 0 : index
    %430 = vector.load %arg8[%c1_564, %c0_565, %c0_566] : memref<9x4x128xbf16, #tpu.memory_space<vmem>>, vector<1x4x128xbf16>
    %431 = vector.shape_cast %430 : vector<1x4x128xbf16> to vector<4x128xbf16>
    %cst_567 = arith.constant dense<0.000000e+00> : vector<8x128xf32>
    %432 = tpu.matmul %410, %431, %cst_567 {dimension_numbers = #tpu.dot_dimension_numbers<[1], [0], [0], [1], [0, 0, 1, 1], [], []>} : vector<8x4xbf16>, vector<4x128xbf16>, vector<8x128xf32> -> vector<8x128xf32>
    %433 = arith.addf %429, %432 : vector<8x128xf32>
    %c2_568 = arith.constant 2 : index
    %c0_569 = arith.constant 0 : index
    %c0_570 = arith.constant 0 : index
    %434 = vector.load %arg8[%c2_568, %c0_569, %c0_570] : memref<9x4x128xbf16, #tpu.memory_space<vmem>>, vector<1x4x128xbf16>
    %435 = vector.shape_cast %434 : vector<1x4x128xbf16> to vector<4x128xbf16>
    %cst_571 = arith.constant dense<0.000000e+00> : vector<8x128xf32>
    %436 = tpu.matmul %412, %435, %cst_571 {dimension_numbers = #tpu.dot_dimension_numbers<[1], [0], [0], [1], [0, 0, 1, 1], [], []>} : vector<8x4xbf16>, vector<4x128xbf16>, vector<8x128xf32> -> vector<8x128xf32>
    %437 = arith.addf %433, %436 : vector<8x128xf32>
    %c3_572 = arith.constant 3 : index
    %c0_573 = arith.constant 0 : index
    %c0_574 = arith.constant 0 : index
    %438 = vector.load %arg8[%c3_572, %c0_573, %c0_574] : memref<9x4x128xbf16, #tpu.memory_space<vmem>>, vector<1x4x128xbf16>
    %439 = vector.shape_cast %438 : vector<1x4x128xbf16> to vector<4x128xbf16>
    %cst_575 = arith.constant dense<0.000000e+00> : vector<8x128xf32>
    %440 = tpu.matmul %414, %439, %cst_575 {dimension_numbers = #tpu.dot_dimension_numbers<[1], [0], [0], [1], [0, 0, 1, 1], [], []>} : vector<8x4xbf16>, vector<4x128xbf16>, vector<8x128xf32> -> vector<8x128xf32>
    %441 = arith.addf %437, %440 : vector<8x128xf32>
    %c4_576 = arith.constant 4 : index
    %c0_577 = arith.constant 0 : index
    %c0_578 = arith.constant 0 : index
    %442 = vector.load %arg8[%c4_576, %c0_577, %c0_578] : memref<9x4x128xbf16, #tpu.memory_space<vmem>>, vector<1x4x128xbf16>
    %443 = vector.shape_cast %442 : vector<1x4x128xbf16> to vector<4x128xbf16>
    %cst_579 = arith.constant dense<0.000000e+00> : vector<8x128xf32>
    %444 = tpu.matmul %416, %443, %cst_579 {dimension_numbers = #tpu.dot_dimension_numbers<[1], [0], [0], [1], [0, 0, 1, 1], [], []>} : vector<8x4xbf16>, vector<4x128xbf16>, vector<8x128xf32> -> vector<8x128xf32>
    %445 = arith.addf %441, %444 : vector<8x128xf32>
    %c5_580 = arith.constant 5 : index
    %c0_581 = arith.constant 0 : index
    %c0_582 = arith.constant 0 : index
    %446 = vector.load %arg8[%c5_580, %c0_581, %c0_582] : memref<9x4x128xbf16, #tpu.memory_space<vmem>>, vector<1x4x128xbf16>
    %447 = vector.shape_cast %446 : vector<1x4x128xbf16> to vector<4x128xbf16>
    %cst_583 = arith.constant dense<0.000000e+00> : vector<8x128xf32>
    %448 = tpu.matmul %418, %447, %cst_583 {dimension_numbers = #tpu.dot_dimension_numbers<[1], [0], [0], [1], [0, 0, 1, 1], [], []>} : vector<8x4xbf16>, vector<4x128xbf16>, vector<8x128xf32> -> vector<8x128xf32>
    %449 = arith.addf %445, %448 : vector<8x128xf32>
    %c6_584 = arith.constant 6 : index
    %c0_585 = arith.constant 0 : index
    %c0_586 = arith.constant 0 : index
    %450 = vector.load %arg8[%c6_584, %c0_585, %c0_586] : memref<9x4x128xbf16, #tpu.memory_space<vmem>>, vector<1x4x128xbf16>
    %451 = vector.shape_cast %450 : vector<1x4x128xbf16> to vector<4x128xbf16>
    %cst_587 = arith.constant dense<0.000000e+00> : vector<8x128xf32>
    %452 = tpu.matmul %420, %451, %cst_587 {dimension_numbers = #tpu.dot_dimension_numbers<[1], [0], [0], [1], [0, 0, 1, 1], [], []>} : vector<8x4xbf16>, vector<4x128xbf16>, vector<8x128xf32> -> vector<8x128xf32>
    %453 = arith.addf %449, %452 : vector<8x128xf32>
    %c7_588 = arith.constant 7 : index
    %c0_589 = arith.constant 0 : index
    %c0_590 = arith.constant 0 : index
    %454 = vector.load %arg8[%c7_588, %c0_589, %c0_590] : memref<9x4x128xbf16, #tpu.memory_space<vmem>>, vector<1x4x128xbf16>
    %455 = vector.shape_cast %454 : vector<1x4x128xbf16> to vector<4x128xbf16>
    %cst_591 = arith.constant dense<0.000000e+00> : vector<8x128xf32>
    %456 = tpu.matmul %422, %455, %cst_591 {dimension_numbers = #tpu.dot_dimension_numbers<[1], [0], [0], [1], [0, 0, 1, 1], [], []>} : vector<8x4xbf16>, vector<4x128xbf16>, vector<8x128xf32> -> vector<8x128xf32>
    %457 = arith.addf %453, %456 : vector<8x128xf32>
    %c8_592 = arith.constant 8 : index
    %c0_593 = arith.constant 0 : index
    %c0_594 = arith.constant 0 : index
    %458 = vector.load %arg8[%c8_592, %c0_593, %c0_594] : memref<9x4x128xbf16, #tpu.memory_space<vmem>>, vector<1x4x128xbf16>
    %459 = vector.shape_cast %458 : vector<1x4x128xbf16> to vector<4x128xbf16>
    %cst_595 = arith.constant dense<0.000000e+00> : vector<8x128xf32>
    %460 = tpu.matmul %424, %459, %cst_595 {dimension_numbers = #tpu.dot_dimension_numbers<[1], [0], [0], [1], [0, 0, 1, 1], [], []>} : vector<8x4xbf16>, vector<4x128xbf16>, vector<8x128xf32> -> vector<8x128xf32>
    %461 = arith.addf %457, %460 : vector<8x128xf32>
    %c0_596 = arith.constant 0 : index
    %c7_597 = arith.constant 7 : index
    %c0_598 = arith.constant 0 : index
    %c0_599 = arith.constant 0 : index
    %462 = vector.load %arg10[%c0_596, %c7_597, %c0_598, %c0_599] : memref<1x8x8x128xf32, #tpu.memory_space<vmem>>, vector<1x1x8x128xf32>
    %463 = vector.shape_cast %462 : vector<1x1x8x128xf32> to vector<8x128xf32>
    %464 = vector.shape_cast %461 : vector<8x128xf32> to vector<1x1x8x128xf32>
    tpu.vector_store %arg10[%c0_596, %c7_597, %c0_598, %c0_599], %464 {strides = array<i32>} : memref<1x8x8x128xf32, #tpu.memory_space<vmem>>, vector<1x1x8x128xf32>,
    return
  }
  func.func @transform_0(%arg0: i32, %arg1: i32) -> (i32, i32, i32, i32) {
    %c0_i32 = arith.constant 0 : i32
    %c0_i32_0 = arith.constant 0 : i32
    %c0_i32_1 = arith.constant 0 : i32
    return %arg0, %arg1, %c0_i32, %c0_i32_0 : i32, i32, i32, i32
  }
  func.func @transform_1(%arg0: i32, %arg1: i32) -> (i32, i32, i32, i32) {
    %c0_i32 = arith.constant 0 : i32
    %c0_i32_0 = arith.constant 0 : i32
    %c0_i32_1 = arith.constant 0 : i32
    return %arg0, %arg1, %c0_i32, %c0_i32_0 : i32, i32, i32, i32
  }
  func.func @transform_2(%arg0: i32, %arg1: i32) -> (i32, i32, i32, i32) {
    %c0_i32 = arith.constant 0 : i32
    %c0_i32_0 = arith.constant 0 : i32
    %c0_i32_1 = arith.constant 0 : i32
    return %arg0, %arg1, %c0_i32, %c0_i32_0 : i32, i32, i32, i32
  }
  func.func @transform_3(%arg0: i32, %arg1: i32) -> (i32, i32, i32, i32) {
    %c0_i32 = arith.constant 0 : i32
    %c0_i32_0 = arith.constant 0 : i32
    %c0_i32_1 = arith.constant 0 : i32
    return %arg0, %arg1, %c0_i32, %c0_i32_0 : i32, i32, i32, i32
  }
  func.func @transform_4(%arg0: i32, %arg1: i32) -> (i32, i32, i32, i32) {
    %c1_i32 = arith.constant 1 : i32
    %0 = arith.addi %arg1, %c1_i32 : i32
    %c0_i32 = arith.constant 0 : i32
    %c0_i32_0 = arith.constant 0 : i32
    %c0_i32_1 = arith.constant 0 : i32
    return %arg0, %0, %c0_i32, %c0_i32_0 : i32, i32, i32, i32
  }
  func.func @transform_5(%arg0: i32, %arg1: i32) -> (i32, i32, i32, i32) {
    %c1_i32 = arith.constant 1 : i32
    %0 = arith.addi %arg1, %c1_i32 : i32
    %c0_i32 = arith.constant 0 : i32
    %c0_i32_0 = arith.constant 0 : i32
    %c0_i32_1 = arith.constant 0 : i32
    return %arg0, %0, %c0_i32, %c0_i32_0 : i32, i32, i32, i32
  }
  func.func @transform_6(%arg0: i32, %arg1: i32) -> (i32, i32, i32) {
    %c0_i32 = arith.constant 0 : i32
    %c0_i32_0 = arith.constant 0 : i32
    %c0_i32_1 = arith.constant 0 : i32
    %c0_i32_2 = arith.constant 0 : i32
    return %c0_i32, %c0_i32_0, %c0_i32_1 : i32, i32, i32
  }
  func.func @transform_7(%arg0: i32, %arg1: i32) -> (i32, i32) {
    %c0_i32 = arith.constant 0 : i32
    %c0_i32_0 = arith.constant 0 : i32
    %c0_i32_1 = arith.constant 0 : i32
    return %c0_i32, %c0_i32_0 : i32, i32
  }
  func.func @transform_8(%arg0: i32, %arg1: i32) -> (i32, i32, i32, i32) {
    %c0_i32 = arith.constant 0 : i32
    %c0_i32_0 = arith.constant 0 : i32
    %c0_i32_1 = arith.constant 0 : i32
    return %arg0, %arg1, %c0_i32, %c0_i32_0 : i32, i32, i32, i32
  }
}

</mosaic_0001>

<llo_original>
// kernel: tpu_custom_call.1
$region0: #{tpu_custom_call.1}
  #allocation0 [shape = 'u32[]', space=smem, size = 0x4, offset = 0x4, fixed_abs, tag = 'smem constant byte address 0x4 - core index']
  #allocation1 [shape = 'u32[144,128]{1,0:T(1,128)}', space=vmem, size = 0x12000, scoped, tag = 'internal scratch']
  %s0 = inlined_call_operand.vmem [shape: bf16[2,16,9,4], index: 0, kind: input, shape index: {}]
  %s1 = inlined_call_operand.vmem [shape: bf16[2,16,8,4], index: 1, kind: input, shape index: {}]
  %s2 = inlined_call_operand.vmem [shape: bf16[2,8,9,4], index: 2, kind: input, shape index: {}]
  %s3 = inlined_call_operand.vmem [shape: bf16[2,8,8,4], index: 3, kind: input, shape index: {}]
  %s4 = inlined_call_operand.vmem [shape: bf16[2,16,9,4], index: 4, kind: input, shape index: {}]
  %s5 = inlined_call_operand.vmem [shape: bf16[2,16,8,4], index: 5, kind: input, shape index: {}]
  %s6 = inlined_call_operand.vmem [shape: bf16[9,4,128], index: 6, kind: input, shape index: {}]
  %s7 = inlined_call_operand.vmem [shape: f32[1,128], index: 7, kind: input, shape index: {}]
  %s8 = inlined_call_operand.hbm [shape: f32[2,8,8,128], index: 8, kind: output, shape index: {}]
  %s9 = sld [smem:[#allocation0]]
  $region65: #{tpu_custom_call.1} parent=0
    _
  %s11 = ssub.s32 1, %s9
  %s12 = scalar_select 0, %s11, %s9
  $region1: #{tpu_custom_call.1} parent=0
    #allocation2 [shape = 'u8[65536]{0}', space=vmem, size = 0x10000, scoped, tag = 'output window, operand 0']
    #allocation3 [shape = 's32[2]{0}', space=sflag, size = 0x8, scoped, tag = 'scoped memory for tpu_custom_call.1']
    %13 = vsyncpa [#allocation3], 0
    %s14 = scalar_lea.sflag [#allocation3], 1
    %15 = vsyncpa %s14, 0
    loop: start=0, step=1, limit=4
    $region2: #{tpu_custom_call.1} parent=1 // loop_pre_header
      _
    $region3: #{tpu_custom_call.1} parent=1 // loop_header
      %s17 = sphi 0, %s21
      %p18 = scmp.ge.s32.totalorder %s17, 4
      %s24 = sphi 0, %s36
      %s25 = sphi 0, %s32
      %s26 = sphi 0, %s24
      %s27 = sphi 0, %s25
      %s28 = sphi 0, %s26
      %s29 = sphi 0, %s27
      %s41 = sphi 0, %s43
      %s44 = sphi 0, %s41
      %s45 = sphi 0, %s44
      %s61 = sphi 0, %s45
      %s69 = sphi 0, %s71
      %s72 = sphi 0, %s69
      %s73 = sphi 0, %s72
      %s89 = sphi 0, %s73
      %s97 = sphi 0, %s99
      %s100 = sphi 0, %s97
      %s101 = sphi 0, %s100
      %s117 = sphi 0, %s101
      %s125 = sphi 0, %s127
      %s128 = sphi 0, %s125
      %s129 = sphi 0, %s128
      %s145 = sphi 0, %s129
      %s155 = sphi 0, %s157
      %s158 = sphi 0, %s155
      %s159 = sphi 0, %s158
      %s175 = sphi 0, %s159
      %s185 = sphi 0, %s187
      %s188 = sphi 0, %s185
      %s189 = sphi 0, %s188
      %s205 = sphi 0, %s189
      %s209 = sphi 0, %s209
      %s211 = sphi 0, %s209
      %s212 = sphi 0, %s211
      %s226 = sphi 0, %s212
      %s230 = sphi 0, %s230
      %s232 = sphi 0, %s230
      %s233 = sphi 0, %s232
      %s247 = sphi 0, %s233
      %s255 = sphi 0, %s257
      %s258 = sphi 0, %s255
      %s259 = sphi 0, %s258
      %s275 = sphi 0, %s259
    $region4: #{tpu_custom_call.1} parent=1 // loop_header_branch
      %20 = sbr.rel (%p18) target = $region8
    $region5: #{tpu_custom_call.1} parent=1 // loop_body
      %s22 = ssub.s32 %s17, 1
      %s23 = ssub.s32 %s17, 2
      %s30 = sadd.s32 1, %s25
      %p31 = scmp.ge.s32.totalorder %s30, 1
      %s32 = scalar_select %p31, 0, %s30
      %s33 = sadd.s32 1, %s24
      %s34 = scalar_select %p31, %s33, %s24
      %p35 = scmp.ge.s32.totalorder %s34, 2
      %s36 = scalar_select %p35, 0, %s34
      %s37 = ssub.s32 %s24, %s36
      %s38 = ssub.s32 %s25, %s32
      %s39 = sor.u32 %s37, %s38
      %p40 = scmp.eq.s32.totalorder %s39, 0
      %s42 = sadd.s32 %s41, 1
      %s43 = scalar_select %p40, %s41, %s42
      %p46 = pneg %p40
      %p47 = scmp.eq.s32.totalorder %s17, 1
      %p48 = por %p46, %p47
      %p49 = scmp.ne.s32.totalorder %s41, %s44
      %p50 = scmp.eq.s32.totalorder %s17, 0
      %p51 = por %p49, %p50
      %p52 = scmp.ne.s32.totalorder %s41, %s44
      %p53 = scmp.eq.s32.totalorder %s22, 1
      %p54 = por %p52, %p53
      %p55 = scmp.ne.s32.totalorder %s44, %s45
      %p56 = scmp.eq.s32.totalorder %s22, 0
      %p57 = por %p55, %p56
      %p58 = scmp.ne.s32.totalorder %s44, %s45
      %p59 = scmp.eq.s32.totalorder %s23, 1
      %p60 = por %p58, %p59
      %p62 = scmp.ne.s32.totalorder %s45, %s61
      %p63 = scmp.eq.s32.totalorder %s23, 0
      %p64 = por %p62, %p63
      %s65 = ssub.s32 %s24, %s36
      %s66 = ssub.s32 %s25, %s32
      %s67 = sor.u32 %s65, %s66
      %p68 = scmp.eq.s32.totalorder %s67, 0
      %s70 = sadd.s32 %s69, 1
      %s71 = scalar_select %p68, %s69, %s70
      %p74 = pneg %p68
      %p75 = scmp.eq.s32.totalorder %s17, 1
      %p76 = por %p74, %p75
      %p77 = scmp.ne.s32.totalorder %s69, %s72
      %p78 = scmp.eq.s32.totalorder %s17, 0
      %p79 = por %p77, %p78
      %p80 = scmp.ne.s32.totalorder %s69, %s72
      %p81 = scmp.eq.s32.totalorder %s22, 1
      %p82 = por %p80, %p81
      %p83 = scmp.ne.s32.totalorder %s72, %s73
      %p84 = scmp.eq.s32.totalorder %s22, 0
      %p85 = por %p83, %p84
      %p86 = scmp.ne.s32.totalorder %s72, %s73
      %p87 = scmp.eq.s32.totalorder %s23, 1
      %p88 = por %p86, %p87
      %p90 = scmp.ne.s32.totalorder %s73, %s89
      %p91 = scmp.eq.s32.totalorder %s23, 0
      %p92 = por %p90, %p91
      %s93 = ssub.s32 %s24, %s36
      %s94 = ssub.s32 %s25, %s32
      %s95 = sor.u32 %s93, %s94
      %p96 = scmp.eq.s32.totalorder %s95, 0
      %s98 = sadd.s32 %s97, 1
      %s99 = scalar_select %p96, %s97, %s98
      %p102 = pneg %p96
      %p103 = scmp.eq.s32.totalorder %s17, 1
      %p104 = por %p102, %p103
      %p105 = scmp.ne.s32.totalorder %s97, %s100
      %p106 = scmp.eq.s32.totalorder %s17, 0
      %p107 = por %p105, %p106
      %p108 = scmp.ne.s32.totalorder %s97, %s100
      %p109 = scmp.eq.s32.totalorder %s22, 1
      %p110 = por %p108, %p109
      %p111 = scmp.ne.s32.totalorder %s100, %s101
      %p112 = scmp.eq.s32.totalorder %s22, 0
      %p113 = por %p111, %p112
      %p114 = scmp.ne.s32.totalorder %s100, %s101
      %p115 = scmp.eq.s32.totalorder %s23, 1
      %p116 = por %p114, %p115
      %p118 = scmp.ne.s32.totalorder %s101, %s117
      %p119 = scmp.eq.s32.totalorder %s23, 0
      %p120 = por %p118, %p119
      %s121 = ssub.s32 %s24, %s36
      %s122 = ssub.s32 %s25, %s32
      %s123 = sor.u32 %s121, %s122
      %p124 = scmp.eq.s32.totalorder %s123, 0
      %s126 = sadd.s32 %s125, 1
      %s127 = scalar_select %p124, %s125, %s126
      %p130 = pneg %p124
      %p131 = scmp.eq.s32.totalorder %s17, 1
      %p132 = por %p130, %p131
      %p133 = scmp.ne.s32.totalorder %s125, %s128
      %p134 = scmp.eq.s32.totalorder %s17, 0
      %p135 = por %p133, %p134
      %p136 = scmp.ne.s32.totalorder %s125, %s128
      %p137 = scmp.eq.s32.totalorder %s22, 1
      %p138 = por %p136, %p137
      %p139 = scmp.ne.s32.totalorder %s128, %s129
      %p140 = scmp.eq.s32.totalorder %s22, 0
      %p141 = por %p139, %p140
      %p142 = scmp.ne.s32.totalorder %s128, %s129
      %p143 = scmp.eq.s32.totalorder %s23, 1
      %p144 = por %p142, %p143
      %p146 = scmp.ne.s32.totalorder %s129, %s145
      %p147 = scmp.eq.s32.totalorder %s23, 0
      %p148 = por %p146, %p147
      %s149 = sadd.s32 %s25, 1
      %s150 = sadd.s32 %s32, 1
      %s151 = ssub.s32 %s24, %s36
      %s152 = ssub.s32 %s149, %s150
      %s153 = sor.u32 %s151, %s152
      %p154 = scmp.eq.s32.totalorder %s153, 0
      %s156 = sadd.s32 %s155, 1
      %s157 = scalar_select %p154, %s155, %s156
      %p160 = pneg %p154
      %p161 = scmp.eq.s32.totalorder %s17, 1
      %p162 = por %p160, %p161
      %p163 = scmp.ne.s32.totalorder %s155, %s158
      %p164 = scmp.eq.s32.totalorder %s17, 0
      %p165 = por %p163, %p164
      %p166 = scmp.ne.s32.totalorder %s155, %s158
      %p167 = scmp.eq.s32.totalorder %s22, 1
      %p168 = por %p166, %p167
      %p169 = scmp.ne.s32.totalorder %s158, %s159
      %p170 = scmp.eq.s32.totalorder %s22, 0
      %p171 = por %p169, %p170
      %p172 = scmp.ne.s32.totalorder %s158, %s159
      %p173 = scmp.eq.s32.totalorder %s23, 1
      %p174 = por %p172, %p173
      %p176 = scmp.ne.s32.totalorder %s159, %s175
      %p177 = scmp.eq.s32.totalorder %s23, 0
      %p178 = por %p176, %p177
      %s179 = sadd.s32 %s25, 1
      %s180 = sadd.s32 %s32, 1
      %s181 = ssub.s32 %s24, %s36
      %s182 = ssub.s32 %s179, %s180
      %s183 = sor.u32 %s181, %s182
      %p184 = scmp.eq.s32.totalorder %s183, 0
      %s186 = sadd.s32 %s185, 1
      %s187 = scalar_select %p184, %s185, %s186
      %p190 = pneg %p184
      %p191 = scmp.eq.s32.totalorder %s17, 1
      %p192 = por %p190, %p191
      %p193 = scmp.ne.s32.totalorder %s185, %s188
      %p194 = scmp.eq.s32.totalorder %s17, 0
      %p195 = por %p193, %p194
      %p196 = scmp.ne.s32.totalorder %s185, %s188
      %p197 = scmp.eq.s32.totalorder %s22, 1
      %p198 = por %p196, %p197
      %p199 = scmp.ne.s32.totalorder %s188, %s189
      %p200 = scmp.eq.s32.totalorder %s22, 0
      %p201 = por %p199, %p200
      %p202 = scmp.ne.s32.totalorder %s188, %s189
      %p203 = scmp.eq.s32.totalorder %s23, 1
      %p204 = por %p202, %p203
      %p206 = scmp.ne.s32.totalorder %s189, %s205
      %p207 = scmp.eq.s32.totalorder %s23, 0
      %p208 = por %p206, %p207
      %s210 = sadd.s32 %s209, 1
      %p213 = scmp.eq.s32.totalorder %s17, 1
      %p214 = scmp.ne.s32.totalorder %s209, %s211
      %p215 = scmp.eq.s32.totalorder %s17, 0
      %p216 = por %p214, %p215
      %p217 = scmp.ne.s32.totalorder %s209, %s211
      %p218 = scmp.eq.s32.totalorder %s22, 1
      %p219 = por %p217, %p218
      %p220 = scmp.ne.s32.totalorder %s211, %s212
      %p221 = scmp.eq.s32.totalorder %s22, 0
      %p222 = por %p220, %p221
      %p223 = scmp.ne.s32.totalorder %s211, %s212
      %p224 = scmp.eq.s32.totalorder %s23, 1
      %p225 = por %p223, %p224
      %p227 = scmp.ne.s32.totalorder %s212, %s226
      %p228 = scmp.eq.s32.totalorder %s23, 0
      %p229 = por %p227, %p228
      %s231 = sadd.s32 %s230, 1
      %p234 = scmp.eq.s32.totalorder %s17, 1
      %p235 = scmp.ne.s32.totalorder %s230, %s232
      %p236 = scmp.eq.s32.totalorder %s17, 0
      %p237 = por %p235, %p236
      %p238 = scmp.ne.s32.totalorder %s230, %s232
      %p239 = scmp.eq.s32.totalorder %s22, 1
      %p240 = por %p238, %p239
      %p241 = scmp.ne.s32.totalorder %s232, %s233
      %p242 = scmp.eq.s32.totalorder %s22, 0
      %p243 = por %p241, %p242
      %p244 = scmp.ne.s32.totalorder %s232, %s233
      %p245 = scmp.eq.s32.totalorder %s23, 1
      %p246 = por %p244, %p245
      %p248 = scmp.ne.s32.totalorder %s233, %s247
      %p249 = scmp.eq.s32.totalorder %s23, 0
      %p250 = por %p248, %p249
      %s251 = ssub.s32 %s24, %s36
      %s252 = ssub.s32 %s25, %s32
      %s253 = sor.u32 %s251, %s252
      %p254 = scmp.eq.s32.totalorder %s253, 0
      %s256 = sadd.s32 %s255, 1
      %s257 = scalar_select %p254, %s255, %s256
      %p260 = pneg %p254
      %p261 = scmp.eq.s32.totalorder %s17, 1
      %p262 = por %p260, %p261
      %p263 = scmp.ne.s32.totalorder %s255, %s258
      %p264 = scmp.eq.s32.totalorder %s17, 0
      %p265 = por %p263, %p264
      %p266 = scmp.ne.s32.totalorder %s255, %s258
      %p267 = scmp.eq.s32.totalorder %s22, 1
      %p268 = por %p266, %p267
      %p269 = scmp.ne.s32.totalorder %s258, %s259
      %p270 = scmp.eq.s32.totalorder %s22, 0
      %p271 = por %p269, %p270
      %p272 = scmp.ne.s32.totalorder %s258, %s259
      %p273 = scmp.eq.s32.totalorder %s23, 1
      %p274 = por %p272, %p273
      %p276 = scmp.ne.s32.totalorder %s259, %s275
      %p277 = scmp.eq.s32.totalorder %s23, 0
      %p278 = por %p276, %p277
      %p279 = scmp.le.s32.totalorder 1, %s17
      %p280 = scmp.lt.s32.totalorder %s17, 3
      %p281 = pnand %p279, %p280
      %p282 = pneg %p281
      // Predicated region
      $region9: #{tpu_custom_call.1} parent=5 // pred_check
        _
      $region10: #{tpu_custom_call.1} parent=5 // pred_check_branch
        %284 = sbr.rel (%p281) target = $region12
      $region11: #{tpu_custom_call.1} parent=5 // pred_region
        %s285 = ssub.s32 %s17, 1
        // Predicated region
        $region13: #{tpu_custom_call.1} parent=11 // pred_check
          %p286 = pneg %p222
        $region14: #{tpu_custom_call.1} parent=11 // pred_check_branch
          %288 = sbr.rel (%p286) target = $region16
        $region15: #{tpu_custom_call.1} parent=11 // pred_region
          _
        $region16: #{tpu_custom_call.1} parent=11 // pred_fallthru
          _
        // Predicated region
        $region17: #{tpu_custom_call.1} parent=11 // pred_check
          %p289 = pneg %p243
        $region18: #{tpu_custom_call.1} parent=11 // pred_check_branch
          %291 = sbr.rel (%p289) target = $region20
        $region19: #{tpu_custom_call.1} parent=11 // pred_region
          _
        $region20: #{tpu_custom_call.1} parent=11 // pred_fallthru
          _
      $region12: #{tpu_custom_call.1} parent=5 // pred_fallthru
        _
      %p292 = scmp.lt.s32.totalorder %s17, 2
      // Predicated region
      $region21: #{tpu_custom_call.1} parent=5 // pred_check
        %p293 = pneg %p292
      $region22: #{tpu_custom_call.1} parent=5 // pred_check_branch
        %295 = sbr.rel (%p293) target = $region24
      $region23: #{tpu_custom_call.1} parent=5 // pred_region
        // Predicated region
        $region25: #{tpu_custom_call.1} parent=23 // pred_check
          %p296 = pneg %p51
        $region26: #{tpu_custom_call.1} parent=23 // pred_check_branch
          %298 = sbr.rel (%p296) target = $region28
        $region27: #{tpu_custom_call.1} parent=23 // pred_region
          %s299 = smul.u32 8, %s25
          %p300 = scmp.lt.s32.totalorder %s24, 1
          %s301 = scalar_select %p300, %s24, 1
          %p302 = scmp.lt.s32.totalorder %s299, 15
          %s303 = scalar_select %p302, %s299, 15
          %s304 = smul.addr %s303, 2
          %s305 = smul.addr %s301, 32
          %s306 = sadd.s32 %s304, %s305
          %s307 = smul.addr %s306, 4
          %s308 = scalar_lea.vmem %s0, %s307
          %s309 = smul.u32 8, %s25
        $region28: #{tpu_custom_call.1} parent=23 // pred_fallthru
          _
        // Predicated region
        $region29: #{tpu_custom_call.1} parent=23 // pred_check
          %p310 = pneg %p79
        $region30: #{tpu_custom_call.1} parent=23 // pred_check_branch
          %312 = sbr.rel (%p310) target = $region32
        $region31: #{tpu_custom_call.1} parent=23 // pred_region
          %s313 = smul.u32 8, %s25
          %p314 = scmp.lt.s32.totalorder %s24, 1
          %s315 = scalar_select %p314, %s24, 1
          %p316 = scmp.lt.s32.totalorder %s313, 15
          %s317 = scalar_select %p316, %s313, 15
          %s318 = smul.addr %s315, 16
          %s319 = sadd.s32 %s317, %s318
          %s320 = smul.addr %s319, 4
          %s321 = scalar_lea.vmem %s1, %s320
          %s322 = smul.u32 8, %s25
        $region32: #{tpu_custom_call.1} parent=23 // pred_fallthru
          _
        // Predicated region
        $region33: #{tpu_custom_call.1} parent=23 // pred_check
          %p323 = pneg %p107
        $region34: #{tpu_custom_call.1} parent=23 // pred_check_branch
          %325 = sbr.rel (%p323) target = $region36
        $region35: #{tpu_custom_call.1} parent=23 // pred_region
          %s326 = smul.u32 8, %s25
          %p327 = scmp.lt.s32.totalorder %s24, 1
          %s328 = scalar_select %p327, %s24, 1
          %p329 = scmp.lt.s32.totalorder %s326, 7
          %s330 = scalar_select %p329, %s326, 7
          %s331 = smul.addr %s330, 2
          %s332 = smul.addr %s328, 16
          %s333 = sadd.s32 %s331, %s332
          %s334 = smul.addr %s333, 4
          %s335 = scalar_lea.vmem %s2, %s334
          %s336 = smul.u32 8, %s25
        $region36: #{tpu_custom_call.1} parent=23 // pred_fallthru
          _
        // Predicated region
        $region37: #{tpu_custom_call.1} parent=23 // pred_check
          %p337 = pneg %p135
        $region38: #{tpu_custom_call.1} parent=23 // pred_check_branch
          %339 = sbr.rel (%p337) target = $region40
        $region39: #{tpu_custom_call.1} parent=23 // pred_region
          %s340 = smul.u32 8, %s25
          %p341 = scmp.lt.s32.totalorder %s24, 1
          %s342 = scalar_select %p341, %s24, 1
          %p343 = scmp.lt.s32.totalorder %s340, 7
          %s344 = scalar_select %p343, %s340, 7
          %s345 = smul.addr %s342, 8
          %s346 = sadd.s32 %s344, %s345
          %s347 = smul.addr %s346, 4
          %s348 = scalar_lea.vmem %s3, %s347
          %s349 = smul.u32 8, %s25
        $region40: #{tpu_custom_call.1} parent=23 // pred_fallthru
          _
        // Predicated region
        $region41: #{tpu_custom_call.1} parent=23 // pred_check
          %p350 = pneg %p165
        $region42: #{tpu_custom_call.1} parent=23 // pred_check_branch
          %352 = sbr.rel (%p350) target = $region44
        $region43: #{tpu_custom_call.1} parent=23 // pred_region
          %s353 = sadd.s32 %s25, 1
          %s354 = smul.u32 8, %s353
          %p355 = scmp.lt.s32.totalorder %s24, 1
          %s356 = scalar_select %p355, %s24, 1
          %p357 = scmp.lt.s32.totalorder %s354, 15
          %s358 = scalar_select %p357, %s354, 15
          %s359 = smul.addr %s358, 2
          %s360 = smul.addr %s356, 32
          %s361 = sadd.s32 %s359, %s360
          %s362 = smul.addr %s361, 4
          %s363 = scalar_lea.vmem %s4, %s362
          %s364 = sadd.s32 %s25, 1
          %s365 = smul.u32 8, %s364
        $region44: #{tpu_custom_call.1} parent=23 // pred_fallthru
          _
        // Predicated region
        $region45: #{tpu_custom_call.1} parent=23 // pred_check
          %p366 = pneg %p195
        $region46: #{tpu_custom_call.1} parent=23 // pred_check_branch
          %368 = sbr.rel (%p366) target = $region48
        $region47: #{tpu_custom_call.1} parent=23 // pred_region
          %s369 = sadd.s32 %s25, 1
          %s370 = smul.u32 8, %s369
          %p371 = scmp.lt.s32.totalorder %s24, 1
          %s372 = scalar_select %p371, %s24, 1
          %p373 = scmp.lt.s32.totalorder %s370, 15
          %s374 = scalar_select %p373, %s370, 15
          %s375 = smul.addr %s372, 16
          %s376 = sadd.s32 %s374, %s375
          %s377 = smul.addr %s376, 4
          %s378 = scalar_lea.vmem %s5, %s377
          %s379 = sadd.s32 %s25, 1
          %s380 = smul.u32 8, %s379
        $region48: #{tpu_custom_call.1} parent=23 // pred_fallthru
          _
      $region24: #{tpu_custom_call.1} parent=5 // pred_fallthru
        _
      %p381 = scmp.le.s32.totalorder 1, %s17
      %p382 = scmp.lt.s32.totalorder %s17, 3
      %p383 = pnand %p381, %p382
      %p384 = pneg %p383
      // Predicated region
      $region49: #{tpu_custom_call.1} parent=5 // pred_check
        _
      $region50: #{tpu_custom_call.1} parent=5 // pred_check_branch
        %386 = sbr.rel (%p383) target = $region52
      $region51: #{tpu_custom_call.1} parent=5 // pred_region
        %s387 = ssub.s32 %s17, 1
        %s388 = smul.u32 8, %s27
        %p389 = scmp.lt.s32.totalorder %s26, 1
        %s390 = scalar_select %p389, %s26, 1
        %p391 = scmp.lt.s32.totalorder %s388, 15
        %s392 = scalar_select %p391, %s388, 15
        %s393 = smul.addr %s392, 2
        %s394 = smul.addr %s390, 32
        %s395 = sadd.s32 %s393, %s394
        %s396 = smul.addr %s395, 4
        %s397 = scalar_lea.vmem %s0, %s396
        %p398 = pneg %p57
        %p399 = pneg %p54
        %s400 = smul.u32 8, %s27
        %p401 = scmp.lt.s32.totalorder %s26, 1
        %s402 = scalar_select %p401, %s26, 1
        %p403 = scmp.lt.s32.totalorder %s400, 15
        %s404 = scalar_select %p403, %s400, 15
        %s405 = smul.addr %s402, 16
        %s406 = sadd.s32 %s404, %s405
        %s407 = smul.addr %s406, 4
        %s408 = scalar_lea.vmem %s1, %s407
        %p409 = pneg %p85
        %p410 = pneg %p82
        %s411 = smul.u32 8, %s27
        %p412 = scmp.lt.s32.totalorder %s26, 1
        %s413 = scalar_select %p412, %s26, 1
        %p414 = scmp.lt.s32.totalorder %s411, 7
        %s415 = scalar_select %p414, %s411, 7
        %s416 = smul.addr %s415, 2
        %s417 = smul.addr %s413, 16
        %s418 = sadd.s32 %s416, %s417
        %s419 = smul.addr %s418, 4
        %s420 = scalar_lea.vmem %s2, %s419
        %p421 = pneg %p113
        %p422 = pneg %p110
        %s423 = smul.u32 8, %s27
        %p424 = scmp.lt.s32.totalorder %s26, 1
        %s425 = scalar_select %p424, %s26, 1
        %p426 = scmp.lt.s32.totalorder %s423, 7
        %s427 = scalar_select %p426, %s423, 7
        %s428 = smul.addr %s425, 8
        %s429 = sadd.s32 %s427, %s428
        %s430 = smul.addr %s429, 4
        %s431 = scalar_lea.vmem %s3, %s430
        %p432 = pneg %p141
        %p433 = pneg %p138
        %s434 = sadd.s32 %s27, 1
        %s435 = smul.u32 8, %s434
        %p436 = scmp.lt.s32.totalorder %s26, 1
        %s437 = scalar_select %p436, %s26, 1
        %p438 = scmp.lt.s32.totalorder %s435, 15
        %s439 = scalar_select %p438, %s435, 15
        %s440 = smul.addr %s439, 2
        %s441 = smul.addr %s437, 32
        %s442 = sadd.s32 %s440, %s441
        %s443 = smul.addr %s442, 4
        %s444 = scalar_lea.vmem %s4, %s443
        %p445 = pneg %p171
        %p446 = pneg %p168
        %s447 = sadd.s32 %s27, 1
        %s448 = smul.u32 8, %s447
        %p449 = scmp.lt.s32.totalorder %s26, 1
        %s450 = scalar_select %p449, %s26, 1
        %p451 = scmp.lt.s32.totalorder %s448, 15
        %s452 = scalar_select %p451, %s448, 15
        %s453 = smul.addr %s450, 16
        %s454 = sadd.s32 %s452, %s453
        %s455 = smul.addr %s454, 4
        %s456 = scalar_lea.vmem %s5, %s455
        %p457 = pneg %p201
        %p458 = pneg %p198
        %p459 = pneg %p222
        %p460 = pneg %p219
        %p461 = pneg %p243
        %p462 = pneg %p240
        %p463 = pneg %p271
        %p464 = pneg %p268
        %s465 = sand.u32 %s258, 1
        %s466 = scalar_lea.sflag [#allocation3], %s465
        %s467 = sand.u32 %s258, 1
        %s468 = smul.addr %s467, 64
        %s469 = scalar_lea.vmem [#allocation2], %s468
        %s470 = smul.u32 8, %s27
        %p471 = scmp.lt.s32.totalorder %s26, 1
        %s472 = scalar_select %p471, %s26, 1
        %p473 = scmp.lt.s32.totalorder %s470, 15
        %s474 = scalar_select %p473, %s470, 15
        %s475 = smul.addr %s474, 2
        %s476 = smul.addr %s472, 32
        %s477 = sadd.s32 %s475, %s476
        %s478 = smul.addr %s477, 4
        %s479 = scalar_lea.vmem %s0, %s478
        %s480 = smul.u32 8, %s27
        %s481 = smul.u32 8, %s27
        %p482 = scmp.lt.s32.totalorder %s26, 1
        %s483 = scalar_select %p482, %s26, 1
        %p484 = scmp.lt.s32.totalorder %s481, 15
        %s485 = scalar_select %p484, %s481, 15
        %s486 = smul.addr %s483, 16
        %s487 = sadd.s32 %s485, %s486
        %s488 = smul.addr %s487, 4
        %s489 = scalar_lea.vmem %s1, %s488
        %s490 = smul.u32 8, %s27
        %s491 = smul.u32 8, %s27
        %p492 = scmp.lt.s32.totalorder %s26, 1
        %s493 = scalar_select %p492, %s26, 1
        %p494 = scmp.lt.s32.totalorder %s491, 7
        %s495 = scalar_select %p494, %s491, 7
        %s496 = smul.addr %s495, 2
        %s497 = smul.addr %s493, 16
        %s498 = sadd.s32 %s496, %s497
        %s499 = smul.addr %s498, 4
        %s500 = scalar_lea.vmem %s2, %s499
        %s501 = smul.u32 8, %s27
        %s502 = smul.u32 8, %s27
        %p503 = scmp.lt.s32.totalorder %s26, 1
        %s504 = scalar_select %p503, %s26, 1
        %p505 = scmp.lt.s32.totalorder %s502, 7
        %s506 = scalar_select %p505, %s502, 7
        %s507 = smul.addr %s504, 8
        %s508 = sadd.s32 %s506, %s507
        %s509 = smul.addr %s508, 4
        %s510 = scalar_lea.vmem %s3, %s509
        %s511 = smul.u32 8, %s27
        %s512 = sadd.s32 %s27, 1
        %s513 = smul.u32 8, %s512
        %p514 = scmp.lt.s32.totalorder %s26, 1
        %s515 = scalar_select %p514, %s26, 1
        %p516 = scmp.lt.s32.totalorder %s513, 15
        %s517 = scalar_select %p516, %s513, 15
        %s518 = smul.addr %s517, 2
        %s519 = smul.addr %s515, 32
        %s520 = sadd.s32 %s518, %s519
        %s521 = smul.addr %s520, 4
        %s522 = scalar_lea.vmem %s4, %s521
        %s523 = sadd.s32 %s27, 1
        %s524 = smul.u32 8, %s523
        %s525 = sadd.s32 %s27, 1
        %s526 = smul.u32 8, %s525
        %p527 = scmp.lt.s32.totalorder %s26, 1
        %s528 = scalar_select %p527, %s26, 1
        %p529 = scmp.lt.s32.totalorder %s526, 15
        %s530 = scalar_select %p529, %s526, 15
        %s531 = smul.addr %s528, 16
        %s532 = sadd.s32 %s530, %s531
        %s533 = smul.addr %s532, 4
        %s534 = scalar_lea.vmem %s5, %s533
        %s535 = sadd.s32 %s27, 1
        %s536 = smul.u32 8, %s535
        %s537 = smul.u32 8, %s27
        %v539 = vld [vmem:[%s7] sm:$0x1]
        %v540 = vld [vmem:[%s479] sm:$0xf]
        %v541 = vld [vmem:[%s489] sm:$0xf]
        %v542 = vld [vmem:[%s479 + $0x4] sm:$0x1]
        %v543 = vld [vmem:[%s500] sm:$0xf]
        %v544 = vld [vmem:[%s510] sm:$0xf]
        %v545 = vld [vmem:[%s500 + $0x4] sm:$0x1]
        %s546 = scalar_lea.vmem %s479, 8
        %v547 = vld [vmem:[%s546] sm:$0xf]
        %s548 = scalar_lea.vmem %s489, 4
        %v549 = vld [vmem:[%s548] sm:$0xf]
        %v550 = vld [vmem:[%s546 + $0x4] sm:$0x1]
        %v551 = vld [vmem:[%s6] sm:$0x3]
        %vm552 = vcmask 31744
        %v554 = vsel %vm552, %v540, 0
        %vm556 = vcmask 1041408
        %v558 = vsel %vm556, %v551, 0
        %560 = vmatprep.subr.bf16.mxu0 0
        %561 = vmatpush1.bf16.msra.mxu0 %v558
        %562 = vmatprep.subr.bf16.mxu0 0
        %563 = vmatpush1.bf16.msra.mxu0 0
        %564 = vmatprep.subr.bf16.mxu0 0
        %565 = vmatpush1.bf16.msra.mxu0 0
        %566 = vmatprep.subr.bf16.mxu0 0
        %567 = vmatpush1.bf16.msra.mxu0 0
        %568 = vmatprep.subr.bf16.mxu0 0
        %569 = vmatpush1.bf16.msra.mxu0 0
        %570 = vmatprep.subr.bf16.mxu0 0
        %571 = vmatpush1.bf16.msra.mxu0 0
        %572 = vmatprep.subr.bf16.mxu0 0
        %573 = vmatpush1.bf16.msra.mxu0 0
        %574 = vmatprep.subr.bf16.mxu0 0
        %575 = vmatpush1.bf16.msra.mxu0 0
        %576 = vmatprep.subr.bf16.mxu0 0
        %577 = vmatpush1.bf16.msra.mxu0 0
        %578 = vmatprep.subr.bf16.mxu0 0
        %579 = vmatpush1.bf16.msra.mxu0 0
        %580 = vmatprep.subr.bf16.mxu0 0
        %581 = vmatpush1.bf16.msra.mxu0 0
        %582 = vmatprep.subr.bf16.mxu0 0
        %583 = vmatpush1.bf16.msra.mxu0 0
        %584 = vmatprep.subr.bf16.mxu0 0
        %585 = vmatpush1.bf16.msra.mxu0 0
        %586 = vmatprep.subr.bf16.mxu0 0
        %587 = vmatpush1.bf16.msra.mxu0 0
        %588 = vmatprep.subr.bf16.mxu0 0
        %589 = vmatpush1.bf16.msra.mxu0 0
        %590 = vmatprep.subr.bf16.mxu0 0
        %591 = vmatpush1.bf16.msra.mxu0 0
        %592 = vmatprep.mubr.bf16.mxu0 0
        %593 = vmatmul.mubr.bf16.gmra.mrb[0].mxu0 %v554
        %v594 = vpop.f32.mrb[0].mxu0
        %v595 = vadd.f32 0.0, %v594
        %v596 = vpop.f32.mrb[0].mxu0
        %v597 = vpop.f32.mrb[0].mxu0
        %v598 = vpop.f32.mrb[0].mxu0
        %599 = vdwg.mxu0
        %v601 = vlaneseq
        %v602 = vshrl.u32 %v601, 7
        %v603 = vsub.s32 0, %v602
        %v604 = vrot.slane %v539, %v603
        %v606 = vadd.f32 %v604, %v595
        %s607 = scalar_lea.vmem %s6, 2
        %v608 = vld [vmem:[%s607] sm:$0x3]
        %v610 = vsel %vm552, %v541, 0
        %v613 = vsel %vm556, %v608, 0
        %615 = vmatprep.subr.bf16.mxu0 0
        %616 = vmatpush1.bf16.msra.mxu0 %v613
        %617 = vmatprep.subr.bf16.mxu0 0
        %618 = vmatpush1.bf16.msra.mxu0 0
        %619 = vmatprep.subr.bf16.mxu0 0
        %620 = vmatpush1.bf16.msra.mxu0 0
        %621 = vmatprep.subr.bf16.mxu0 0
        %622 = vmatpush1.bf16.msra.mxu0 0
        %623 = vmatprep.subr.bf16.mxu0 0
        %624 = vmatpush1.bf16.msra.mxu0 0
        %625 = vmatprep.subr.bf16.mxu0 0
        %626 = vmatpush1.bf16.msra.mxu0 0
        %627 = vmatprep.subr.bf16.mxu0 0
        %628 = vmatpush1.bf16.msra.mxu0 0
        %629 = vmatprep.subr.bf16.mxu0 0
        %630 = vmatpush1.bf16.msra.mxu0 0
        %631 = vmatprep.subr.bf16.mxu0 0
        %632 = vmatpush1.bf16.msra.mxu0 0
        %633 = vmatprep.subr.bf16.mxu0 0
        %634 = vmatpush1.bf16.msra.mxu0 0
        %635 = vmatprep.subr.bf16.mxu0 0
        %636 = vmatpush1.bf16.msra.mxu0 0
        %637 = vmatprep.subr.bf16.mxu0 0
        %638 = vmatpush1.bf16.msra.mxu0 0
        %639 = vmatprep.subr.bf16.mxu0 0
        %640 = vmatpush1.bf16.msra.mxu0 0
        %641 = vmatprep.subr.bf16.mxu0 0
        %642 = vmatpush1.bf16.msra.mxu0 0
        %643 = vmatprep.subr.bf16.mxu0 0
        %644 = vmatpush1.bf16.msra.mxu0 0
        %645 = vmatprep.subr.bf16.mxu0 0
        %646 = vmatpush1.bf16.msra.mxu0 0
        %647 = vmatprep.mubr.bf16.mxu0 0
        %648 = vmatmul.mubr.bf16.gmra.mrb[0].mxu0 %v610
        %v649 = vpop.f32.mrb[0].mxu0
        %v650 = vadd.f32 0.0, %v649
        %v651 = vpop.f32.mrb[0].mxu0
        %v652 = vpop.f32.mrb[0].mxu0
        %v653 = vpop.f32.mrb[0].mxu0
        %654 = vdwg.mxu0
        %v655 = vadd.f32 %v606, %v650
        %s656 = scalar_lea.vmem %s6, 4
        %v657 = vld [vmem:[%s656] sm:$0x3]
        %v660 = vunpack.c.l.b16 %v540
        %v661 = vunpack.c.l.b16 %v542
        %v662 = vpack.c.b16 %v661, %v660
        %v664 = vshrl.u32 %v662, 16
        %v666 = vshll.u32 %v662, 16
        %v668 = vrot.slane %v666, 1
        %v669 = vor.u32 %v664, %v668
        %v671 = vsel %vm552, %v669, 0
        %v674 = vsel %vm556, %v657, 0
        %676 = vmatprep.subr.bf16.mxu0 0
        %677 = vmatpush1.bf16.msra.mxu0 %v674
        %678 = vmatprep.subr.bf16.mxu0 0
        %679 = vmatpush1.bf16.msra.mxu0 0
        %680 = vmatprep.subr.bf16.mxu0 0
        %681 = vmatpush1.bf16.msra.mxu0 0
        %682 = vmatprep.subr.bf16.mxu0 0
        %683 = vmatpush1.bf16.msra.mxu0 0
        %684 = vmatprep.subr.bf16.mxu0 0
        %685 = vmatpush1.bf16.msra.mxu0 0
        %686 = vmatprep.subr.bf16.mxu0 0
        %687 = vmatpush1.bf16.msra.mxu0 0
        %688 = vmatprep.subr.bf16.mxu0 0
        %689 = vmatpush1.bf16.msra.mxu0 0
        %690 = vmatprep.subr.bf16.mxu0 0
        %691 = vmatpush1.bf16.msra.mxu0 0
        %692 = vmatprep.subr.bf16.mxu0 0
        %693 = vmatpush1.bf16.msra.mxu0 0
        %694 = vmatprep.subr.bf16.mxu0 0
        %695 = vmatpush1.bf16.msra.mxu0 0
        %696 = vmatprep.subr.bf16.mxu0 0
        %697 = vmatpush1.bf16.msra.mxu0 0
        %698 = vmatprep.subr.bf16.mxu0 0
        %699 = vmatpush1.bf16.msra.mxu0 0
        %700 = vmatprep.subr.bf16.mxu0 0
        %701 = vmatpush1.bf16.msra.mxu0 0
        %702 = vmatprep.subr.bf16.mxu0 0
        %703 = vmatpush1.bf16.msra.mxu0 0
        %704 = vmatprep.subr.bf16.mxu0 0
        %705 = vmatpush1.bf16.msra.mxu0 0
        %706 = vmatprep.subr.bf16.mxu0 0
        %707 = vmatpush1.bf16.msra.mxu0 0
        %708 = vmatprep.mubr.bf16.mxu0 0
        %709 = vmatmul.mubr.bf16.gmra.mrb[0].mxu0 %v671
        %v710 = vpop.f32.mrb[0].mxu0
        %v711 = vadd.f32 0.0, %v710
        %v712 = vpop.f32.mrb[0].mxu0
        %v713 = vpop.f32.mrb[0].mxu0
        %v714 = vpop.f32.mrb[0].mxu0
        %715 = vdwg.mxu0
        %v716 = vadd.f32 %v655, %v711
        %s717 = scalar_lea.vmem %s6, 6
        %v718 = vld [vmem:[%s717] sm:$0x3]
        %v720 = vsel %vm552, %v543, 0
        %v723 = vsel %vm556, %v718, 0
        %725 = vmatprep.subr.bf16.mxu0 0
        %726 = vmatpush1.bf16.msra.mxu0 %v723
        %727 = vmatprep.subr.bf16.mxu0 0
        %728 = vmatpush1.bf16.msra.mxu0 0
        %729 = vmatprep.subr.bf16.mxu0 0
        %730 = vmatpush1.bf16.msra.mxu0 0
        %731 = vmatprep.subr.bf16.mxu0 0
        %732 = vmatpush1.bf16.msra.mxu0 0
        %733 = vmatprep.subr.bf16.mxu0 0
        %734 = vmatpush1.bf16.msra.mxu0 0
        %735 = vmatprep.subr.bf16.mxu0 0
        %736 = vmatpush1.bf16.msra.mxu0 0
        %737 = vmatprep.subr.bf16.mxu0 0
        %738 = vmatpush1.bf16.msra.mxu0 0
        %739 = vmatprep.subr.bf16.mxu0 0
        %740 = vmatpush1.bf16.msra.mxu0 0
        %741 = vmatprep.subr.bf16.mxu0 0
        %742 = vmatpush1.bf16.msra.mxu0 0
        %743 = vmatprep.subr.bf16.mxu0 0
        %744 = vmatpush1.bf16.msra.mxu0 0
        %745 = vmatprep.subr.bf16.mxu0 0
        %746 = vmatpush1.bf16.msra.mxu0 0
        %747 = vmatprep.subr.bf16.mxu0 0
        %748 = vmatpush1.bf16.msra.mxu0 0
        %749 = vmatprep.subr.bf16.mxu0 0
        %750 = vmatpush1.bf16.msra.mxu0 0
        %751 = vmatprep.subr.bf16.mxu0 0
        %752 = vmatpush1.bf16.msra.mxu0 0
        %753 = vmatprep.subr.bf16.mxu0 0
        %754 = vmatpush1.bf16.msra.mxu0 0
        %755 = vmatprep.subr.bf16.mxu0 0
        %756 = vmatpush1.bf16.msra.mxu0 0
        %757 = vmatprep.mubr.bf16.mxu0 0
        %758 = vmatmul.mubr.bf16.gmra.mrb[0].mxu0 %v720
        %v759 = vpop.f32.mrb[0].mxu0
        %v760 = vadd.f32 0.0, %v759
        %v761 = vpop.f32.mrb[0].mxu0
        %v762 = vpop.f32.mrb[0].mxu0
        %v763 = vpop.f32.mrb[0].mxu0
        %764 = vdwg.mxu0
        %v765 = vadd.f32 %v716, %v760
        %s766 = scalar_lea.vmem %s6, 8
        %v767 = vld [vmem:[%s766] sm:$0x3]
        %v769 = vsel %vm552, %v544, 0
        %v772 = vsel %vm556, %v767, 0
        %774 = vmatprep.subr.bf16.mxu0 0
        %775 = vmatpush1.bf16.msra.mxu0 %v772
        %776 = vmatprep.subr.bf16.mxu0 0
        %777 = vmatpush1.bf16.msra.mxu0 0
        %778 = vmatprep.subr.bf16.mxu0 0
        %779 = vmatpush1.bf16.msra.mxu0 0
        %780 = vmatprep.subr.bf16.mxu0 0
        %781 = vmatpush1.bf16.msra.mxu0 0
        %782 = vmatprep.subr.bf16.mxu0 0
        %783 = vmatpush1.bf16.msra.mxu0 0
        %784 = vmatprep.subr.bf16.mxu0 0
        %785 = vmatpush1.bf16.msra.mxu0 0
        %786 = vmatprep.subr.bf16.mxu0 0
        %787 = vmatpush1.bf16.msra.mxu0 0
        %788 = vmatprep.subr.bf16.mxu0 0
        %789 = vmatpush1.bf16.msra.mxu0 0
        %790 = vmatprep.subr.bf16.mxu0 0
        %791 = vmatpush1.bf16.msra.mxu0 0
        %792 = vmatprep.subr.bf16.mxu0 0
        %793 = vmatpush1.bf16.msra.mxu0 0
        %794 = vmatprep.subr.bf16.mxu0 0
        %795 = vmatpush1.bf16.msra.mxu0 0
        %796 = vmatprep.subr.bf16.mxu0 0
        %797 = vmatpush1.bf16.msra.mxu0 0
        %798 = vmatprep.subr.bf16.mxu0 0
        %799 = vmatpush1.bf16.msra.mxu0 0
        %800 = vmatprep.subr.bf16.mxu0 0
        %801 = vmatpush1.bf16.msra.mxu0 0
        %802 = vmatprep.subr.bf16.mxu0 0
        %803 = vmatpush1.bf16.msra.mxu0 0
        %804 = vmatprep.subr.bf16.mxu0 0
        %805 = vmatpush1.bf16.msra.mxu0 0
        %806 = vmatprep.mubr.bf16.mxu0 0
        %807 = vmatmul.mubr.bf16.gmra.mrb[0].mxu0 %v769
        %v808 = vpop.f32.mrb[0].mxu0
        %v809 = vadd.f32 0.0, %v808
        %v810 = vpop.f32.mrb[0].mxu0
        %v811 = vpop.f32.mrb[0].mxu0
        %v812 = vpop.f32.mrb[0].mxu0
        %813 = vdwg.mxu0
        %v814 = vadd.f32 %v765, %v809
        %s815 = scalar_lea.vmem %s6, 10
        %v816 = vld [vmem:[%s815] sm:$0x3]
        %v819 = vunpack.c.l.b16 %v543
        %v820 = vunpack.c.l.b16 %v545
        %v821 = vpack.c.b16 %v820, %v819
        %v823 = vshrl.u32 %v821, 16
        %v825 = vshll.u32 %v821, 16
        %v827 = vrot.slane %v825, 1
        %v828 = vor.u32 %v823, %v827
        %v830 = vsel %vm552, %v828, 0
        %v833 = vsel %vm556, %v816, 0
        %835 = vmatprep.subr.bf16.mxu0 0
        %836 = vmatpush1.bf16.msra.mxu0 %v833
        %837 = vmatprep.subr.bf16.mxu0 0
        %838 = vmatpush1.bf16.msra.mxu0 0
        %839 = vmatprep.subr.bf16.mxu0 0
        %840 = vmatpush1.bf16.msra.mxu0 0
        %841 = vmatprep.subr.bf16.mxu0 0
        %842 = vmatpush1.bf16.msra.mxu0 0
        %843 = vmatprep.subr.bf16.mxu0 0
        %844 = vmatpush1.bf16.msra.mxu0 0
        %845 = vmatprep.subr.bf16.mxu0 0
        %846 = vmatpush1.bf16.msra.mxu0 0
        %847 = vmatprep.subr.bf16.mxu0 0
        %848 = vmatpush1.bf16.msra.mxu0 0
        %849 = vmatprep.subr.bf16.mxu0 0
        %850 = vmatpush1.bf16.msra.mxu0 0
        %851 = vmatprep.subr.bf16.mxu0 0
        %852 = vmatpush1.bf16.msra.mxu0 0
        %853 = vmatprep.subr.bf16.mxu0 0
        %854 = vmatpush1.bf16.msra.mxu0 0
        %855 = vmatprep.subr.bf16.mxu0 0
        %856 = vmatpush1.bf16.msra.mxu0 0
        %857 = vmatprep.subr.bf16.mxu0 0
        %858 = vmatpush1.bf16.msra.mxu0 0
        %859 = vmatprep.subr.bf16.mxu0 0
        %860 = vmatpush1.bf16.msra.mxu0 0
        %861 = vmatprep.subr.bf16.mxu0 0
        %862 = vmatpush1.bf16.msra.mxu0 0
        %863 = vmatprep.subr.bf16.mxu0 0
        %864 = vmatpush1.bf16.msra.mxu0 0
        %865 = vmatprep.subr.bf16.mxu0 0
        %866 = vmatpush1.bf16.msra.mxu0 0
        %867 = vmatprep.mubr.bf16.mxu0 0
        %868 = vmatmul.mubr.bf16.gmra.mrb[0].mxu0 %v830
        %v869 = vpop.f32.mrb[0].mxu0
        %v870 = vadd.f32 0.0, %v869
        %v871 = vpop.f32.mrb[0].mxu0
        %v872 = vpop.f32.mrb[0].mxu0
        %v873 = vpop.f32.mrb[0].mxu0
        %874 = vdwg.mxu0
        %v875 = vadd.f32 %v814, %v870
        %s876 = scalar_lea.vmem %s6, 12
        %v877 = vld [vmem:[%s876] sm:$0x3]
        %v879 = vsel %vm552, %v547, 0
        %v882 = vsel %vm556, %v877, 0
        %884 = vmatprep.subr.bf16.mxu0 0
        %885 = vmatpush1.bf16.msra.mxu0 %v882
        %886 = vmatprep.subr.bf16.mxu0 0
        %887 = vmatpush1.bf16.msra.mxu0 0
        %888 = vmatprep.subr.bf16.mxu0 0
        %889 = vmatpush1.bf16.msra.mxu0 0
        %890 = vmatprep.subr.bf16.mxu0 0
        %891 = vmatpush1.bf16.msra.mxu0 0
        %892 = vmatprep.subr.bf16.mxu0 0
        %893 = vmatpush1.bf16.msra.mxu0 0
        %894 = vmatprep.subr.bf16.mxu0 0
        %895 = vmatpush1.bf16.msra.mxu0 0
        %896 = vmatprep.subr.bf16.mxu0 0
        %897 = vmatpush1.bf16.msra.mxu0 0
        %898 = vmatprep.subr.bf16.mxu0 0
        %899 = vmatpush1.bf16.msra.mxu0 0
        %900 = vmatprep.subr.bf16.mxu0 0
        %901 = vmatpush1.bf16.msra.mxu0 0
        %902 = vmatprep.subr.bf16.mxu0 0
        %903 = vmatpush1.bf16.msra.mxu0 0
        %904 = vmatprep.subr.bf16.mxu0 0
        %905 = vmatpush1.bf16.msra.mxu0 0
        %906 = vmatprep.subr.bf16.mxu0 0
        %907 = vmatpush1.bf16.msra.mxu0 0
        %908 = vmatprep.subr.bf16.mxu0 0
        %909 = vmatpush1.bf16.msra.mxu0 0
        %910 = vmatprep.subr.bf16.mxu0 0
        %911 = vmatpush1.bf16.msra.mxu0 0
        %912 = vmatprep.subr.bf16.mxu0 0
        %913 = vmatpush1.bf16.msra.mxu0 0
        %914 = vmatprep.subr.bf16.mxu0 0
        %915 = vmatpush1.bf16.msra.mxu0 0
        %916 = vmatprep.mubr.bf16.mxu0 0
        %917 = vmatmul.mubr.bf16.gmra.mrb[0].mxu0 %v879
        %v918 = vpop.f32.mrb[0].mxu0
        %v919 = vadd.f32 0.0, %v918
        %v920 = vpop.f32.mrb[0].mxu0
        %v921 = vpop.f32.mrb[0].mxu0
        %v922 = vpop.f32.mrb[0].mxu0
        %923 = vdwg.mxu0
        %v924 = vadd.f32 %v875, %v919
        %s925 = scalar_lea.vmem %s6, 14
        %v926 = vld [vmem:[%s925] sm:$0x3]
        %v928 = vsel %vm552, %v549, 0
        %v931 = vsel %vm556, %v926, 0
        %933 = vmatprep.subr.bf16.mxu0 0
        %934 = vmatpush1.bf16.msra.mxu0 %v931
        %935 = vmatprep.subr.bf16.mxu0 0
        %936 = vmatpush1.bf16.msra.mxu0 0
        %937 = vmatprep.subr.bf16.mxu0 0
        %938 = vmatpush1.bf16.msra.mxu0 0
        %939 = vmatprep.subr.bf16.mxu0 0
        %940 = vmatpush1.bf16.msra.mxu0 0
        %941 = vmatprep.subr.bf16.mxu0 0
        %942 = vmatpush1.bf16.msra.mxu0 0
        %943 = vmatprep.subr.bf16.mxu0 0
        %944 = vmatpush1.bf16.msra.mxu0 0
        %945 = vmatprep.subr.bf16.mxu0 0
        %946 = vmatpush1.bf16.msra.mxu0 0
        %947 = vmatprep.subr.bf16.mxu0 0
        %948 = vmatpush1.bf16.msra.mxu0 0
        %949 = vmatprep.subr.bf16.mxu0 0
        %950 = vmatpush1.bf16.msra.mxu0 0
        %951 = vmatprep.subr.bf16.mxu0 0
        %952 = vmatpush1.bf16.msra.mxu0 0
        %953 = vmatprep.subr.bf16.mxu0 0
        %954 = vmatpush1.bf16.msra.mxu0 0
        %955 = vmatprep.subr.bf16.mxu0 0
        %956 = vmatpush1.bf16.msra.mxu0 0
        %957 = vmatprep.subr.bf16.mxu0 0
        %958 = vmatpush1.bf16.msra.mxu0 0
        %959 = vmatprep.subr.bf16.mxu0 0
        %960 = vmatpush1.bf16.msra.mxu0 0
        %961 = vmatprep.subr.bf16.mxu0 0
        %962 = vmatpush1.bf16.msra.mxu0 0
        %963 = vmatprep.subr.bf16.mxu0 0
        %964 = vmatpush1.bf16.msra.mxu0 0
        %965 = vmatprep.mubr.bf16.mxu0 0
        %966 = vmatmul.mubr.bf16.gmra.mrb[0].mxu0 %v928
        %v967 = vpop.f32.mrb[0].mxu0
        %v968 = vadd.f32 0.0, %v967
        %v969 = vpop.f32.mrb[0].mxu0
        %v970 = vpop.f32.mrb[0].mxu0
        %v971 = vpop.f32.mrb[0].mxu0
        %972 = vdwg.mxu0
        %v973 = vadd.f32 %v924, %v968
        %s974 = scalar_lea.vmem %s6, 16
        %v975 = vld [vmem:[%s974] sm:$0x3]
        %v978 = vunpack.c.l.b16 %v547
        %v979 = vunpack.c.l.b16 %v550
        %v980 = vpack.c.b16 %v979, %v978
        %v982 = vshrl.u32 %v980, 16
        %v984 = vshll.u32 %v980, 16
        %v986 = vrot.slane %v984, 1
        %v987 = vor.u32 %v982, %v986
        %v989 = vsel %vm552, %v987, 0
        %v992 = vsel %vm556, %v975, 0
        %994 = vmatprep.subr.bf16.mxu0 0
        %995 = vmatpush1.bf16.msra.mxu0 %v992
        %996 = vmatprep.subr.bf16.mxu0 0
        %997 = vmatpush1.bf16.msra.mxu0 0
        %998 = vmatprep.subr.bf16.mxu0 0
        %999 = vmatpush1.bf16.msra.mxu0 0
        %1000 = vmatprep.subr.bf16.mxu0 0
        %1001 = vmatpush1.bf16.msra.mxu0 0
        %1002 = vmatprep.subr.bf16.mxu0 0
        %1003 = vmatpush1.bf16.msra.mxu0 0
        %1004 = vmatprep.subr.bf16.mxu0 0
        %1005 = vmatpush1.bf16.msra.mxu0 0
        %1006 = vmatprep.subr.bf16.mxu0 0
        %1007 = vmatpush1.bf16.msra.mxu0 0
        %1008 = vmatprep.subr.bf16.mxu0 0
        %1009 = vmatpush1.bf16.msra.mxu0 0
        %1010 = vmatprep.subr.bf16.mxu0 0
        %1011 = vmatpush1.bf16.msra.mxu0 0
        %1012 = vmatprep.subr.bf16.mxu0 0
        %1013 = vmatpush1.bf16.msra.mxu0 0
        %1014 = vmatprep.subr.bf16.mxu0 0
        %1015 = vmatpush1.bf16.msra.mxu0 0
        %1016 = vmatprep.subr.bf16.mxu0 0
        %1017 = vmatpush1.bf16.msra.mxu0 0
        %1018 = vmatprep.subr.bf16.mxu0 0
        %1019 = vmatpush1.bf16.msra.mxu0 0
        %1020 = vmatprep.subr.bf16.mxu0 0
        %1021 = vmatpush1.bf16.msra.mxu0 0
        %1022 = vmatprep.subr.bf16.mxu0 0
        %1023 = vmatpush1.bf16.msra.mxu0 0
        %1024 = vmatprep.subr.bf16.mxu0 0
        %1025 = vmatpush1.bf16.msra.mxu0 0
        %1026 = vmatprep.mubr.bf16.mxu0 0
        %1027 = vmatmul.mubr.bf16.gmra.mrb[0].mxu0 %v989
        %v1028 = vpop.f32.mrb[0].mxu0
        %v1029 = vadd.f32 0.0, %v1028
        %v1030 = vpop.f32.mrb[0].mxu0
        %v1031 = vpop.f32.mrb[0].mxu0
        %v1032 = vpop.f32.mrb[0].mxu0
        %1033 = vdwg.mxu0
        %v1034 = vadd.f32 %v973, %v1029
        %1035 = vst [vmem:[%s469] sm:$0xff] %v1034
        %v1036 = vld [vmem:[%s546] sm:$0xf]
        %v1037 = vld [vmem:[%s548] sm:$0xf]
        %v1038 = vld [vmem:[%s546 + $0x4] sm:$0x1]
        %s1039 = scalar_lea.vmem %s500, 8
        %v1040 = vld [vmem:[%s1039] sm:$0xf]
        %s1041 = scalar_lea.vmem %s510, 4
        %v1042 = vld [vmem:[%s1041] sm:$0xf]
        %v1043 = vld [vmem:[%s1039 + $0x4] sm:$0x1]
        %s1044 = scalar_lea.vmem %s479, 16
        %v1045 = vld [vmem:[%s1044] sm:$0xf]
        %s1046 = scalar_lea.vmem %s489, 8
        %v1047 = vld [vmem:[%s1046] sm:$0xf]
        %v1048 = vld [vmem:[%s1044 + $0x4] sm:$0x1]
        %v1049 = vld [vmem:[%s6] sm:$0x3]
        %v1051 = vsel %vm552, %v1036, 0
        %v1054 = vsel %vm556, %v1049, 0
        %1056 = vmatprep.subr.bf16.mxu0 0
        %1057 = vmatpush1.bf16.msra.mxu0 %v1054
        %1058 = vmatprep.subr.bf16.mxu0 0
        %1059 = vmatpush1.bf16.msra.mxu0 0
        %1060 = vmatprep.subr.bf16.mxu0 0
        %1061 = vmatpush1.bf16.msra.mxu0 0
        %1062 = vmatprep.subr.bf16.mxu0 0
        %1063 = vmatpush1.bf16.msra.mxu0 0
        %1064 = vmatprep.subr.bf16.mxu0 0
        %1065 = vmatpush1.bf16.msra.mxu0 0
        %1066 = vmatprep.subr.bf16.mxu0 0
        %1067 = vmatpush1.bf16.msra.mxu0 0
        %1068 = vmatprep.subr.bf16.mxu0 0
        %1069 = vmatpush1.bf16.msra.mxu0 0
        %1070 = vmatprep.subr.bf16.mxu0 0
        %1071 = vmatpush1.bf16.msra.mxu0 0
        %1072 = vmatprep.subr.bf16.mxu0 0
        %1073 = vmatpush1.bf16.msra.mxu0 0
        %1074 = vmatprep.subr.bf16.mxu0 0
        %1075 = vmatpush1.bf16.msra.mxu0 0
        %1076 = vmatprep.subr.bf16.mxu0 0
        %1077 = vmatpush1.bf16.msra.mxu0 0
        %1078 = vmatprep.subr.bf16.mxu0 0
        %1079 = vmatpush1.bf16.msra.mxu0 0
        %1080 = vmatprep.subr.bf16.mxu0 0
        %1081 = vmatpush1.bf16.msra.mxu0 0
        %1082 = vmatprep.subr.bf16.mxu0 0
        %1083 = vmatpush1.bf16.msra.mxu0 0
        %1084 = vmatprep.subr.bf16.mxu0 0
        %1085 = vmatpush1.bf16.msra.mxu0 0
        %1086 = vmatprep.subr.bf16.mxu0 0
        %1087 = vmatpush1.bf16.msra.mxu0 0
        %1088 = vmatprep.mubr.bf16.mxu0 0
        %1089 = vmatmul.mubr.bf16.gmra.mrb[0].mxu0 %v1051
        %v1090 = vpop.f32.mrb[0].mxu0
        %v1091 = vadd.f32 0.0, %v1090
        %v1092 = vpop.f32.mrb[0].mxu0
        %v1093 = vpop.f32.mrb[0].mxu0
        %v1094 = vpop.f32.mrb[0].mxu0
        %1095 = vdwg.mxu0
        %v1096 = vadd.f32 %v604, %v1091
        %v1097 = vld [vmem:[%s607] sm:$0x3]
        %v1099 = vsel %vm552, %v1037, 0
        %v1102 = vsel %vm556, %v1097, 0
        %1104 = vmatprep.subr.bf16.mxu0 0
        %1105 = vmatpush1.bf16.msra.mxu0 %v1102
        %1106 = vmatprep.subr.bf16.mxu0 0
        %1107 = vmatpush1.bf16.msra.mxu0 0
        %1108 = vmatprep.subr.bf16.mxu0 0
        %1109 = vmatpush1.bf16.msra.mxu0 0
        %1110 = vmatprep.subr.bf16.mxu0 0
        %1111 = vmatpush1.bf16.msra.mxu0 0
        %1112 = vmatprep.subr.bf16.mxu0 0
        %1113 = vmatpush1.bf16.msra.mxu0 0
        %1114 = vmatprep.subr.bf16.mxu0 0
        %1115 = vmatpush1.bf16.msra.mxu0 0
        %1116 = vmatprep.subr.bf16.mxu0 0
        %1117 = vmatpush1.bf16.msra.mxu0 0
        %1118 = vmatprep.subr.bf16.mxu0 0
        %1119 = vmatpush1.bf16.msra.mxu0 0
        %1120 = vmatprep.subr.bf16.mxu0 0
        %1121 = vmatpush1.bf16.msra.mxu0 0
        %1122 = vmatprep.subr.bf16.mxu0 0
        %1123 = vmatpush1.bf16.msra.mxu0 0
        %1124 = vmatprep.subr.bf16.mxu0 0
        %1125 = vmatpush1.bf16.msra.mxu0 0
        %1126 = vmatprep.subr.bf16.mxu0 0
        %1127 = vmatpush1.bf16.msra.mxu0 0
        %1128 = vmatprep.subr.bf16.mxu0 0
        %1129 = vmatpush1.bf16.msra.mxu0 0
        %1130 = vmatprep.subr.bf16.mxu0 0
        %1131 = vmatpush1.bf16.msra.mxu0 0
        %1132 = vmatprep.subr.bf16.mxu0 0
        %1133 = vmatpush1.bf16.msra.mxu0 0
        %1134 = vmatprep.subr.bf16.mxu0 0
        %1135 = vmatpush1.bf16.msra.mxu0 0
        %1136 = vmatprep.mubr.bf16.mxu0 0
        %1137 = vmatmul.mubr.bf16.gmra.mrb[0].mxu0 %v1099
        %v1138 = vpop.f32.mrb[0].mxu0
        %v1139 = vadd.f32 0.0, %v1138
        %v1140 = vpop.f32.mrb[0].mxu0
        %v1141 = vpop.f32.mrb[0].mxu0
        %v1142 = vpop.f32.mrb[0].mxu0
        %1143 = vdwg.mxu0
        %v1144 = vadd.f32 %v1096, %v1139
        %v1145 = vld [vmem:[%s656] sm:$0x3]
        %v1148 = vunpack.c.l.b16 %v1036
        %v1149 = vunpack.c.l.b16 %v1038
        %v1150 = vpack.c.b16 %v1149, %v1148
        %v1152 = vshrl.u32 %v1150, 16
        %v1154 = vshll.u32 %v1150, 16
        %v1156 = vrot.slane %v1154, 1
        %v1157 = vor.u32 %v1152, %v1156
        %v1159 = vsel %vm552, %v1157, 0
        %v1162 = vsel %vm556, %v1145, 0
        %1164 = vmatprep.subr.bf16.mxu0 0
        %1165 = vmatpush1.bf16.msra.mxu0 %v1162
        %1166 = vmatprep.subr.bf16.mxu0 0
        %1167 = vmatpush1.bf16.msra.mxu0 0
        %1168 = vmatprep.subr.bf16.mxu0 0
        %1169 = vmatpush1.bf16.msra.mxu0 0
        %1170 = vmatprep.subr.bf16.mxu0 0
        %1171 = vmatpush1.bf16.msra.mxu0 0
        %1172 = vmatprep.subr.bf16.mxu0 0
        %1173 = vmatpush1.bf16.msra.mxu0 0
        %1174 = vmatprep.subr.bf16.mxu0 0
        %1175 = vmatpush1.bf16.msra.mxu0 0
        %1176 = vmatprep.subr.bf16.mxu0 0
        %1177 = vmatpush1.bf16.msra.mxu0 0
        %1178 = vmatprep.subr.bf16.mxu0 0
        %1179 = vmatpush1.bf16.msra.mxu0 0
        %1180 = vmatprep.subr.bf16.mxu0 0
        %1181 = vmatpush1.bf16.msra.mxu0 0
        %1182 = vmatprep.subr.bf16.mxu0 0
        %1183 = vmatpush1.bf16.msra.mxu0 0
        %1184 = vmatprep.subr.bf16.mxu0 0
        %1185 = vmatpush1.bf16.msra.mxu0 0
        %1186 = vmatprep.subr.bf16.mxu0 0
        %1187 = vmatpush1.bf16.msra.mxu0 0
        %1188 = vmatprep.subr.bf16.mxu0 0
        %1189 = vmatpush1.bf16.msra.mxu0 0
        %1190 = vmatprep.subr.bf16.mxu0 0
        %1191 = vmatpush1.bf16.msra.mxu0 0
        %1192 = vmatprep.subr.bf16.mxu0 0
        %1193 = vmatpush1.bf16.msra.mxu0 0
        %1194 = vmatprep.subr.bf16.mxu0 0
        %1195 = vmatpush1.bf16.msra.mxu0 0
        %1196 = vmatprep.mubr.bf16.mxu0 0
        %1197 = vmatmul.mubr.bf16.gmra.mrb[0].mxu0 %v1159
        %v1198 = vpop.f32.mrb[0].mxu0
        %v1199 = vadd.f32 0.0, %v1198
        %v1200 = vpop.f32.mrb[0].mxu0
        %v1201 = vpop.f32.mrb[0].mxu0
        %v1202 = vpop.f32.mrb[0].mxu0
        %1203 = vdwg.mxu0
        %v1204 = vadd.f32 %v1144, %v1199
        %v1205 = vld [vmem:[%s717] sm:$0x3]
        %v1207 = vsel %vm552, %v1040, 0
        %v1210 = vsel %vm556, %v1205, 0
        %1212 = vmatprep.subr.bf16.mxu0 0
        %1213 = vmatpush1.bf16.msra.mxu0 %v1210
        %1214 = vmatprep.subr.bf16.mxu0 0
        %1215 = vmatpush1.bf16.msra.mxu0 0
        %1216 = vmatprep.subr.bf16.mxu0 0
        %1217 = vmatpush1.bf16.msra.mxu0 0
        %1218 = vmatprep.subr.bf16.mxu0 0
        %1219 = vmatpush1.bf16.msra.mxu0 0
        %1220 = vmatprep.subr.bf16.mxu0 0
        %1221 = vmatpush1.bf16.msra.mxu0 0
        %1222 = vmatprep.subr.bf16.mxu0 0
        %1223 = vmatpush1.bf16.msra.mxu0 0
        %1224 = vmatprep.subr.bf16.mxu0 0
        %1225 = vmatpush1.bf16.msra.mxu0 0
        %1226 = vmatprep.subr.bf16.mxu0 0
        %1227 = vmatpush1.bf16.msra.mxu0 0
        %1228 = vmatprep.subr.bf16.mxu0 0
        %1229 = vmatpush1.bf16.msra.mxu0 0
        %1230 = vmatprep.subr.bf16.mxu0 0
        %1231 = vmatpush1.bf16.msra.mxu0 0
        %1232 = vmatprep.subr.bf16.mxu0 0
        %1233 = vmatpush1.bf16.msra.mxu0 0
        %1234 = vmatprep.subr.bf16.mxu0 0
        %1235 = vmatpush1.bf16.msra.mxu0 0
        %1236 = vmatprep.subr.bf16.mxu0 0
        %1237 = vmatpush1.bf16.msra.mxu0 0
        %1238 = vmatprep.subr.bf16.mxu0 0
        %1239 = vmatpush1.bf16.msra.mxu0 0
        %1240 = vmatprep.subr.bf16.mxu0 0
        %1241 = vmatpush1.bf16.msra.mxu0 0
        %1242 = vmatprep.subr.bf16.mxu0 0
        %1243 = vmatpush1.bf16.msra.mxu0 0
        %1244 = vmatprep.mubr.bf16.mxu0 0
        %1245 = vmatmul.mubr.bf16.gmra.mrb[0].mxu0 %v1207
        %v1246 = vpop.f32.mrb[0].mxu0
        %v1247 = vadd.f32 0.0, %v1246
        %v1248 = vpop.f32.mrb[0].mxu0
        %v1249 = vpop.f32.mrb[0].mxu0
        %v1250 = vpop.f32.mrb[0].mxu0
        %1251 = vdwg.mxu0
        %v1252 = vadd.f32 %v1204, %v1247
        %v1253 = vld [vmem:[%s766] sm:$0x3]
        %v1255 = vsel %vm552, %v1042, 0
        %v1258 = vsel %vm556, %v1253, 0
        %1260 = vmatprep.subr.bf16.mxu0 0
        %1261 = vmatpush1.bf16.msra.mxu0 %v1258
        %1262 = vmatprep.subr.bf16.mxu0 0
        %1263 = vmatpush1.bf16.msra.mxu0 0
        %1264 = vmatprep.subr.bf16.mxu0 0
        %1265 = vmatpush1.bf16.msra.mxu0 0
        %1266 = vmatprep.subr.bf16.mxu0 0
        %1267 = vmatpush1.bf16.msra.mxu0 0
        %1268 = vmatprep.subr.bf16.mxu0 0
        %1269 = vmatpush1.bf16.msra.mxu0 0
        %1270 = vmatprep.subr.bf16.mxu0 0
        %1271 = vmatpush1.bf16.msra.mxu0 0
        %1272 = vmatprep.subr.bf16.mxu0 0
        %1273 = vmatpush1.bf16.msra.mxu0 0
        %1274 = vmatprep.subr.bf16.mxu0 0
        %1275 = vmatpush1.bf16.msra.mxu0 0
        %1276 = vmatprep.subr.bf16.mxu0 0
        %1277 = vmatpush1.bf16.msra.mxu0 0
        %1278 = vmatprep.subr.bf16.mxu0 0
        %1279 = vmatpush1.bf16.msra.mxu0 0
        %1280 = vmatprep.subr.bf16.mxu0 0
        %1281 = vmatpush1.bf16.msra.mxu0 0
        %1282 = vmatprep.subr.bf16.mxu0 0
        %1283 = vmatpush1.bf16.msra.mxu0 0
        %1284 = vmatprep.subr.bf16.mxu0 0
        %1285 = vmatpush1.bf16.msra.mxu0 0
        %1286 = vmatprep.subr.bf16.mxu0 0
        %1287 = vmatpush1.bf16.msra.mxu0 0
        %1288 = vmatprep.subr.bf16.mxu0 0
        %1289 = vmatpush1.bf16.msra.mxu0 0
        %1290 = vmatprep.subr.bf16.mxu0 0
        %1291 = vmatpush1.bf16.msra.mxu0 0
        %1292 = vmatprep.mubr.bf16.mxu0 0
        %1293 = vmatmul.mubr.bf16.gmra.mrb[0].mxu0 %v1255
        %v1294 = vpop.f32.mrb[0].mxu0
        %v1295 = vadd.f32 0.0, %v1294
        %v1296 = vpop.f32.mrb[0].mxu0
        %v1297 = vpop.f32.mrb[0].mxu0
        %v1298 = vpop.f32.mrb[0].mxu0
        %1299 = vdwg.mxu0
        %v1300 = vadd.f32 %v1252, %v1295
        %v1301 = vld [vmem:[%s815] sm:$0x3]
        %v1304 = vunpack.c.l.b16 %v1040
        %v1305 = vunpack.c.l.b16 %v1043
        %v1306 = vpack.c.b16 %v1305, %v1304
        %v1308 = vshrl.u32 %v1306, 16
        %v1310 = vshll.u32 %v1306, 16
        %v1312 = vrot.slane %v1310, 1
        %v1313 = vor.u32 %v1308, %v1312
        %v1315 = vsel %vm552, %v1313, 0
        %v1318 = vsel %vm556, %v1301, 0
        %1320 = vmatprep.subr.bf16.mxu0 0
        %1321 = vmatpush1.bf16.msra.mxu0 %v1318
        %1322 = vmatprep.subr.bf16.mxu0 0
        %1323 = vmatpush1.bf16.msra.mxu0 0
        %1324 = vmatprep.subr.bf16.mxu0 0
        %1325 = vmatpush1.bf16.msra.mxu0 0
        %1326 = vmatprep.subr.bf16.mxu0 0
        %1327 = vmatpush1.bf16.msra.mxu0 0
        %1328 = vmatprep.subr.bf16.mxu0 0
        %1329 = vmatpush1.bf16.msra.mxu0 0
        %1330 = vmatprep.subr.bf16.mxu0 0
        %1331 = vmatpush1.bf16.msra.mxu0 0
        %1332 = vmatprep.subr.bf16.mxu0 0
        %1333 = vmatpush1.bf16.msra.mxu0 0
        %1334 = vmatprep.subr.bf16.mxu0 0
        %1335 = vmatpush1.bf16.msra.mxu0 0
        %1336 = vmatprep.subr.bf16.mxu0 0
        %1337 = vmatpush1.bf16.msra.mxu0 0
        %1338 = vmatprep.subr.bf16.mxu0 0
        %1339 = vmatpush1.bf16.msra.mxu0 0
        %1340 = vmatprep.subr.bf16.mxu0 0
        %1341 = vmatpush1.bf16.msra.mxu0 0
        %1342 = vmatprep.subr.bf16.mxu0 0
        %1343 = vmatpush1.bf16.msra.mxu0 0
        %1344 = vmatprep.subr.bf16.mxu0 0
        %1345 = vmatpush1.bf16.msra.mxu0 0
        %1346 = vmatprep.subr.bf16.mxu0 0
        %1347 = vmatpush1.bf16.msra.mxu0 0
        %1348 = vmatprep.subr.bf16.mxu0 0
        %1349 = vmatpush1.bf16.msra.mxu0 0
        %1350 = vmatprep.subr.bf16.mxu0 0
        %1351 = vmatpush1.bf16.msra.mxu0 0
        %1352 = vmatprep.mubr.bf16.mxu0 0
        %1353 = vmatmul.mubr.bf16.gmra.mrb[0].mxu0 %v1315
        %v1354 = vpop.f32.mrb[0].mxu0
        %v1355 = vadd.f32 0.0, %v1354
        %v1356 = vpop.f32.mrb[0].mxu0
        %v1357 = vpop.f32.mrb[0].mxu0
        %v1358 = vpop.f32.mrb[0].mxu0
        %1359 = vdwg.mxu0
        %v1360 = vadd.f32 %v1300, %v1355
        %v1361 = vld [vmem:[%s876] sm:$0x3]
        %v1363 = vsel %vm552, %v1045, 0
        %v1366 = vsel %vm556, %v1361, 0
        %1368 = vmatprep.subr.bf16.mxu0 0
        %1369 = vmatpush1.bf16.msra.mxu0 %v1366
        %1370 = vmatprep.subr.bf16.mxu0 0
        %1371 = vmatpush1.bf16.msra.mxu0 0
        %1372 = vmatprep.subr.bf16.mxu0 0
        %1373 = vmatpush1.bf16.msra.mxu0 0
        %1374 = vmatprep.subr.bf16.mxu0 0
        %1375 = vmatpush1.bf16.msra.mxu0 0
        %1376 = vmatprep.subr.bf16.mxu0 0
        %1377 = vmatpush1.bf16.msra.mxu0 0
        %1378 = vmatprep.subr.bf16.mxu0 0
        %1379 = vmatpush1.bf16.msra.mxu0 0
        %1380 = vmatprep.subr.bf16.mxu0 0
        %1381 = vmatpush1.bf16.msra.mxu0 0
        %1382 = vmatprep.subr.bf16.mxu0 0
        %1383 = vmatpush1.bf16.msra.mxu0 0
        %1384 = vmatprep.subr.bf16.mxu0 0
        %1385 = vmatpush1.bf16.msra.mxu0 0
        %1386 = vmatprep.subr.bf16.mxu0 0
        %1387 = vmatpush1.bf16.msra.mxu0 0
        %1388 = vmatprep.subr.bf16.mxu0 0
        %1389 = vmatpush1.bf16.msra.mxu0 0
        %1390 = vmatprep.subr.bf16.mxu0 0
        %1391 = vmatpush1.bf16.msra.mxu0 0
        %1392 = vmatprep.subr.bf16.mxu0 0
        %1393 = vmatpush1.bf16.msra.mxu0 0
        %1394 = vmatprep.subr.bf16.mxu0 0
        %1395 = vmatpush1.bf16.msra.mxu0 0
        %1396 = vmatprep.subr.bf16.mxu0 0
        %1397 = vmatpush1.bf16.msra.mxu0 0
        %1398 = vmatprep.subr.bf16.mxu0 0
        %1399 = vmatpush1.bf16.msra.mxu0 0
        %1400 = vmatprep.mubr.bf16.mxu0 0
        %1401 = vmatmul.mubr.bf16.gmra.mrb[0].mxu0 %v1363
        %v1402 = vpop.f32.mrb[0].mxu0
        %v1403 = vadd.f32 0.0, %v1402
        %v1404 = vpop.f32.mrb[0].mxu0
        %v1405 = vpop.f32.mrb[0].mxu0
        %v1406 = vpop.f32.mrb[0].mxu0
        %1407 = vdwg.mxu0
        %v1408 = vadd.f32 %v1360, %v1403
        %v1409 = vld [vmem:[%s925] sm:$0x3]
        %v1411 = vsel %vm552, %v1047, 0
        %v1414 = vsel %vm556, %v1409, 0
        %1416 = vmatprep.subr.bf16.mxu0 0
        %1417 = vmatpush1.bf16.msra.mxu0 %v1414
        %1418 = vmatprep.subr.bf16.mxu0 0
        %1419 = vmatpush1.bf16.msra.mxu0 0
        %1420 = vmatprep.subr.bf16.mxu0 0
        %1421 = vmatpush1.bf16.msra.mxu0 0
        %1422 = vmatprep.subr.bf16.mxu0 0
        %1423 = vmatpush1.bf16.msra.mxu0 0
        %1424 = vmatprep.subr.bf16.mxu0 0
        %1425 = vmatpush1.bf16.msra.mxu0 0
        %1426 = vmatprep.subr.bf16.mxu0 0
        %1427 = vmatpush1.bf16.msra.mxu0 0
        %1428 = vmatprep.subr.bf16.mxu0 0
        %1429 = vmatpush1.bf16.msra.mxu0 0
        %1430 = vmatprep.subr.bf16.mxu0 0
        %1431 = vmatpush1.bf16.msra.mxu0 0
        %1432 = vmatprep.subr.bf16.mxu0 0
        %1433 = vmatpush1.bf16.msra.mxu0 0
        %1434 = vmatprep.subr.bf16.mxu0 0
        %1435 = vmatpush1.bf16.msra.mxu0 0
        %1436 = vmatprep.subr.bf16.mxu0 0
        %1437 = vmatpush1.bf16.msra.mxu0 0
        %1438 = vmatprep.subr.bf16.mxu0 0
        %1439 = vmatpush1.bf16.msra.mxu0 0
        %1440 = vmatprep.subr.bf16.mxu0 0
        %1441 = vmatpush1.bf16.msra.mxu0 0
        %1442 = vmatprep.subr.bf16.mxu0 0
        %1443 = vmatpush1.bf16.msra.mxu0 0
        %1444 = vmatprep.subr.bf16.mxu0 0
        %1445 = vmatpush1.bf16.msra.mxu0 0
        %1446 = vmatprep.subr.bf16.mxu0 0
        %1447 = vmatpush1.bf16.msra.mxu0 0
        %1448 = vmatprep.mubr.bf16.mxu0 0
        %1449 = vmatmul.mubr.bf16.gmra.mrb[0].mxu0 %v1411
        %v1450 = vpop.f32.mrb[0].mxu0
        %v1451 = vadd.f32 0.0, %v1450
        %v1452 = vpop.f32.mrb[0].mxu0
        %v1453 = vpop.f32.mrb[0].mxu0
        %v1454 = vpop.f32.mrb[0].mxu0
        %1455 = vdwg.mxu0
        %v1456 = vadd.f32 %v1408, %v1451
        %v1457 = vld [vmem:[%s974] sm:$0x3]
        %v1460 = vunpack.c.l.b16 %v1045
        %v1461 = vunpack.c.l.b16 %v1048
        %v1462 = vpack.c.b16 %v1461, %v1460
        %v1464 = vshrl.u32 %v1462, 16
        %v1466 = vshll.u32 %v1462, 16
        %v1468 = vrot.slane %v1466, 1
        %v1469 = vor.u32 %v1464, %v1468
        %v1471 = vsel %vm552, %v1469, 0
        %v1474 = vsel %vm556, %v1457, 0
        %1476 = vmatprep.subr.bf16.mxu0 0
        %1477 = vmatpush1.bf16.msra.mxu0 %v1474
        %1478 = vmatprep.subr.bf16.mxu0 0
        %1479 = vmatpush1.bf16.msra.mxu0 0
        %1480 = vmatprep.subr.bf16.mxu0 0
        %1481 = vmatpush1.bf16.msra.mxu0 0
        %1482 = vmatprep.subr.bf16.mxu0 0
        %1483 = vmatpush1.bf16.msra.mxu0 0
        %1484 = vmatprep.subr.bf16.mxu0 0
        %1485 = vmatpush1.bf16.msra.mxu0 0
        %1486 = vmatprep.subr.bf16.mxu0 0
        %1487 = vmatpush1.bf16.msra.mxu0 0
        %1488 = vmatprep.subr.bf16.mxu0 0
        %1489 = vmatpush1.bf16.msra.mxu0 0
        %1490 = vmatprep.subr.bf16.mxu0 0
        %1491 = vmatpush1.bf16.msra.mxu0 0
        %1492 = vmatprep.subr.bf16.mxu0 0
        %1493 = vmatpush1.bf16.msra.mxu0 0
        %1494 = vmatprep.subr.bf16.mxu0 0
        %1495 = vmatpush1.bf16.msra.mxu0 0
        %1496 = vmatprep.subr.bf16.mxu0 0
        %1497 = vmatpush1.bf16.msra.mxu0 0
        %1498 = vmatprep.subr.bf16.mxu0 0
        %1499 = vmatpush1.bf16.msra.mxu0 0
        %1500 = vmatprep.subr.bf16.mxu0 0
        %1501 = vmatpush1.bf16.msra.mxu0 0
        %1502 = vmatprep.subr.bf16.mxu0 0
        %1503 = vmatpush1.bf16.msra.mxu0 0
        %1504 = vmatprep.subr.bf16.mxu0 0
        %1505 = vmatpush1.bf16.msra.mxu0 0
        %1506 = vmatprep.subr.bf16.mxu0 0
        %1507 = vmatpush1.bf16.msra.mxu0 0
        %1508 = vmatprep.mubr.bf16.mxu0 0
        %1509 = vmatmul.mubr.bf16.gmra.mrb[0].mxu0 %v1471
        %v1510 = vpop.f32.mrb[0].mxu0
        %v1511 = vadd.f32 0.0, %v1510
        %v1512 = vpop.f32.mrb[0].mxu0
        %v1513 = vpop.f32.mrb[0].mxu0
        %v1514 = vpop.f32.mrb[0].mxu0
        %1515 = vdwg.mxu0
        %v1516 = vadd.f32 %v1456, %v1511
        %s1517 = scalar_lea.vmem %s469, 8 [#allocation2]
        %1518 = vst [vmem:[%s1517] sm:$0xff] %v1516
        %v1519 = vld [vmem:[%s1044] sm:$0xf]
        %v1520 = vld [vmem:[%s1046] sm:$0xf]
        %v1521 = vld [vmem:[%s1044 + $0x4] sm:$0x1]
        %s1522 = scalar_lea.vmem %s500, 16
        %v1523 = vld [vmem:[%s1522] sm:$0xf]
        %s1524 = scalar_lea.vmem %s510, 8
        %v1525 = vld [vmem:[%s1524] sm:$0xf]
        %v1526 = vld [vmem:[%s1522 + $0x4] sm:$0x1]
        %s1527 = scalar_lea.vmem %s479, 24
        %v1528 = vld [vmem:[%s1527] sm:$0xf]
        %s1529 = scalar_lea.vmem %s489, 12
        %v1530 = vld [vmem:[%s1529] sm:$0xf]
        %v1531 = vld [vmem:[%s1527 + $0x4] sm:$0x1]
        %v1532 = vld [vmem:[%s6] sm:$0x3]
        %v1534 = vsel %vm552, %v1519, 0
        %v1537 = vsel %vm556, %v1532, 0
        %1539 = vmatprep.subr.bf16.mxu0 0
        %1540 = vmatpush1.bf16.msra.mxu0 %v1537
        %1541 = vmatprep.subr.bf16.mxu0 0
        %1542 = vmatpush1.bf16.msra.mxu0 0
        %1543 = vmatprep.subr.bf16.mxu0 0
        %1544 = vmatpush1.bf16.msra.mxu0 0
        %1545 = vmatprep.subr.bf16.mxu0 0
        %1546 = vmatpush1.bf16.msra.mxu0 0
        %1547 = vmatprep.subr.bf16.mxu0 0
        %1548 = vmatpush1.bf16.msra.mxu0 0
        %1549 = vmatprep.subr.bf16.mxu0 0
        %1550 = vmatpush1.bf16.msra.mxu0 0
        %1551 = vmatprep.subr.bf16.mxu0 0
        %1552 = vmatpush1.bf16.msra.mxu0 0
        %1553 = vmatprep.subr.bf16.mxu0 0
        %1554 = vmatpush1.bf16.msra.mxu0 0
        %1555 = vmatprep.subr.bf16.mxu0 0
        %1556 = vmatpush1.bf16.msra.mxu0 0
        %1557 = vmatprep.subr.bf16.mxu0 0
        %1558 = vmatpush1.bf16.msra.mxu0 0
        %1559 = vmatprep.subr.bf16.mxu0 0
        %1560 = vmatpush1.bf16.msra.mxu0 0
        %1561 = vmatprep.subr.bf16.mxu0 0
        %1562 = vmatpush1.bf16.msra.mxu0 0
        %1563 = vmatprep.subr.bf16.mxu0 0
        %1564 = vmatpush1.bf16.msra.mxu0 0
        %1565 = vmatprep.subr.bf16.mxu0 0
        %1566 = vmatpush1.bf16.msra.mxu0 0
        %1567 = vmatprep.subr.bf16.mxu0 0
        %1568 = vmatpush1.bf16.msra.mxu0 0
        %1569 = vmatprep.subr.bf16.mxu0 0
        %1570 = vmatpush1.bf16.msra.mxu0 0
        %1571 = vmatprep.mubr.bf16.mxu0 0
        %1572 = vmatmul.mubr.bf16.gmra.mrb[0].mxu0 %v1534
        %v1573 = vpop.f32.mrb[0].mxu0
        %v1574 = vadd.f32 0.0, %v1573
        %v1575 = vpop.f32.mrb[0].mxu0
        %v1576 = vpop.f32.mrb[0].mxu0
        %v1577 = vpop.f32.mrb[0].mxu0
        %1578 = vdwg.mxu0
        %v1579 = vadd.f32 %v604, %v1574
        %v1580 = vld [vmem:[%s607] sm:$0x3]
        %v1582 = vsel %vm552, %v1520, 0
        %v1585 = vsel %vm556, %v1580, 0
        %1587 = vmatprep.subr.bf16.mxu0 0
        %1588 = vmatpush1.bf16.msra.mxu0 %v1585
        %1589 = vmatprep.subr.bf16.mxu0 0
        %1590 = vmatpush1.bf16.msra.mxu0 0
        %1591 = vmatprep.subr.bf16.mxu0 0
        %1592 = vmatpush1.bf16.msra.mxu0 0
        %1593 = vmatprep.subr.bf16.mxu0 0
        %1594 = vmatpush1.bf16.msra.mxu0 0
        %1595 = vmatprep.subr.bf16.mxu0 0
        %1596 = vmatpush1.bf16.msra.mxu0 0
        %1597 = vmatprep.subr.bf16.mxu0 0
        %1598 = vmatpush1.bf16.msra.mxu0 0
        %1599 = vmatprep.subr.bf16.mxu0 0
        %1600 = vmatpush1.bf16.msra.mxu0 0
        %1601 = vmatprep.subr.bf16.mxu0 0
        %1602 = vmatpush1.bf16.msra.mxu0 0
        %1603 = vmatprep.subr.bf16.mxu0 0
        %1604 = vmatpush1.bf16.msra.mxu0 0
        %1605 = vmatprep.subr.bf16.mxu0 0
        %1606 = vmatpush1.bf16.msra.mxu0 0
        %1607 = vmatprep.subr.bf16.mxu0 0
        %1608 = vmatpush1.bf16.msra.mxu0 0
        %1609 = vmatprep.subr.bf16.mxu0 0
        %1610 = vmatpush1.bf16.msra.mxu0 0
        %1611 = vmatprep.subr.bf16.mxu0 0
        %1612 = vmatpush1.bf16.msra.mxu0 0
        %1613 = vmatprep.subr.bf16.mxu0 0
        %1614 = vmatpush1.bf16.msra.mxu0 0
        %1615 = vmatprep.subr.bf16.mxu0 0
        %1616 = vmatpush1.bf16.msra.mxu0 0
        %1617 = vmatprep.subr.bf16.mxu0 0
        %1618 = vmatpush1.bf16.msra.mxu0 0
        %1619 = vmatprep.mubr.bf16.mxu0 0
        %1620 = vmatmul.mubr.bf16.gmra.mrb[0].mxu0 %v1582
        %v1621 = vpop.f32.mrb[0].mxu0
        %v1622 = vadd.f32 0.0, %v1621
        %v1623 = vpop.f32.mrb[0].mxu0
        %v1624 = vpop.f32.mrb[0].mxu0
        %v1625 = vpop.f32.mrb[0].mxu0
        %1626 = vdwg.mxu0
        %v1627 = vadd.f32 %v1579, %v1622
        %v1628 = vld [vmem:[%s656] sm:$0x3]
        %v1631 = vunpack.c.l.b16 %v1519
        %v1632 = vunpack.c.l.b16 %v1521
        %v1633 = vpack.c.b16 %v1632, %v1631
        %v1635 = vshrl.u32 %v1633, 16
        %v1637 = vshll.u32 %v1633, 16
        %v1639 = vrot.slane %v1637, 1
        %v1640 = vor.u32 %v1635, %v1639
        %v1642 = vsel %vm552, %v1640, 0
        %v1645 = vsel %vm556, %v1628, 0
        %1647 = vmatprep.subr.bf16.mxu0 0
        %1648 = vmatpush1.bf16.msra.mxu0 %v1645
        %1649 = vmatprep.subr.bf16.mxu0 0
        %1650 = vmatpush1.bf16.msra.mxu0 0
        %1651 = vmatprep.subr.bf16.mxu0 0
        %1652 = vmatpush1.bf16.msra.mxu0 0
        %1653 = vmatprep.subr.bf16.mxu0 0
        %1654 = vmatpush1.bf16.msra.mxu0 0
        %1655 = vmatprep.subr.bf16.mxu0 0
        %1656 = vmatpush1.bf16.msra.mxu0 0
        %1657 = vmatprep.subr.bf16.mxu0 0
        %1658 = vmatpush1.bf16.msra.mxu0 0
        %1659 = vmatprep.subr.bf16.mxu0 0
        %1660 = vmatpush1.bf16.msra.mxu0 0
        %1661 = vmatprep.subr.bf16.mxu0 0
        %1662 = vmatpush1.bf16.msra.mxu0 0
        %1663 = vmatprep.subr.bf16.mxu0 0
        %1664 = vmatpush1.bf16.msra.mxu0 0
        %1665 = vmatprep.subr.bf16.mxu0 0
        %1666 = vmatpush1.bf16.msra.mxu0 0
        %1667 = vmatprep.subr.bf16.mxu0 0
        %1668 = vmatpush1.bf16.msra.mxu0 0
        %1669 = vmatprep.subr.bf16.mxu0 0
        %1670 = vmatpush1.bf16.msra.mxu0 0
        %1671 = vmatprep.subr.bf16.mxu0 0
        %1672 = vmatpush1.bf16.msra.mxu0 0
        %1673 = vmatprep.subr.bf16.mxu0 0
        %1674 = vmatpush1.bf16.msra.mxu0 0
        %1675 = vmatprep.subr.bf16.mxu0 0
        %1676 = vmatpush1.bf16.msra.mxu0 0
        %1677 = vmatprep.subr.bf16.mxu0 0
        %1678 = vmatpush1.bf16.msra.mxu0 0
        %1679 = vmatprep.mubr.bf16.mxu0 0
        %1680 = vmatmul.mubr.bf16.gmra.mrb[0].mxu0 %v1642
        %v1681 = vpop.f32.mrb[0].mxu0
        %v1682 = vadd.f32 0.0, %v1681
        %v1683 = vpop.f32.mrb[0].mxu0
        %v1684 = vpop.f32.mrb[0].mxu0
        %v1685 = vpop.f32.mrb[0].mxu0
        %1686 = vdwg.mxu0
        %v1687 = vadd.f32 %v1627, %v1682
        %v1688 = vld [vmem:[%s717] sm:$0x3]
        %v1690 = vsel %vm552, %v1523, 0
        %v1693 = vsel %vm556, %v1688, 0
        %1695 = vmatprep.subr.bf16.mxu0 0
        %1696 = vmatpush1.bf16.msra.mxu0 %v1693
        %1697 = vmatprep.subr.bf16.mxu0 0
        %1698 = vmatpush1.bf16.msra.mxu0 0
        %1699 = vmatprep.subr.bf16.mxu0 0
        %1700 = vmatpush1.bf16.msra.mxu0 0
        %1701 = vmatprep.subr.bf16.mxu0 0
        %1702 = vmatpush1.bf16.msra.mxu0 0
        %1703 = vmatprep.subr.bf16.mxu0 0
        %1704 = vmatpush1.bf16.msra.mxu0 0
        %1705 = vmatprep.subr.bf16.mxu0 0
        %1706 = vmatpush1.bf16.msra.mxu0 0
        %1707 = vmatprep.subr.bf16.mxu0 0
        %1708 = vmatpush1.bf16.msra.mxu0 0
        %1709 = vmatprep.subr.bf16.mxu0 0
        %1710 = vmatpush1.bf16.msra.mxu0 0
        %1711 = vmatprep.subr.bf16.mxu0 0
        %1712 = vmatpush1.bf16.msra.mxu0 0
        %1713 = vmatprep.subr.bf16.mxu0 0
        %1714 = vmatpush1.bf16.msra.mxu0 0
        %1715 = vmatprep.subr.bf16.mxu0 0
        %1716 = vmatpush1.bf16.msra.mxu0 0
        %1717 = vmatprep.subr.bf16.mxu0 0
        %1718 = vmatpush1.bf16.msra.mxu0 0
        %1719 = vmatprep.subr.bf16.mxu0 0
        %1720 = vmatpush1.bf16.msra.mxu0 0
        %1721 = vmatprep.subr.bf16.mxu0 0
        %1722 = vmatpush1.bf16.msra.mxu0 0
        %1723 = vmatprep.subr.bf16.mxu0 0
        %1724 = vmatpush1.bf16.msra.mxu0 0
        %1725 = vmatprep.subr.bf16.mxu0 0
        %1726 = vmatpush1.bf16.msra.mxu0 0
        %1727 = vmatprep.mubr.bf16.mxu0 0
        %1728 = vmatmul.mubr.bf16.gmra.mrb[0].mxu0 %v1690
        %v1729 = vpop.f32.mrb[0].mxu0
        %v1730 = vadd.f32 0.0, %v1729
        %v1731 = vpop.f32.mrb[0].mxu0
        %v1732 = vpop.f32.mrb[0].mxu0
        %v1733 = vpop.f32.mrb[0].mxu0
        %1734 = vdwg.mxu0
        %v1735 = vadd.f32 %v1687, %v1730
        %v1736 = vld [vmem:[%s766] sm:$0x3]
        %v1738 = vsel %vm552, %v1525, 0
        %v1741 = vsel %vm556, %v1736, 0
        %1743 = vmatprep.subr.bf16.mxu0 0
        %1744 = vmatpush1.bf16.msra.mxu0 %v1741
        %1745 = vmatprep.subr.bf16.mxu0 0
        %1746 = vmatpush1.bf16.msra.mxu0 0
        %1747 = vmatprep.subr.bf16.mxu0 0
        %1748 = vmatpush1.bf16.msra.mxu0 0
        %1749 = vmatprep.subr.bf16.mxu0 0
        %1750 = vmatpush1.bf16.msra.mxu0 0
        %1751 = vmatprep.subr.bf16.mxu0 0
        %1752 = vmatpush1.bf16.msra.mxu0 0
        %1753 = vmatprep.subr.bf16.mxu0 0
        %1754 = vmatpush1.bf16.msra.mxu0 0
        %1755 = vmatprep.subr.bf16.mxu0 0
        %1756 = vmatpush1.bf16.msra.mxu0 0
        %1757 = vmatprep.subr.bf16.mxu0 0
        %1758 = vmatpush1.bf16.msra.mxu0 0
        %1759 = vmatprep.subr.bf16.mxu0 0
        %1760 = vmatpush1.bf16.msra.mxu0 0
        %1761 = vmatprep.subr.bf16.mxu0 0
        %1762 = vmatpush1.bf16.msra.mxu0 0
        %1763 = vmatprep.subr.bf16.mxu0 0
        %1764 = vmatpush1.bf16.msra.mxu0 0
        %1765 = vmatprep.subr.bf16.mxu0 0
        %1766 = vmatpush1.bf16.msra.mxu0 0
        %1767 = vmatprep.subr.bf16.mxu0 0
        %1768 = vmatpush1.bf16.msra.mxu0 0
        %1769 = vmatprep.subr.bf16.mxu0 0
        %1770 = vmatpush1.bf16.msra.mxu0 0
        %1771 = vmatprep.subr.bf16.mxu0 0
        %1772 = vmatpush1.bf16.msra.mxu0 0
        %1773 = vmatprep.subr.bf16.mxu0 0
        %1774 = vmatpush1.bf16.msra.mxu0 0
        %1775 = vmatprep.mubr.bf16.mxu0 0
        %1776 = vmatmul.mubr.bf16.gmra.mrb[0].mxu0 %v1738
        %v1777 = vpop.f32.mrb[0].mxu0
        %v1778 = vadd.f32 0.0, %v1777
        %v1779 = vpop.f32.mrb[0].mxu0
        %v1780 = vpop.f32.mrb[0].mxu0
        %v1781 = vpop.f32.mrb[0].mxu0
        %1782 = vdwg.mxu0
        %v1783 = vadd.f32 %v1735, %v1778
        %v1784 = vld [vmem:[%s815] sm:$0x3]
        %v1787 = vunpack.c.l.b16 %v1523
        %v1788 = vunpack.c.l.b16 %v1526
        %v1789 = vpack.c.b16 %v1788, %v1787
        %v1791 = vshrl.u32 %v1789, 16
        %v1793 = vshll.u32 %v1789, 16
        %v1795 = vrot.slane %v1793, 1
        %v1796 = vor.u32 %v1791, %v1795
        %v1798 = vsel %vm552, %v1796, 0
        %v1801 = vsel %vm556, %v1784, 0
        %1803 = vmatprep.subr.bf16.mxu0 0
        %1804 = vmatpush1.bf16.msra.mxu0 %v1801
        %1805 = vmatprep.subr.bf16.mxu0 0
        %1806 = vmatpush1.bf16.msra.mxu0 0
        %1807 = vmatprep.subr.bf16.mxu0 0
        %1808 = vmatpush1.bf16.msra.mxu0 0
        %1809 = vmatprep.subr.bf16.mxu0 0
        %1810 = vmatpush1.bf16.msra.mxu0 0
        %1811 = vmatprep.subr.bf16.mxu0 0
        %1812 = vmatpush1.bf16.msra.mxu0 0
        %1813 = vmatprep.subr.bf16.mxu0 0
        %1814 = vmatpush1.bf16.msra.mxu0 0
        %1815 = vmatprep.subr.bf16.mxu0 0
        %1816 = vmatpush1.bf16.msra.mxu0 0
        %1817 = vmatprep.subr.bf16.mxu0 0
        %1818 = vmatpush1.bf16.msra.mxu0 0
        %1819 = vmatprep.subr.bf16.mxu0 0
        %1820 = vmatpush1.bf16.msra.mxu0 0
        %1821 = vmatprep.subr.bf16.mxu0 0
        %1822 = vmatpush1.bf16.msra.mxu0 0
        %1823 = vmatprep.subr.bf16.mxu0 0
        %1824 = vmatpush1.bf16.msra.mxu0 0
        %1825 = vmatprep.subr.bf16.mxu0 0
        %1826 = vmatpush1.bf16.msra.mxu0 0
        %1827 = vmatprep.subr.bf16.mxu0 0
        %1828 = vmatpush1.bf16.msra.mxu0 0
        %1829 = vmatprep.subr.bf16.mxu0 0
        %1830 = vmatpush1.bf16.msra.mxu0 0
        %1831 = vmatprep.subr.bf16.mxu0 0
        %1832 = vmatpush1.bf16.msra.mxu0 0
        %1833 = vmatprep.subr.bf16.mxu0 0
        %1834 = vmatpush1.bf16.msra.mxu0 0
        %1835 = vmatprep.mubr.bf16.mxu0 0
        %1836 = vmatmul.mubr.bf16.gmra.mrb[0].mxu0 %v1798
        %v1837 = vpop.f32.mrb[0].mxu0
        %v1838 = vadd.f32 0.0, %v1837
        %v1839 = vpop.f32.mrb[0].mxu0
        %v1840 = vpop.f32.mrb[0].mxu0
        %v1841 = vpop.f32.mrb[0].mxu0
        %1842 = vdwg.mxu0
        %v1843 = vadd.f32 %v1783, %v1838
        %v1844 = vld [vmem:[%s876] sm:$0x3]
        %v1846 = vsel %vm552, %v1528, 0
        %v1849 = vsel %vm556, %v1844, 0
        %1851 = vmatprep.subr.bf16.mxu0 0
        %1852 = vmatpush1.bf16.msra.mxu0 %v1849
        %1853 = vmatprep.subr.bf16.mxu0 0
        %1854 = vmatpush1.bf16.msra.mxu0 0
        %1855 = vmatprep.subr.bf16.mxu0 0
        %1856 = vmatpush1.bf16.msra.mxu0 0
        %1857 = vmatprep.subr.bf16.mxu0 0
        %1858 = vmatpush1.bf16.msra.mxu0 0
        %1859 = vmatprep.subr.bf16.mxu0 0
        %1860 = vmatpush1.bf16.msra.mxu0 0
        %1861 = vmatprep.subr.bf16.mxu0 0
        %1862 = vmatpush1.bf16.msra.mxu0 0
        %1863 = vmatprep.subr.bf16.mxu0 0
        %1864 = vmatpush1.bf16.msra.mxu0 0
        %1865 = vmatprep.subr.bf16.mxu0 0
        %1866 = vmatpush1.bf16.msra.mxu0 0
        %1867 = vmatprep.subr.bf16.mxu0 0
        %1868 = vmatpush1.bf16.msra.mxu0 0
        %1869 = vmatprep.subr.bf16.mxu0 0
        %1870 = vmatpush1.bf16.msra.mxu0 0
        %1871 = vmatprep.subr.bf16.mxu0 0
        %1872 = vmatpush1.bf16.msra.mxu0 0
        %1873 = vmatprep.subr.bf16.mxu0 0
        %1874 = vmatpush1.bf16.msra.mxu0 0
        %1875 = vmatprep.subr.bf16.mxu0 0
        %1876 = vmatpush1.bf16.msra.mxu0 0
        %1877 = vmatprep.subr.bf16.mxu0 0
        %1878 = vmatpush1.bf16.msra.mxu0 0
        %1879 = vmatprep.subr.bf16.mxu0 0
        %1880 = vmatpush1.bf16.msra.mxu0 0
        %1881 = vmatprep.subr.bf16.mxu0 0
        %1882 = vmatpush1.bf16.msra.mxu0 0
        %1883 = vmatprep.mubr.bf16.mxu0 0
        %1884 = vmatmul.mubr.bf16.gmra.mrb[0].mxu0 %v1846
        %v1885 = vpop.f32.mrb[0].mxu0
        %v1886 = vadd.f32 0.0, %v1885
        %v1887 = vpop.f32.mrb[0].mxu0
        %v1888 = vpop.f32.mrb[0].mxu0
        %v1889 = vpop.f32.mrb[0].mxu0
        %1890 = vdwg.mxu0
        %v1891 = vadd.f32 %v1843, %v1886
        %v1892 = vld [vmem:[%s925] sm:$0x3]
        %v1894 = vsel %vm552, %v1530, 0
        %v1897 = vsel %vm556, %v1892, 0
        %1899 = vmatprep.subr.bf16.mxu0 0
        %1900 = vmatpush1.bf16.msra.mxu0 %v1897
        %1901 = vmatprep.subr.bf16.mxu0 0
        %1902 = vmatpush1.bf16.msra.mxu0 0
        %1903 = vmatprep.subr.bf16.mxu0 0
        %1904 = vmatpush1.bf16.msra.mxu0 0
        %1905 = vmatprep.subr.bf16.mxu0 0
        %1906 = vmatpush1.bf16.msra.mxu0 0
        %1907 = vmatprep.subr.bf16.mxu0 0
        %1908 = vmatpush1.bf16.msra.mxu0 0
        %1909 = vmatprep.subr.bf16.mxu0 0
        %1910 = vmatpush1.bf16.msra.mxu0 0
        %1911 = vmatprep.subr.bf16.mxu0 0
        %1912 = vmatpush1.bf16.msra.mxu0 0
        %1913 = vmatprep.subr.bf16.mxu0 0
        %1914 = vmatpush1.bf16.msra.mxu0 0
        %1915 = vmatprep.subr.bf16.mxu0 0
        %1916 = vmatpush1.bf16.msra.mxu0 0
        %1917 = vmatprep.subr.bf16.mxu0 0
        %1918 = vmatpush1.bf16.msra.mxu0 0
        %1919 = vmatprep.subr.bf16.mxu0 0
        %1920 = vmatpush1.bf16.msra.mxu0 0
        %1921 = vmatprep.subr.bf16.mxu0 0
        %1922 = vmatpush1.bf16.msra.mxu0 0
        %1923 = vmatprep.subr.bf16.mxu0 0
        %1924 = vmatpush1.bf16.msra.mxu0 0
        %1925 = vmatprep.subr.bf16.mxu0 0
        %1926 = vmatpush1.bf16.msra.mxu0 0
        %1927 = vmatprep.subr.bf16.mxu0 0
        %1928 = vmatpush1.bf16.msra.mxu0 0
        %1929 = vmatprep.subr.bf16.mxu0 0
        %1930 = vmatpush1.bf16.msra.mxu0 0
        %1931 = vmatprep.mubr.bf16.mxu0 0
        %1932 = vmatmul.mubr.bf16.gmra.mrb[0].mxu0 %v1894
        %v1933 = vpop.f32.mrb[0].mxu0
        %v1934 = vadd.f32 0.0, %v1933
        %v1935 = vpop.f32.mrb[0].mxu0
        %v1936 = vpop.f32.mrb[0].mxu0
        %v1937 = vpop.f32.mrb[0].mxu0
        %1938 = vdwg.mxu0
        %v1939 = vadd.f32 %v1891, %v1934
        %v1940 = vld [vmem:[%s974] sm:$0x3]
        %v1943 = vunpack.c.l.b16 %v1528
        %v1944 = vunpack.c.l.b16 %v1531
        %v1945 = vpack.c.b16 %v1944, %v1943
        %v1947 = vshrl.u32 %v1945, 16
        %v1949 = vshll.u32 %v1945, 16
        %v1951 = vrot.slane %v1949, 1
        %v1952 = vor.u32 %v1947, %v1951
        %v1954 = vsel %vm552, %v1952, 0
        %v1957 = vsel %vm556, %v1940, 0
        %1959 = vmatprep.subr.bf16.mxu0 0
        %1960 = vmatpush1.bf16.msra.mxu0 %v1957
        %1961 = vmatprep.subr.bf16.mxu0 0
        %1962 = vmatpush1.bf16.msra.mxu0 0
        %1963 = vmatprep.subr.bf16.mxu0 0
        %1964 = vmatpush1.bf16.msra.mxu0 0
        %1965 = vmatprep.subr.bf16.mxu0 0
        %1966 = vmatpush1.bf16.msra.mxu0 0
        %1967 = vmatprep.subr.bf16.mxu0 0
        %1968 = vmatpush1.bf16.msra.mxu0 0
        %1969 = vmatprep.subr.bf16.mxu0 0
        %1970 = vmatpush1.bf16.msra.mxu0 0
        %1971 = vmatprep.subr.bf16.mxu0 0
        %1972 = vmatpush1.bf16.msra.mxu0 0
        %1973 = vmatprep.subr.bf16.mxu0 0
        %1974 = vmatpush1.bf16.msra.mxu0 0
        %1975 = vmatprep.subr.bf16.mxu0 0
        %1976 = vmatpush1.bf16.msra.mxu0 0
        %1977 = vmatprep.subr.bf16.mxu0 0
        %1978 = vmatpush1.bf16.msra.mxu0 0
        %1979 = vmatprep.subr.bf16.mxu0 0
        %1980 = vmatpush1.bf16.msra.mxu0 0
        %1981 = vmatprep.subr.bf16.mxu0 0
        %1982 = vmatpush1.bf16.msra.mxu0 0
        %1983 = vmatprep.subr.bf16.mxu0 0
        %1984 = vmatpush1.bf16.msra.mxu0 0
        %1985 = vmatprep.subr.bf16.mxu0 0
        %1986 = vmatpush1.bf16.msra.mxu0 0
        %1987 = vmatprep.subr.bf16.mxu0 0
        %1988 = vmatpush1.bf16.msra.mxu0 0
        %1989 = vmatprep.subr.bf16.mxu0 0
        %1990 = vmatpush1.bf16.msra.mxu0 0
        %1991 = vmatprep.mubr.bf16.mxu0 0
        %1992 = vmatmul.mubr.bf16.gmra.mrb[0].mxu0 %v1954
        %v1993 = vpop.f32.mrb[0].mxu0
        %v1994 = vadd.f32 0.0, %v1993
        %v1995 = vpop.f32.mrb[0].mxu0
        %v1996 = vpop.f32.mrb[0].mxu0
        %v1997 = vpop.f32.mrb[0].mxu0
        %1998 = vdwg.mxu0
        %v1999 = vadd.f32 %v1939, %v1994
        %s2000 = scalar_lea.vmem %s469, 16 [#allocation2]
        %2001 = vst [vmem:[%s2000] sm:$0xff] %v1999
        %v2002 = vld [vmem:[%s1527] sm:$0xf]
        %v2003 = vld [vmem:[%s1529] sm:$0xf]
        %v2004 = vld [vmem:[%s1527 + $0x4] sm:$0x1]
        %s2005 = scalar_lea.vmem %s500, 24
        %v2006 = vld [vmem:[%s2005] sm:$0xf]
        %s2007 = scalar_lea.vmem %s510, 12
        %v2008 = vld [vmem:[%s2007] sm:$0xf]
        %v2009 = vld [vmem:[%s2005 + $0x4] sm:$0x1]
        %s2010 = scalar_lea.vmem %s479, 32
        %v2011 = vld [vmem:[%s2010] sm:$0xf]
        %s2012 = scalar_lea.vmem %s489, 16
        %v2013 = vld [vmem:[%s2012] sm:$0xf]
        %v2014 = vld [vmem:[%s2010 + $0x4] sm:$0x1]
        %v2015 = vld [vmem:[%s6] sm:$0x3]
        %v2017 = vsel %vm552, %v2002, 0
        %v2020 = vsel %vm556, %v2015, 0
        %2022 = vmatprep.subr.bf16.mxu0 0
        %2023 = vmatpush1.bf16.msra.mxu0 %v2020
        %2024 = vmatprep.subr.bf16.mxu0 0
        %2025 = vmatpush1.bf16.msra.mxu0 0
        %2026 = vmatprep.subr.bf16.mxu0 0
        %2027 = vmatpush1.bf16.msra.mxu0 0
        %2028 = vmatprep.subr.bf16.mxu0 0
        %2029 = vmatpush1.bf16.msra.mxu0 0
        %2030 = vmatprep.subr.bf16.mxu0 0
        %2031 = vmatpush1.bf16.msra.mxu0 0
        %2032 = vmatprep.subr.bf16.mxu0 0
        %2033 = vmatpush1.bf16.msra.mxu0 0
        %2034 = vmatprep.subr.bf16.mxu0 0
        %2035 = vmatpush1.bf16.msra.mxu0 0
        %2036 = vmatprep.subr.bf16.mxu0 0
        %2037 = vmatpush1.bf16.msra.mxu0 0
        %2038 = vmatprep.subr.bf16.mxu0 0
        %2039 = vmatpush1.bf16.msra.mxu0 0
        %2040 = vmatprep.subr.bf16.mxu0 0
        %2041 = vmatpush1.bf16.msra.mxu0 0
        %2042 = vmatprep.subr.bf16.mxu0 0
        %2043 = vmatpush1.bf16.msra.mxu0 0
        %2044 = vmatprep.subr.bf16.mxu0 0
        %2045 = vmatpush1.bf16.msra.mxu0 0
        %2046 = vmatprep.subr.bf16.mxu0 0
        %2047 = vmatpush1.bf16.msra.mxu0 0
        %2048 = vmatprep.subr.bf16.mxu0 0
        %2049 = vmatpush1.bf16.msra.mxu0 0
        %2050 = vmatprep.subr.bf16.mxu0 0
        %2051 = vmatpush1.bf16.msra.mxu0 0
        %2052 = vmatprep.subr.bf16.mxu0 0
        %2053 = vmatpush1.bf16.msra.mxu0 0
        %2054 = vmatprep.mubr.bf16.mxu0 0
        %2055 = vmatmul.mubr.bf16.gmra.mrb[0].mxu0 %v2017
        %v2056 = vpop.f32.mrb[0].mxu0
        %v2057 = vadd.f32 0.0, %v2056
        %v2058 = vpop.f32.mrb[0].mxu0
        %v2059 = vpop.f32.mrb[0].mxu0
        %v2060 = vpop.f32.mrb[0].mxu0
        %2061 = vdwg.mxu0
        %v2062 = vadd.f32 %v604, %v2057
        %v2063 = vld [vmem:[%s607] sm:$0x3]
        %v2065 = vsel %vm552, %v2003, 0
        %v2068 = vsel %vm556, %v2063, 0
        %2070 = vmatprep.subr.bf16.mxu0 0
        %2071 = vmatpush1.bf16.msra.mxu0 %v2068
        %2072 = vmatprep.subr.bf16.mxu0 0
        %2073 = vmatpush1.bf16.msra.mxu0 0
        %2074 = vmatprep.subr.bf16.mxu0 0
        %2075 = vmatpush1.bf16.msra.mxu0 0
        %2076 = vmatprep.subr.bf16.mxu0 0
        %2077 = vmatpush1.bf16.msra.mxu0 0
        %2078 = vmatprep.subr.bf16.mxu0 0
        %2079 = vmatpush1.bf16.msra.mxu0 0
        %2080 = vmatprep.subr.bf16.mxu0 0
        %2081 = vmatpush1.bf16.msra.mxu0 0
        %2082 = vmatprep.subr.bf16.mxu0 0
        %2083 = vmatpush1.bf16.msra.mxu0 0
        %2084 = vmatprep.subr.bf16.mxu0 0
        %2085 = vmatpush1.bf16.msra.mxu0 0
        %2086 = vmatprep.subr.bf16.mxu0 0
        %2087 = vmatpush1.bf16.msra.mxu0 0
        %2088 = vmatprep.subr.bf16.mxu0 0
        %2089 = vmatpush1.bf16.msra.mxu0 0
        %2090 = vmatprep.subr.bf16.mxu0 0
        %2091 = vmatpush1.bf16.msra.mxu0 0
        %2092 = vmatprep.subr.bf16.mxu0 0
        %2093 = vmatpush1.bf16.msra.mxu0 0
        %2094 = vmatprep.subr.bf16.mxu0 0
        %2095 = vmatpush1.bf16.msra.mxu0 0
        %2096 = vmatprep.subr.bf16.mxu0 0
        %2097 = vmatpush1.bf16.msra.mxu0 0
        %2098 = vmatprep.subr.bf16.mxu0 0
        %2099 = vmatpush1.bf16.msra.mxu0 0
        %2100 = vmatprep.subr.bf16.mxu0 0
        %2101 = vmatpush1.bf16.msra.mxu0 0
        %2102 = vmatprep.mubr.bf16.mxu0 0
        %2103 = vmatmul.mubr.bf16.gmra.mrb[0].mxu0 %v2065
        %v2104 = vpop.f32.mrb[0].mxu0
        %v2105 = vadd.f32 0.0, %v2104
        %v2106 = vpop.f32.mrb[0].mxu0
        %v2107 = vpop.f32.mrb[0].mxu0
        %v2108 = vpop.f32.mrb[0].mxu0
        %2109 = vdwg.mxu0
        %v2110 = vadd.f32 %v2062, %v2105
        %v2111 = vld [vmem:[%s656] sm:$0x3]
        %v2114 = vunpack.c.l.b16 %v2002
        %v2115 = vunpack.c.l.b16 %v2004
        %v2116 = vpack.c.b16 %v2115, %v2114
        %v2118 = vshrl.u32 %v2116, 16
        %v2120 = vshll.u32 %v2116, 16
        %v2122 = vrot.slane %v2120, 1
        %v2123 = vor.u32 %v2118, %v2122
        %v2125 = vsel %vm552, %v2123, 0
        %v2128 = vsel %vm556, %v2111, 0
        %2130 = vmatprep.subr.bf16.mxu0 0
        %2131 = vmatpush1.bf16.msra.mxu0 %v2128
        %2132 = vmatprep.subr.bf16.mxu0 0
        %2133 = vmatpush1.bf16.msra.mxu0 0
        %2134 = vmatprep.subr.bf16.mxu0 0
        %2135 = vmatpush1.bf16.msra.mxu0 0
        %2136 = vmatprep.subr.bf16.mxu0 0
        %2137 = vmatpush1.bf16.msra.mxu0 0
        %2138 = vmatprep.subr.bf16.mxu0 0
        %2139 = vmatpush1.bf16.msra.mxu0 0
        %2140 = vmatprep.subr.bf16.mxu0 0
        %2141 = vmatpush1.bf16.msra.mxu0 0
        %2142 = vmatprep.subr.bf16.mxu0 0
        %2143 = vmatpush1.bf16.msra.mxu0 0
        %2144 = vmatprep.subr.bf16.mxu0 0
        %2145 = vmatpush1.bf16.msra.mxu0 0
        %2146 = vmatprep.subr.bf16.mxu0 0
        %2147 = vmatpush1.bf16.msra.mxu0 0
        %2148 = vmatprep.subr.bf16.mxu0 0
        %2149 = vmatpush1.bf16.msra.mxu0 0
        %2150 = vmatprep.subr.bf16.mxu0 0
        %2151 = vmatpush1.bf16.msra.mxu0 0
        %2152 = vmatprep.subr.bf16.mxu0 0
        %2153 = vmatpush1.bf16.msra.mxu0 0
        %2154 = vmatprep.subr.bf16.mxu0 0
        %2155 = vmatpush1.bf16.msra.mxu0 0
        %2156 = vmatprep.subr.bf16.mxu0 0
        %2157 = vmatpush1.bf16.msra.mxu0 0
        %2158 = vmatprep.subr.bf16.mxu0 0
        %2159 = vmatpush1.bf16.msra.mxu0 0
        %2160 = vmatprep.subr.bf16.mxu0 0
        %2161 = vmatpush1.bf16.msra.mxu0 0
        %2162 = vmatprep.mubr.bf16.mxu0 0
        %2163 = vmatmul.mubr.bf16.gmra.mrb[0].mxu0 %v2125
        %v2164 = vpop.f32.mrb[0].mxu0
        %v2165 = vadd.f32 0.0, %v2164
        %v2166 = vpop.f32.mrb[0].mxu0
        %v2167 = vpop.f32.mrb[0].mxu0
        %v2168 = vpop.f32.mrb[0].mxu0
        %2169 = vdwg.mxu0
        %v2170 = vadd.f32 %v2110, %v2165
        %v2171 = vld [vmem:[%s717] sm:$0x3]
        %v2173 = vsel %vm552, %v2006, 0
        %v2176 = vsel %vm556, %v2171, 0
        %2178 = vmatprep.subr.bf16.mxu0 0
        %2179 = vmatpush1.bf16.msra.mxu0 %v2176
        %2180 = vmatprep.subr.bf16.mxu0 0
        %2181 = vmatpush1.bf16.msra.mxu0 0
        %2182 = vmatprep.subr.bf16.mxu0 0
        %2183 = vmatpush1.bf16.msra.mxu0 0
        %2184 = vmatprep.subr.bf16.mxu0 0
        %2185 = vmatpush1.bf16.msra.mxu0 0
        %2186 = vmatprep.subr.bf16.mxu0 0
        %2187 = vmatpush1.bf16.msra.mxu0 0
        %2188 = vmatprep.subr.bf16.mxu0 0
        %2189 = vmatpush1.bf16.msra.mxu0 0
        %2190 = vmatprep.subr.bf16.mxu0 0
        %2191 = vmatpush1.bf16.msra.mxu0 0
        %2192 = vmatprep.subr.bf16.mxu0 0
        %2193 = vmatpush1.bf16.msra.mxu0 0
        %2194 = vmatprep.subr.bf16.mxu0 0
        %2195 = vmatpush1.bf16.msra.mxu0 0
        %2196 = vmatprep.subr.bf16.mxu0 0
        %2197 = vmatpush1.bf16.msra.mxu0 0
        %2198 = vmatprep.subr.bf16.mxu0 0
        %2199 = vmatpush1.bf16.msra.mxu0 0
        %2200 = vmatprep.subr.bf16.mxu0 0
        %2201 = vmatpush1.bf16.msra.mxu0 0
        %2202 = vmatprep.subr.bf16.mxu0 0
        %2203 = vmatpush1.bf16.msra.mxu0 0
        %2204 = vmatprep.subr.bf16.mxu0 0
        %2205 = vmatpush1.bf16.msra.mxu0 0
        %2206 = vmatprep.subr.bf16.mxu0 0
        %2207 = vmatpush1.bf16.msra.mxu0 0
        %2208 = vmatprep.subr.bf16.mxu0 0
        %2209 = vmatpush1.bf16.msra.mxu0 0
        %2210 = vmatprep.mubr.bf16.mxu0 0
        %2211 = vmatmul.mubr.bf16.gmra.mrb[0].mxu0 %v2173
        %v2212 = vpop.f32.mrb[0].mxu0
        %v2213 = vadd.f32 0.0, %v2212
        %v2214 = vpop.f32.mrb[0].mxu0
        %v2215 = vpop.f32.mrb[0].mxu0
        %v2216 = vpop.f32.mrb[0].mxu0
        %2217 = vdwg.mxu0
        %v2218 = vadd.f32 %v2170, %v2213
        %v2219 = vld [vmem:[%s766] sm:$0x3]
        %v2221 = vsel %vm552, %v2008, 0
        %v2224 = vsel %vm556, %v2219, 0
        %2226 = vmatprep.subr.bf16.mxu0 0
        %2227 = vmatpush1.bf16.msra.mxu0 %v2224
        %2228 = vmatprep.subr.bf16.mxu0 0
        %2229 = vmatpush1.bf16.msra.mxu0 0
        %2230 = vmatprep.subr.bf16.mxu0 0
        %2231 = vmatpush1.bf16.msra.mxu0 0
        %2232 = vmatprep.subr.bf16.mxu0 0
        %2233 = vmatpush1.bf16.msra.mxu0 0
        %2234 = vmatprep.subr.bf16.mxu0 0
        %2235 = vmatpush1.bf16.msra.mxu0 0
        %2236 = vmatprep.subr.bf16.mxu0 0
        %2237 = vmatpush1.bf16.msra.mxu0 0
        %2238 = vmatprep.subr.bf16.mxu0 0
        %2239 = vmatpush1.bf16.msra.mxu0 0
        %2240 = vmatprep.subr.bf16.mxu0 0
        %2241 = vmatpush1.bf16.msra.mxu0 0
        %2242 = vmatprep.subr.bf16.mxu0 0
        %2243 = vmatpush1.bf16.msra.mxu0 0
        %2244 = vmatprep.subr.bf16.mxu0 0
        %2245 = vmatpush1.bf16.msra.mxu0 0
        %2246 = vmatprep.subr.bf16.mxu0 0
        %2247 = vmatpush1.bf16.msra.mxu0 0
        %2248 = vmatprep.subr.bf16.mxu0 0
        %2249 = vmatpush1.bf16.msra.mxu0 0
        %2250 = vmatprep.subr.bf16.mxu0 0
        %2251 = vmatpush1.bf16.msra.mxu0 0
        %2252 = vmatprep.subr.bf16.mxu0 0
        %2253 = vmatpush1.bf16.msra.mxu0 0
        %2254 = vmatprep.subr.bf16.mxu0 0
        %2255 = vmatpush1.bf16.msra.mxu0 0
        %2256 = vmatprep.subr.bf16.mxu0 0
        %2257 = vmatpush1.bf16.msra.mxu0 0
        %2258 = vmatprep.mubr.bf16.mxu0 0
        %2259 = vmatmul.mubr.bf16.gmra.mrb[0].mxu0 %v2221
        %v2260 = vpop.f32.mrb[0].mxu0
        %v2261 = vadd.f32 0.0, %v2260
        %v2262 = vpop.f32.mrb[0].mxu0
        %v2263 = vpop.f32.mrb[0].mxu0
        %v2264 = vpop.f32.mrb[0].mxu0
        %2265 = vdwg.mxu0
        %v2266 = vadd.f32 %v2218, %v2261
        %v2267 = vld [vmem:[%s815] sm:$0x3]
        %v2270 = vunpack.c.l.b16 %v2006
        %v2271 = vunpack.c.l.b16 %v2009
        %v2272 = vpack.c.b16 %v2271, %v2270
        %v2274 = vshrl.u32 %v2272, 16
        %v2276 = vshll.u32 %v2272, 16
        %v2278 = vrot.slane %v2276, 1
        %v2279 = vor.u32 %v2274, %v2278
        %v2281 = vsel %vm552, %v2279, 0
        %v2284 = vsel %vm556, %v2267, 0
        %2286 = vmatprep.subr.bf16.mxu0 0
        %2287 = vmatpush1.bf16.msra.mxu0 %v2284
        %2288 = vmatprep.subr.bf16.mxu0 0
        %2289 = vmatpush1.bf16.msra.mxu0 0
        %2290 = vmatprep.subr.bf16.mxu0 0
        %2291 = vmatpush1.bf16.msra.mxu0 0
        %2292 = vmatprep.subr.bf16.mxu0 0
        %2293 = vmatpush1.bf16.msra.mxu0 0
        %2294 = vmatprep.subr.bf16.mxu0 0
        %2295 = vmatpush1.bf16.msra.mxu0 0
        %2296 = vmatprep.subr.bf16.mxu0 0
        %2297 = vmatpush1.bf16.msra.mxu0 0
        %2298 = vmatprep.subr.bf16.mxu0 0
        %2299 = vmatpush1.bf16.msra.mxu0 0
        %2300 = vmatprep.subr.bf16.mxu0 0
        %2301 = vmatpush1.bf16.msra.mxu0 0
        %2302 = vmatprep.subr.bf16.mxu0 0
        %2303 = vmatpush1.bf16.msra.mxu0 0
        %2304 = vmatprep.subr.bf16.mxu0 0
        %2305 = vmatpush1.bf16.msra.mxu0 0
        %2306 = vmatprep.subr.bf16.mxu0 0
        %2307 = vmatpush1.bf16.msra.mxu0 0
        %2308 = vmatprep.subr.bf16.mxu0 0
        %2309 = vmatpush1.bf16.msra.mxu0 0
        %2310 = vmatprep.subr.bf16.mxu0 0
        %2311 = vmatpush1.bf16.msra.mxu0 0
        %2312 = vmatprep.subr.bf16.mxu0 0
        %2313 = vmatpush1.bf16.msra.mxu0 0
        %2314 = vmatprep.subr.bf16.mxu0 0
        %2315 = vmatpush1.bf16.msra.mxu0 0
        %2316 = vmatprep.subr.bf16.mxu0 0
        %2317 = vmatpush1.bf16.msra.mxu0 0
        %2318 = vmatprep.mubr.bf16.mxu0 0
        %2319 = vmatmul.mubr.bf16.gmra.mrb[0].mxu0 %v2281
        %v2320 = vpop.f32.mrb[0].mxu0
        %v2321 = vadd.f32 0.0, %v2320
        %v2322 = vpop.f32.mrb[0].mxu0
        %v2323 = vpop.f32.mrb[0].mxu0
        %v2324 = vpop.f32.mrb[0].mxu0
        %2325 = vdwg.mxu0
        %v2326 = vadd.f32 %v2266, %v2321
        %v2327 = vld [vmem:[%s876] sm:$0x3]
        %v2329 = vsel %vm552, %v2011, 0
        %v2332 = vsel %vm556, %v2327, 0
        %2334 = vmatprep.subr.bf16.mxu0 0
        %2335 = vmatpush1.bf16.msra.mxu0 %v2332
        %2336 = vmatprep.subr.bf16.mxu0 0
        %2337 = vmatpush1.bf16.msra.mxu0 0
        %2338 = vmatprep.subr.bf16.mxu0 0
        %2339 = vmatpush1.bf16.msra.mxu0 0
        %2340 = vmatprep.subr.bf16.mxu0 0
        %2341 = vmatpush1.bf16.msra.mxu0 0
        %2342 = vmatprep.subr.bf16.mxu0 0
        %2343 = vmatpush1.bf16.msra.mxu0 0
        %2344 = vmatprep.subr.bf16.mxu0 0
        %2345 = vmatpush1.bf16.msra.mxu0 0
        %2346 = vmatprep.subr.bf16.mxu0 0
        %2347 = vmatpush1.bf16.msra.mxu0 0
        %2348 = vmatprep.subr.bf16.mxu0 0
        %2349 = vmatpush1.bf16.msra.mxu0 0
        %2350 = vmatprep.subr.bf16.mxu0 0
        %2351 = vmatpush1.bf16.msra.mxu0 0
        %2352 = vmatprep.subr.bf16.mxu0 0
        %2353 = vmatpush1.bf16.msra.mxu0 0
        %2354 = vmatprep.subr.bf16.mxu0 0
        %2355 = vmatpush1.bf16.msra.mxu0 0
        %2356 = vmatprep.subr.bf16.mxu0 0
        %2357 = vmatpush1.bf16.msra.mxu0 0
        %2358 = vmatprep.subr.bf16.mxu0 0
        %2359 = vmatpush1.bf16.msra.mxu0 0
        %2360 = vmatprep.subr.bf16.mxu0 0
        %2361 = vmatpush1.bf16.msra.mxu0 0
        %2362 = vmatprep.subr.bf16.mxu0 0
        %2363 = vmatpush1.bf16.msra.mxu0 0
        %2364 = vmatprep.subr.bf16.mxu0 0
        %2365 = vmatpush1.bf16.msra.mxu0 0
        %2366 = vmatprep.mubr.bf16.mxu0 0
        %2367 = vmatmul.mubr.bf16.gmra.mrb[0].mxu0 %v2329
        %v2368 = vpop.f32.mrb[0].mxu0
        %v2369 = vadd.f32 0.0, %v2368
        %v2370 = vpop.f32.mrb[0].mxu0
        %v2371 = vpop.f32.mrb[0].mxu0
        %v2372 = vpop.f32.mrb[0].mxu0
        %2373 = vdwg.mxu0
        %v2374 = vadd.f32 %v2326, %v2369
        %v2375 = vld [vmem:[%s925] sm:$0x3]
        %v2377 = vsel %vm552, %v2013, 0
        %v2380 = vsel %vm556, %v2375, 0
        %2382 = vmatprep.subr.bf16.mxu0 0
        %2383 = vmatpush1.bf16.msra.mxu0 %v2380
        %2384 = vmatprep.subr.bf16.mxu0 0
        %2385 = vmatpush1.bf16.msra.mxu0 0
        %2386 = vmatprep.subr.bf16.mxu0 0
        %2387 = vmatpush1.bf16.msra.mxu0 0
        %2388 = vmatprep.subr.bf16.mxu0 0
        %2389 = vmatpush1.bf16.msra.mxu0 0
        %2390 = vmatprep.subr.bf16.mxu0 0
        %2391 = vmatpush1.bf16.msra.mxu0 0
        %2392 = vmatprep.subr.bf16.mxu0 0
        %2393 = vmatpush1.bf16.msra.mxu0 0
        %2394 = vmatprep.subr.bf16.mxu0 0
        %2395 = vmatpush1.bf16.msra.mxu0 0
        %2396 = vmatprep.subr.bf16.mxu0 0
        %2397 = vmatpush1.bf16.msra.mxu0 0
        %2398 = vmatprep.subr.bf16.mxu0 0
        %2399 = vmatpush1.bf16.msra.mxu0 0
        %2400 = vmatprep.subr.bf16.mxu0 0
        %2401 = vmatpush1.bf16.msra.mxu0 0
        %2402 = vmatprep.subr.bf16.mxu0 0
        %2403 = vmatpush1.bf16.msra.mxu0 0
        %2404 = vmatprep.subr.bf16.mxu0 0
        %2405 = vmatpush1.bf16.msra.mxu0 0
        %2406 = vmatprep.subr.bf16.mxu0 0
        %2407 = vmatpush1.bf16.msra.mxu0 0
        %2408 = vmatprep.subr.bf16.mxu0 0
        %2409 = vmatpush1.bf16.msra.mxu0 0
        %2410 = vmatprep.subr.bf16.mxu0 0
        %2411 = vmatpush1.bf16.msra.mxu0 0
        %2412 = vmatprep.subr.bf16.mxu0 0
        %2413 = vmatpush1.bf16.msra.mxu0 0
        %2414 = vmatprep.mubr.bf16.mxu0 0
        %2415 = vmatmul.mubr.bf16.gmra.mrb[0].mxu0 %v2377
        %v2416 = vpop.f32.mrb[0].mxu0
        %v2417 = vadd.f32 0.0, %v2416
        %v2418 = vpop.f32.mrb[0].mxu0
        %v2419 = vpop.f32.mrb[0].mxu0
        %v2420 = vpop.f32.mrb[0].mxu0
        %2421 = vdwg.mxu0
        %v2422 = vadd.f32 %v2374, %v2417
        %v2423 = vld [vmem:[%s974] sm:$0x3]
        %v2426 = vunpack.c.l.b16 %v2011
        %v2427 = vunpack.c.l.b16 %v2014
        %v2428 = vpack.c.b16 %v2427, %v2426
        %v2430 = vshrl.u32 %v2428, 16
        %v2432 = vshll.u32 %v2428, 16
        %v2434 = vrot.slane %v2432, 1
        %v2435 = vor.u32 %v2430, %v2434
        %v2437 = vsel %vm552, %v2435, 0
        %v2440 = vsel %vm556, %v2423, 0
        %2442 = vmatprep.subr.bf16.mxu0 0
        %2443 = vmatpush1.bf16.msra.mxu0 %v2440
        %2444 = vmatprep.subr.bf16.mxu0 0
        %2445 = vmatpush1.bf16.msra.mxu0 0
        %2446 = vmatprep.subr.bf16.mxu0 0
        %2447 = vmatpush1.bf16.msra.mxu0 0
        %2448 = vmatprep.subr.bf16.mxu0 0
        %2449 = vmatpush1.bf16.msra.mxu0 0
        %2450 = vmatprep.subr.bf16.mxu0 0
        %2451 = vmatpush1.bf16.msra.mxu0 0
        %2452 = vmatprep.subr.bf16.mxu0 0
        %2453 = vmatpush1.bf16.msra.mxu0 0
        %2454 = vmatprep.subr.bf16.mxu0 0
        %2455 = vmatpush1.bf16.msra.mxu0 0
        %2456 = vmatprep.subr.bf16.mxu0 0
        %2457 = vmatpush1.bf16.msra.mxu0 0
        %2458 = vmatprep.subr.bf16.mxu0 0
        %2459 = vmatpush1.bf16.msra.mxu0 0
        %2460 = vmatprep.subr.bf16.mxu0 0
        %2461 = vmatpush1.bf16.msra.mxu0 0
        %2462 = vmatprep.subr.bf16.mxu0 0
        %2463 = vmatpush1.bf16.msra.mxu0 0
        %2464 = vmatprep.subr.bf16.mxu0 0
        %2465 = vmatpush1.bf16.msra.mxu0 0
        %2466 = vmatprep.subr.bf16.mxu0 0
        %2467 = vmatpush1.bf16.msra.mxu0 0
        %2468 = vmatprep.subr.bf16.mxu0 0
        %2469 = vmatpush1.bf16.msra.mxu0 0
        %2470 = vmatprep.subr.bf16.mxu0 0
        %2471 = vmatpush1.bf16.msra.mxu0 0
        %2472 = vmatprep.subr.bf16.mxu0 0
        %2473 = vmatpush1.bf16.msra.mxu0 0
        %2474 = vmatprep.mubr.bf16.mxu0 0
        %2475 = vmatmul.mubr.bf16.gmra.mrb[0].mxu0 %v2437
        %v2476 = vpop.f32.mrb[0].mxu0
        %v2477 = vadd.f32 0.0, %v2476
        %v2478 = vpop.f32.mrb[0].mxu0
        %v2479 = vpop.f32.mrb[0].mxu0
        %v2480 = vpop.f32.mrb[0].mxu0
        %2481 = vdwg.mxu0
        %v2482 = vadd.f32 %v2422, %v2477
        %s2483 = scalar_lea.vmem %s469, 24 [#allocation2]
        %2484 = vst [vmem:[%s2483] sm:$0xff] %v2482
        %v2485 = vld [vmem:[%s2010] sm:$0xf]
        %v2486 = vld [vmem:[%s2012] sm:$0xf]
        %v2487 = vld [vmem:[%s2010 + $0x4] sm:$0x1]
        %s2488 = scalar_lea.vmem %s500, 32
        %v2489 = vld [vmem:[%s2488] sm:$0xf]
        %s2490 = scalar_lea.vmem %s510, 16
        %v2491 = vld [vmem:[%s2490] sm:$0xf]
        %v2492 = vld [vmem:[%s2488 + $0x4] sm:$0x1]
        %s2493 = scalar_lea.vmem %s479, 40
        %v2494 = vld [vmem:[%s2493] sm:$0xf]
        %s2495 = scalar_lea.vmem %s489, 20
        %v2496 = vld [vmem:[%s2495] sm:$0xf]
        %v2497 = vld [vmem:[%s2493 + $0x4] sm:$0x1]
        %v2498 = vld [vmem:[%s6] sm:$0x3]
        %v2500 = vsel %vm552, %v2485, 0
        %v2503 = vsel %vm556, %v2498, 0
        %2505 = vmatprep.subr.bf16.mxu0 0
        %2506 = vmatpush1.bf16.msra.mxu0 %v2503
        %2507 = vmatprep.subr.bf16.mxu0 0
        %2508 = vmatpush1.bf16.msra.mxu0 0
        %2509 = vmatprep.subr.bf16.mxu0 0
        %2510 = vmatpush1.bf16.msra.mxu0 0
        %2511 = vmatprep.subr.bf16.mxu0 0
        %2512 = vmatpush1.bf16.msra.mxu0 0
        %2513 = vmatprep.subr.bf16.mxu0 0
        %2514 = vmatpush1.bf16.msra.mxu0 0
        %2515 = vmatprep.subr.bf16.mxu0 0
        %2516 = vmatpush1.bf16.msra.mxu0 0
        %2517 = vmatprep.subr.bf16.mxu0 0
        %2518 = vmatpush1.bf16.msra.mxu0 0
        %2519 = vmatprep.subr.bf16.mxu0 0
        %2520 = vmatpush1.bf16.msra.mxu0 0
        %2521 = vmatprep.subr.bf16.mxu0 0
        %2522 = vmatpush1.bf16.msra.mxu0 0
        %2523 = vmatprep.subr.bf16.mxu0 0
        %2524 = vmatpush1.bf16.msra.mxu0 0
        %2525 = vmatprep.subr.bf16.mxu0 0
        %2526 = vmatpush1.bf16.msra.mxu0 0
        %2527 = vmatprep.subr.bf16.mxu0 0
        %2528 = vmatpush1.bf16.msra.mxu0 0
        %2529 = vmatprep.subr.bf16.mxu0 0
        %2530 = vmatpush1.bf16.msra.mxu0 0
        %2531 = vmatprep.subr.bf16.mxu0 0
        %2532 = vmatpush1.bf16.msra.mxu0 0
        %2533 = vmatprep.subr.bf16.mxu0 0
        %2534 = vmatpush1.bf16.msra.mxu0 0
        %2535 = vmatprep.subr.bf16.mxu0 0
        %2536 = vmatpush1.bf16.msra.mxu0 0
        %2537 = vmatprep.mubr.bf16.mxu0 0
        %2538 = vmatmul.mubr.bf16.gmra.mrb[0].mxu0 %v2500
        %v2539 = vpop.f32.mrb[0].mxu0
        %v2540 = vadd.f32 0.0, %v2539
        %v2541 = vpop.f32.mrb[0].mxu0
        %v2542 = vpop.f32.mrb[0].mxu0
        %v2543 = vpop.f32.mrb[0].mxu0
        %2544 = vdwg.mxu0
        %v2545 = vadd.f32 %v604, %v2540
        %v2546 = vld [vmem:[%s607] sm:$0x3]
        %v2548 = vsel %vm552, %v2486, 0
        %v2551 = vsel %vm556, %v2546, 0
        %2553 = vmatprep.subr.bf16.mxu0 0
        %2554 = vmatpush1.bf16.msra.mxu0 %v2551
        %2555 = vmatprep.subr.bf16.mxu0 0
        %2556 = vmatpush1.bf16.msra.mxu0 0
        %2557 = vmatprep.subr.bf16.mxu0 0
        %2558 = vmatpush1.bf16.msra.mxu0 0
        %2559 = vmatprep.subr.bf16.mxu0 0
        %2560 = vmatpush1.bf16.msra.mxu0 0
        %2561 = vmatprep.subr.bf16.mxu0 0
        %2562 = vmatpush1.bf16.msra.mxu0 0
        %2563 = vmatprep.subr.bf16.mxu0 0
        %2564 = vmatpush1.bf16.msra.mxu0 0
        %2565 = vmatprep.subr.bf16.mxu0 0
        %2566 = vmatpush1.bf16.msra.mxu0 0
        %2567 = vmatprep.subr.bf16.mxu0 0
        %2568 = vmatpush1.bf16.msra.mxu0 0
        %2569 = vmatprep.subr.bf16.mxu0 0
        %2570 = vmatpush1.bf16.msra.mxu0 0
        %2571 = vmatprep.subr.bf16.mxu0 0
        %2572 = vmatpush1.bf16.msra.mxu0 0
        %2573 = vmatprep.subr.bf16.mxu0 0
        %2574 = vmatpush1.bf16.msra.mxu0 0
        %2575 = vmatprep.subr.bf16.mxu0 0
        %2576 = vmatpush1.bf16.msra.mxu0 0
        %2577 = vmatprep.subr.bf16.mxu0 0
        %2578 = vmatpush1.bf16.msra.mxu0 0
        %2579 = vmatprep.subr.bf16.mxu0 0
        %2580 = vmatpush1.bf16.msra.mxu0 0
        %2581 = vmatprep.subr.bf16.mxu0 0
        %2582 = vmatpush1.bf16.msra.mxu0 0
        %2583 = vmatprep.subr.bf16.mxu0 0
        %2584 = vmatpush1.bf16.msra.mxu0 0
        %2585 = vmatprep.mubr.bf16.mxu0 0
        %2586 = vmatmul.mubr.bf16.gmra.mrb[0].mxu0 %v2548
        %v2587 = vpop.f32.mrb[0].mxu0
        %v2588 = vadd.f32 0.0, %v2587
        %v2589 = vpop.f32.mrb[0].mxu0
        %v2590 = vpop.f32.mrb[0].mxu0
        %v2591 = vpop.f32.mrb[0].mxu0
        %2592 = vdwg.mxu0
        %v2593 = vadd.f32 %v2545, %v2588
        %v2594 = vld [vmem:[%s656] sm:$0x3]
        %v2597 = vunpack.c.l.b16 %v2485
        %v2598 = vunpack.c.l.b16 %v2487
        %v2599 = vpack.c.b16 %v2598, %v2597
        %v2601 = vshrl.u32 %v2599, 16
        %v2603 = vshll.u32 %v2599, 16
        %v2605 = vrot.slane %v2603, 1
        %v2606 = vor.u32 %v2601, %v2605
        %v2608 = vsel %vm552, %v2606, 0
        %v2611 = vsel %vm556, %v2594, 0
        %2613 = vmatprep.subr.bf16.mxu0 0
        %2614 = vmatpush1.bf16.msra.mxu0 %v2611
        %2615 = vmatprep.subr.bf16.mxu0 0
        %2616 = vmatpush1.bf16.msra.mxu0 0
        %2617 = vmatprep.subr.bf16.mxu0 0
        %2618 = vmatpush1.bf16.msra.mxu0 0
        %2619 = vmatprep.subr.bf16.mxu0 0
        %2620 = vmatpush1.bf16.msra.mxu0 0
        %2621 = vmatprep.subr.bf16.mxu0 0
        %2622 = vmatpush1.bf16.msra.mxu0 0
        %2623 = vmatprep.subr.bf16.mxu0 0
        %2624 = vmatpush1.bf16.msra.mxu0 0
        %2625 = vmatprep.subr.bf16.mxu0 0
        %2626 = vmatpush1.bf16.msra.mxu0 0
        %2627 = vmatprep.subr.bf16.mxu0 0
        %2628 = vmatpush1.bf16.msra.mxu0 0
        %2629 = vmatprep.subr.bf16.mxu0 0
        %2630 = vmatpush1.bf16.msra.mxu0 0
        %2631 = vmatprep.subr.bf16.mxu0 0
        %2632 = vmatpush1.bf16.msra.mxu0 0
        %2633 = vmatprep.subr.bf16.mxu0 0
        %2634 = vmatpush1.bf16.msra.mxu0 0
        %2635 = vmatprep.subr.bf16.mxu0 0
        %2636 = vmatpush1.bf16.msra.mxu0 0
        %2637 = vmatprep.subr.bf16.mxu0 0
        %2638 = vmatpush1.bf16.msra.mxu0 0
        %2639 = vmatprep.subr.bf16.mxu0 0
        %2640 = vmatpush1.bf16.msra.mxu0 0
        %2641 = vmatprep.subr.bf16.mxu0 0
        %2642 = vmatpush1.bf16.msra.mxu0 0
        %2643 = vmatprep.subr.bf16.mxu0 0
        %2644 = vmatpush1.bf16.msra.mxu0 0
        %2645 = vmatprep.mubr.bf16.mxu0 0
        %2646 = vmatmul.mubr.bf16.gmra.mrb[0].mxu0 %v2608
        %v2647 = vpop.f32.mrb[0].mxu0
        %v2648 = vadd.f32 0.0, %v2647
        %v2649 = vpop.f32.mrb[0].mxu0
        %v2650 = vpop.f32.mrb[0].mxu0
        %v2651 = vpop.f32.mrb[0].mxu0
        %2652 = vdwg.mxu0
        %v2653 = vadd.f32 %v2593, %v2648
        %v2654 = vld [vmem:[%s717] sm:$0x3]
        %v2656 = vsel %vm552, %v2489, 0
        %v2659 = vsel %vm556, %v2654, 0
        %2661 = vmatprep.subr.bf16.mxu0 0
        %2662 = vmatpush1.bf16.msra.mxu0 %v2659
        %2663 = vmatprep.subr.bf16.mxu0 0
        %2664 = vmatpush1.bf16.msra.mxu0 0
        %2665 = vmatprep.subr.bf16.mxu0 0
        %2666 = vmatpush1.bf16.msra.mxu0 0
        %2667 = vmatprep.subr.bf16.mxu0 0
        %2668 = vmatpush1.bf16.msra.mxu0 0
        %2669 = vmatprep.subr.bf16.mxu0 0
        %2670 = vmatpush1.bf16.msra.mxu0 0
        %2671 = vmatprep.subr.bf16.mxu0 0
        %2672 = vmatpush1.bf16.msra.mxu0 0
        %2673 = vmatprep.subr.bf16.mxu0 0
        %2674 = vmatpush1.bf16.msra.mxu0 0
        %2675 = vmatprep.subr.bf16.mxu0 0
        %2676 = vmatpush1.bf16.msra.mxu0 0
        %2677 = vmatprep.subr.bf16.mxu0 0
        %2678 = vmatpush1.bf16.msra.mxu0 0
        %2679 = vmatprep.subr.bf16.mxu0 0
        %2680 = vmatpush1.bf16.msra.mxu0 0
        %2681 = vmatprep.subr.bf16.mxu0 0
        %2682 = vmatpush1.bf16.msra.mxu0 0
        %2683 = vmatprep.subr.bf16.mxu0 0
        %2684 = vmatpush1.bf16.msra.mxu0 0
        %2685 = vmatprep.subr.bf16.mxu0 0
        %2686 = vmatpush1.bf16.msra.mxu0 0
        %2687 = vmatprep.subr.bf16.mxu0 0
        %2688 = vmatpush1.bf16.msra.mxu0 0
        %2689 = vmatprep.subr.bf16.mxu0 0
        %2690 = vmatpush1.bf16.msra.mxu0 0
        %2691 = vmatprep.subr.bf16.mxu0 0
        %2692 = vmatpush1.bf16.msra.mxu0 0
        %2693 = vmatprep.mubr.bf16.mxu0 0
        %2694 = vmatmul.mubr.bf16.gmra.mrb[0].mxu0 %v2656
        %v2695 = vpop.f32.mrb[0].mxu0
        %v2696 = vadd.f32 0.0, %v2695
        %v2697 = vpop.f32.mrb[0].mxu0
        %v2698 = vpop.f32.mrb[0].mxu0
        %v2699 = vpop.f32.mrb[0].mxu0
        %2700 = vdwg.mxu0
        %v2701 = vadd.f32 %v2653, %v2696
        %v2702 = vld [vmem:[%s766] sm:$0x3]
        %v2704 = vsel %vm552, %v2491, 0
        %v2707 = vsel %vm556, %v2702, 0
        %2709 = vmatprep.subr.bf16.mxu0 0
        %2710 = vmatpush1.bf16.msra.mxu0 %v2707
        %2711 = vmatprep.subr.bf16.mxu0 0
        %2712 = vmatpush1.bf16.msra.mxu0 0
        %2713 = vmatprep.subr.bf16.mxu0 0
        %2714 = vmatpush1.bf16.msra.mxu0 0
        %2715 = vmatprep.subr.bf16.mxu0 0
        %2716 = vmatpush1.bf16.msra.mxu0 0
        %2717 = vmatprep.subr.bf16.mxu0 0
        %2718 = vmatpush1.bf16.msra.mxu0 0
        %2719 = vmatprep.subr.bf16.mxu0 0
        %2720 = vmatpush1.bf16.msra.mxu0 0
        %2721 = vmatprep.subr.bf16.mxu0 0
        %2722 = vmatpush1.bf16.msra.mxu0 0
        %2723 = vmatprep.subr.bf16.mxu0 0
        %2724 = vmatpush1.bf16.msra.mxu0 0
        %2725 = vmatprep.subr.bf16.mxu0 0
        %2726 = vmatpush1.bf16.msra.mxu0 0
        %2727 = vmatprep.subr.bf16.mxu0 0
        %2728 = vmatpush1.bf16.msra.mxu0 0
        %2729 = vmatprep.subr.bf16.mxu0 0
        %2730 = vmatpush1.bf16.msra.mxu0 0
        %2731 = vmatprep.subr.bf16.mxu0 0
        %2732 = vmatpush1.bf16.msra.mxu0 0
        %2733 = vmatprep.subr.bf16.mxu0 0
        %2734 = vmatpush1.bf16.msra.mxu0 0
        %2735 = vmatprep.subr.bf16.mxu0 0
        %2736 = vmatpush1.bf16.msra.mxu0 0
        %2737 = vmatprep.subr.bf16.mxu0 0
        %2738 = vmatpush1.bf16.msra.mxu0 0
        %2739 = vmatprep.subr.bf16.mxu0 0
        %2740 = vmatpush1.bf16.msra.mxu0 0
        %2741 = vmatprep.mubr.bf16.mxu0 0
        %2742 = vmatmul.mubr.bf16.gmra.mrb[0].mxu0 %v2704
        %v2743 = vpop.f32.mrb[0].mxu0
        %v2744 = vadd.f32 0.0, %v2743
        %v2745 = vpop.f32.mrb[0].mxu0
        %v2746 = vpop.f32.mrb[0].mxu0
        %v2747 = vpop.f32.mrb[0].mxu0
        %2748 = vdwg.mxu0
        %v2749 = vadd.f32 %v2701, %v2744
        %v2750 = vld [vmem:[%s815] sm:$0x3]
        %v2753 = vunpack.c.l.b16 %v2489
        %v2754 = vunpack.c.l.b16 %v2492
        %v2755 = vpack.c.b16 %v2754, %v2753
        %v2757 = vshrl.u32 %v2755, 16
        %v2759 = vshll.u32 %v2755, 16
        %v2761 = vrot.slane %v2759, 1
        %v2762 = vor.u32 %v2757, %v2761
        %v2764 = vsel %vm552, %v2762, 0
        %v2767 = vsel %vm556, %v2750, 0
        %2769 = vmatprep.subr.bf16.mxu0 0
        %2770 = vmatpush1.bf16.msra.mxu0 %v2767
        %2771 = vmatprep.subr.bf16.mxu0 0
        %2772 = vmatpush1.bf16.msra.mxu0 0
        %2773 = vmatprep.subr.bf16.mxu0 0
        %2774 = vmatpush1.bf16.msra.mxu0 0
        %2775 = vmatprep.subr.bf16.mxu0 0
        %2776 = vmatpush1.bf16.msra.mxu0 0
        %2777 = vmatprep.subr.bf16.mxu0 0
        %2778 = vmatpush1.bf16.msra.mxu0 0
        %2779 = vmatprep.subr.bf16.mxu0 0
        %2780 = vmatpush1.bf16.msra.mxu0 0
        %2781 = vmatprep.subr.bf16.mxu0 0
        %2782 = vmatpush1.bf16.msra.mxu0 0
        %2783 = vmatprep.subr.bf16.mxu0 0
        %2784 = vmatpush1.bf16.msra.mxu0 0
        %2785 = vmatprep.subr.bf16.mxu0 0
        %2786 = vmatpush1.bf16.msra.mxu0 0
        %2787 = vmatprep.subr.bf16.mxu0 0
        %2788 = vmatpush1.bf16.msra.mxu0 0
        %2789 = vmatprep.subr.bf16.mxu0 0
        %2790 = vmatpush1.bf16.msra.mxu0 0
        %2791 = vmatprep.subr.bf16.mxu0 0
        %2792 = vmatpush1.bf16.msra.mxu0 0
        %2793 = vmatprep.subr.bf16.mxu0 0
        %2794 = vmatpush1.bf16.msra.mxu0 0
        %2795 = vmatprep.subr.bf16.mxu0 0
        %2796 = vmatpush1.bf16.msra.mxu0 0
        %2797 = vmatprep.subr.bf16.mxu0 0
        %2798 = vmatpush1.bf16.msra.mxu0 0
        %2799 = vmatprep.subr.bf16.mxu0 0
        %2800 = vmatpush1.bf16.msra.mxu0 0
        %2801 = vmatprep.mubr.bf16.mxu0 0
        %2802 = vmatmul.mubr.bf16.gmra.mrb[0].mxu0 %v2764
        %v2803 = vpop.f32.mrb[0].mxu0
        %v2804 = vadd.f32 0.0, %v2803
        %v2805 = vpop.f32.mrb[0].mxu0
        %v2806 = vpop.f32.mrb[0].mxu0
        %v2807 = vpop.f32.mrb[0].mxu0
        %2808 = vdwg.mxu0
        %v2809 = vadd.f32 %v2749, %v2804
        %v2810 = vld [vmem:[%s876] sm:$0x3]
        %v2812 = vsel %vm552, %v2494, 0
        %v2815 = vsel %vm556, %v2810, 0
        %2817 = vmatprep.subr.bf16.mxu0 0
        %2818 = vmatpush1.bf16.msra.mxu0 %v2815
        %2819 = vmatprep.subr.bf16.mxu0 0
        %2820 = vmatpush1.bf16.msra.mxu0 0
        %2821 = vmatprep.subr.bf16.mxu0 0
        %2822 = vmatpush1.bf16.msra.mxu0 0
        %2823 = vmatprep.subr.bf16.mxu0 0
        %2824 = vmatpush1.bf16.msra.mxu0 0
        %2825 = vmatprep.subr.bf16.mxu0 0
        %2826 = vmatpush1.bf16.msra.mxu0 0
        %2827 = vmatprep.subr.bf16.mxu0 0
        %2828 = vmatpush1.bf16.msra.mxu0 0
        %2829 = vmatprep.subr.bf16.mxu0 0
        %2830 = vmatpush1.bf16.msra.mxu0 0
        %2831 = vmatprep.subr.bf16.mxu0 0
        %2832 = vmatpush1.bf16.msra.mxu0 0
        %2833 = vmatprep.subr.bf16.mxu0 0
        %2834 = vmatpush1.bf16.msra.mxu0 0
        %2835 = vmatprep.subr.bf16.mxu0 0
        %2836 = vmatpush1.bf16.msra.mxu0 0
        %2837 = vmatprep.subr.bf16.mxu0 0
        %2838 = vmatpush1.bf16.msra.mxu0 0
        %2839 = vmatprep.subr.bf16.mxu0 0
        %2840 = vmatpush1.bf16.msra.mxu0 0
        %2841 = vmatprep.subr.bf16.mxu0 0
        %2842 = vmatpush1.bf16.msra.mxu0 0
        %2843 = vmatprep.subr.bf16.mxu0 0
        %2844 = vmatpush1.bf16.msra.mxu0 0
        %2845 = vmatprep.subr.bf16.mxu0 0
        %2846 = vmatpush1.bf16.msra.mxu0 0
        %2847 = vmatprep.subr.bf16.mxu0 0
        %2848 = vmatpush1.bf16.msra.mxu0 0
        %2849 = vmatprep.mubr.bf16.mxu0 0
        %2850 = vmatmul.mubr.bf16.gmra.mrb[0].mxu0 %v2812
        %v2851 = vpop.f32.mrb[0].mxu0
        %v2852 = vadd.f32 0.0, %v2851
        %v2853 = vpop.f32.mrb[0].mxu0
        %v2854 = vpop.f32.mrb[0].mxu0
        %v2855 = vpop.f32.mrb[0].mxu0
        %2856 = vdwg.mxu0
        %v2857 = vadd.f32 %v2809, %v2852
        %v2858 = vld [vmem:[%s925] sm:$0x3]
        %v2860 = vsel %vm552, %v2496, 0
        %v2863 = vsel %vm556, %v2858, 0
        %2865 = vmatprep.subr.bf16.mxu0 0
        %2866 = vmatpush1.bf16.msra.mxu0 %v2863
        %2867 = vmatprep.subr.bf16.mxu0 0
        %2868 = vmatpush1.bf16.msra.mxu0 0
        %2869 = vmatprep.subr.bf16.mxu0 0
        %2870 = vmatpush1.bf16.msra.mxu0 0
        %2871 = vmatprep.subr.bf16.mxu0 0
        %2872 = vmatpush1.bf16.msra.mxu0 0
        %2873 = vmatprep.subr.bf16.mxu0 0
        %2874 = vmatpush1.bf16.msra.mxu0 0
        %2875 = vmatprep.subr.bf16.mxu0 0
        %2876 = vmatpush1.bf16.msra.mxu0 0
        %2877 = vmatprep.subr.bf16.mxu0 0
        %2878 = vmatpush1.bf16.msra.mxu0 0
        %2879 = vmatprep.subr.bf16.mxu0 0
        %2880 = vmatpush1.bf16.msra.mxu0 0
        %2881 = vmatprep.subr.bf16.mxu0 0
        %2882 = vmatpush1.bf16.msra.mxu0 0
        %2883 = vmatprep.subr.bf16.mxu0 0
        %2884 = vmatpush1.bf16.msra.mxu0 0
        %2885 = vmatprep.subr.bf16.mxu0 0
        %2886 = vmatpush1.bf16.msra.mxu0 0
        %2887 = vmatprep.subr.bf16.mxu0 0
        %2888 = vmatpush1.bf16.msra.mxu0 0
        %2889 = vmatprep.subr.bf16.mxu0 0
        %2890 = vmatpush1.bf16.msra.mxu0 0
        %2891 = vmatprep.subr.bf16.mxu0 0
        %2892 = vmatpush1.bf16.msra.mxu0 0
        %2893 = vmatprep.subr.bf16.mxu0 0
        %2894 = vmatpush1.bf16.msra.mxu0 0
        %2895 = vmatprep.subr.bf16.mxu0 0
        %2896 = vmatpush1.bf16.msra.mxu0 0
        %2897 = vmatprep.mubr.bf16.mxu0 0
        %2898 = vmatmul.mubr.bf16.gmra.mrb[0].mxu0 %v2860
        %v2899 = vpop.f32.mrb[0].mxu0
        %v2900 = vadd.f32 0.0, %v2899
        %v2901 = vpop.f32.mrb[0].mxu0
        %v2902 = vpop.f32.mrb[0].mxu0
        %v2903 = vpop.f32.mrb[0].mxu0
        %2904 = vdwg.mxu0
        %v2905 = vadd.f32 %v2857, %v2900
        %v2906 = vld [vmem:[%s974] sm:$0x3]
        %v2909 = vunpack.c.l.b16 %v2494
        %v2910 = vunpack.c.l.b16 %v2497
        %v2911 = vpack.c.b16 %v2910, %v2909
        %v2913 = vshrl.u32 %v2911, 16
        %v2915 = vshll.u32 %v2911, 16
        %v2917 = vrot.slane %v2915, 1
        %v2918 = vor.u32 %v2913, %v2917
        %v2920 = vsel %vm552, %v2918, 0
        %v2923 = vsel %vm556, %v2906, 0
        %2925 = vmatprep.subr.bf16.mxu0 0
        %2926 = vmatpush1.bf16.msra.mxu0 %v2923
        %2927 = vmatprep.subr.bf16.mxu0 0
        %2928 = vmatpush1.bf16.msra.mxu0 0
        %2929 = vmatprep.subr.bf16.mxu0 0
        %2930 = vmatpush1.bf16.msra.mxu0 0
        %2931 = vmatprep.subr.bf16.mxu0 0
        %2932 = vmatpush1.bf16.msra.mxu0 0
        %2933 = vmatprep.subr.bf16.mxu0 0
        %2934 = vmatpush1.bf16.msra.mxu0 0
        %2935 = vmatprep.subr.bf16.mxu0 0
        %2936 = vmatpush1.bf16.msra.mxu0 0
        %2937 = vmatprep.subr.bf16.mxu0 0
        %2938 = vmatpush1.bf16.msra.mxu0 0
        %2939 = vmatprep.subr.bf16.mxu0 0
        %2940 = vmatpush1.bf16.msra.mxu0 0
        %2941 = vmatprep.subr.bf16.mxu0 0
        %2942 = vmatpush1.bf16.msra.mxu0 0
        %2943 = vmatprep.subr.bf16.mxu0 0
        %2944 = vmatpush1.bf16.msra.mxu0 0
        %2945 = vmatprep.subr.bf16.mxu0 0
        %2946 = vmatpush1.bf16.msra.mxu0 0
        %2947 = vmatprep.subr.bf16.mxu0 0
        %2948 = vmatpush1.bf16.msra.mxu0 0
        %2949 = vmatprep.subr.bf16.mxu0 0
        %2950 = vmatpush1.bf16.msra.mxu0 0
        %2951 = vmatprep.subr.bf16.mxu0 0
        %2952 = vmatpush1.bf16.msra.mxu0 0
        %2953 = vmatprep.subr.bf16.mxu0 0
        %2954 = vmatpush1.bf16.msra.mxu0 0
        %2955 = vmatprep.subr.bf16.mxu0 0
        %2956 = vmatpush1.bf16.msra.mxu0 0
        %2957 = vmatprep.mubr.bf16.mxu0 0
        %2958 = vmatmul.mubr.bf16.gmra.mrb[0].mxu0 %v2920
        %v2959 = vpop.f32.mrb[0].mxu0
        %v2960 = vadd.f32 0.0, %v2959
        %v2961 = vpop.f32.mrb[0].mxu0
        %v2962 = vpop.f32.mrb[0].mxu0
        %v2963 = vpop.f32.mrb[0].mxu0
        %2964 = vdwg.mxu0
        %v2965 = vadd.f32 %v2905, %v2960
        %s2966 = scalar_lea.vmem %s469, 32 [#allocation2]
        %2967 = vst [vmem:[%s2966] sm:$0xff] %v2965
        %v2968 = vld [vmem:[%s2493] sm:$0xf]
        %v2969 = vld [vmem:[%s2495] sm:$0xf]
        %v2970 = vld [vmem:[%s2493 + $0x4] sm:$0x1]
        %s2971 = scalar_lea.vmem %s500, 40
        %v2972 = vld [vmem:[%s2971] sm:$0xf]
        %s2973 = scalar_lea.vmem %s510, 20
        %v2974 = vld [vmem:[%s2973] sm:$0xf]
        %v2975 = vld [vmem:[%s2971 + $0x4] sm:$0x1]
        %s2976 = scalar_lea.vmem %s479, 48
        %v2977 = vld [vmem:[%s2976] sm:$0xf]
        %s2978 = scalar_lea.vmem %s489, 24
        %v2979 = vld [vmem:[%s2978] sm:$0xf]
        %v2980 = vld [vmem:[%s2976 + $0x4] sm:$0x1]
        %v2981 = vld [vmem:[%s6] sm:$0x3]
        %v2983 = vsel %vm552, %v2968, 0
        %v2986 = vsel %vm556, %v2981, 0
        %2988 = vmatprep.subr.bf16.mxu0 0
        %2989 = vmatpush1.bf16.msra.mxu0 %v2986
        %2990 = vmatprep.subr.bf16.mxu0 0
        %2991 = vmatpush1.bf16.msra.mxu0 0
        %2992 = vmatprep.subr.bf16.mxu0 0
        %2993 = vmatpush1.bf16.msra.mxu0 0
        %2994 = vmatprep.subr.bf16.mxu0 0
        %2995 = vmatpush1.bf16.msra.mxu0 0
        %2996 = vmatprep.subr.bf16.mxu0 0
        %2997 = vmatpush1.bf16.msra.mxu0 0
        %2998 = vmatprep.subr.bf16.mxu0 0
        %2999 = vmatpush1.bf16.msra.mxu0 0
        %3000 = vmatprep.subr.bf16.mxu0 0
        %3001 = vmatpush1.bf16.msra.mxu0 0
        %3002 = vmatprep.subr.bf16.mxu0 0
        %3003 = vmatpush1.bf16.msra.mxu0 0
        %3004 = vmatprep.subr.bf16.mxu0 0
        %3005 = vmatpush1.bf16.msra.mxu0 0
        %3006 = vmatprep.subr.bf16.mxu0 0
        %3007 = vmatpush1.bf16.msra.mxu0 0
        %3008 = vmatprep.subr.bf16.mxu0 0
        %3009 = vmatpush1.bf16.msra.mxu0 0
        %3010 = vmatprep.subr.bf16.mxu0 0
        %3011 = vmatpush1.bf16.msra.mxu0 0
        %3012 = vmatprep.subr.bf16.mxu0 0
        %3013 = vmatpush1.bf16.msra.mxu0 0
        %3014 = vmatprep.subr.bf16.mxu0 0
        %3015 = vmatpush1.bf16.msra.mxu0 0
        %3016 = vmatprep.subr.bf16.mxu0 0
        %3017 = vmatpush1.bf16.msra.mxu0 0
        %3018 = vmatprep.subr.bf16.mxu0 0
        %3019 = vmatpush1.bf16.msra.mxu0 0
        %3020 = vmatprep.mubr.bf16.mxu0 0
        %3021 = vmatmul.mubr.bf16.gmra.mrb[0].mxu0 %v2983
        %v3022 = vpop.f32.mrb[0].mxu0
        %v3023 = vadd.f32 0.0, %v3022
        %v3024 = vpop.f32.mrb[0].mxu0
        %v3025 = vpop.f32.mrb[0].mxu0
        %v3026 = vpop.f32.mrb[0].mxu0
        %3027 = vdwg.mxu0
        %v3028 = vadd.f32 %v604, %v3023
        %v3029 = vld [vmem:[%s607] sm:$0x3]
        %v3031 = vsel %vm552, %v2969, 0
        %v3034 = vsel %vm556, %v3029, 0
        %3036 = vmatprep.subr.bf16.mxu0 0
        %3037 = vmatpush1.bf16.msra.mxu0 %v3034
        %3038 = vmatprep.subr.bf16.mxu0 0
        %3039 = vmatpush1.bf16.msra.mxu0 0
        %3040 = vmatprep.subr.bf16.mxu0 0
        %3041 = vmatpush1.bf16.msra.mxu0 0
        %3042 = vmatprep.subr.bf16.mxu0 0
        %3043 = vmatpush1.bf16.msra.mxu0 0
        %3044 = vmatprep.subr.bf16.mxu0 0
        %3045 = vmatpush1.bf16.msra.mxu0 0
        %3046 = vmatprep.subr.bf16.mxu0 0
        %3047 = vmatpush1.bf16.msra.mxu0 0
        %3048 = vmatprep.subr.bf16.mxu0 0
        %3049 = vmatpush1.bf16.msra.mxu0 0
        %3050 = vmatprep.subr.bf16.mxu0 0
        %3051 = vmatpush1.bf16.msra.mxu0 0
        %3052 = vmatprep.subr.bf16.mxu0 0
        %3053 = vmatpush1.bf16.msra.mxu0 0
        %3054 = vmatprep.subr.bf16.mxu0 0
        %3055 = vmatpush1.bf16.msra.mxu0 0
        %3056 = vmatprep.subr.bf16.mxu0 0
        %3057 = vmatpush1.bf16.msra.mxu0 0
        %3058 = vmatprep.subr.bf16.mxu0 0
        %3059 = vmatpush1.bf16.msra.mxu0 0
        %3060 = vmatprep.subr.bf16.mxu0 0
        %3061 = vmatpush1.bf16.msra.mxu0 0
        %3062 = vmatprep.subr.bf16.mxu0 0
        %3063 = vmatpush1.bf16.msra.mxu0 0
        %3064 = vmatprep.subr.bf16.mxu0 0
        %3065 = vmatpush1.bf16.msra.mxu0 0
        %3066 = vmatprep.subr.bf16.mxu0 0
        %3067 = vmatpush1.bf16.msra.mxu0 0
        %3068 = vmatprep.mubr.bf16.mxu0 0
        %3069 = vmatmul.mubr.bf16.gmra.mrb[0].mxu0 %v3031
        %v3070 = vpop.f32.mrb[0].mxu0
        %v3071 = vadd.f32 0.0, %v3070
        %v3072 = vpop.f32.mrb[0].mxu0
        %v3073 = vpop.f32.mrb[0].mxu0
        %v3074 = vpop.f32.mrb[0].mxu0
        %3075 = vdwg.mxu0
        %v3076 = vadd.f32 %v3028, %v3071
        %v3077 = vld [vmem:[%s656] sm:$0x3]
        %v3080 = vunpack.c.l.b16 %v2968
        %v3081 = vunpack.c.l.b16 %v2970
        %v3082 = vpack.c.b16 %v3081, %v3080
        %v3084 = vshrl.u32 %v3082, 16
        %v3086 = vshll.u32 %v3082, 16
        %v3088 = vrot.slane %v3086, 1
        %v3089 = vor.u32 %v3084, %v3088
        %v3091 = vsel %vm552, %v3089, 0
        %v3094 = vsel %vm556, %v3077, 0
        %3096 = vmatprep.subr.bf16.mxu0 0
        %3097 = vmatpush1.bf16.msra.mxu0 %v3094
        %3098 = vmatprep.subr.bf16.mxu0 0
        %3099 = vmatpush1.bf16.msra.mxu0 0
        %3100 = vmatprep.subr.bf16.mxu0 0
        %3101 = vmatpush1.bf16.msra.mxu0 0
        %3102 = vmatprep.subr.bf16.mxu0 0
        %3103 = vmatpush1.bf16.msra.mxu0 0
        %3104 = vmatprep.subr.bf16.mxu0 0
        %3105 = vmatpush1.bf16.msra.mxu0 0
        %3106 = vmatprep.subr.bf16.mxu0 0
        %3107 = vmatpush1.bf16.msra.mxu0 0
        %3108 = vmatprep.subr.bf16.mxu0 0
        %3109 = vmatpush1.bf16.msra.mxu0 0
        %3110 = vmatprep.subr.bf16.mxu0 0
        %3111 = vmatpush1.bf16.msra.mxu0 0
        %3112 = vmatprep.subr.bf16.mxu0 0
        %3113 = vmatpush1.bf16.msra.mxu0 0
        %3114 = vmatprep.subr.bf16.mxu0 0
        %3115 = vmatpush1.bf16.msra.mxu0 0
        %3116 = vmatprep.subr.bf16.mxu0 0
        %3117 = vmatpush1.bf16.msra.mxu0 0
        %3118 = vmatprep.subr.bf16.mxu0 0
        %3119 = vmatpush1.bf16.msra.mxu0 0
        %3120 = vmatprep.subr.bf16.mxu0 0
        %3121 = vmatpush1.bf16.msra.mxu0 0
        %3122 = vmatprep.subr.bf16.mxu0 0
        %3123 = vmatpush1.bf16.msra.mxu0 0
        %3124 = vmatprep.subr.bf16.mxu0 0
        %3125 = vmatpush1.bf16.msra.mxu0 0
        %3126 = vmatprep.subr.bf16.mxu0 0
        %3127 = vmatpush1.bf16.msra.mxu0 0
        %3128 = vmatprep.mubr.bf16.mxu0 0
        %3129 = vmatmul.mubr.bf16.gmra.mrb[0].mxu0 %v3091
        %v3130 = vpop.f32.mrb[0].mxu0
        %v3131 = vadd.f32 0.0, %v3130
        %v3132 = vpop.f32.mrb[0].mxu0
        %v3133 = vpop.f32.mrb[0].mxu0
        %v3134 = vpop.f32.mrb[0].mxu0
        %3135 = vdwg.mxu0
        %v3136 = vadd.f32 %v3076, %v3131
        %v3137 = vld [vmem:[%s717] sm:$0x3]
        %v3139 = vsel %vm552, %v2972, 0
        %v3142 = vsel %vm556, %v3137, 0
        %3144 = vmatprep.subr.bf16.mxu0 0
        %3145 = vmatpush1.bf16.msra.mxu0 %v3142
        %3146 = vmatprep.subr.bf16.mxu0 0
        %3147 = vmatpush1.bf16.msra.mxu0 0
        %3148 = vmatprep.subr.bf16.mxu0 0
        %3149 = vmatpush1.bf16.msra.mxu0 0
        %3150 = vmatprep.subr.bf16.mxu0 0
        %3151 = vmatpush1.bf16.msra.mxu0 0
        %3152 = vmatprep.subr.bf16.mxu0 0
        %3153 = vmatpush1.bf16.msra.mxu0 0
        %3154 = vmatprep.subr.bf16.mxu0 0
        %3155 = vmatpush1.bf16.msra.mxu0 0
        %3156 = vmatprep.subr.bf16.mxu0 0
        %3157 = vmatpush1.bf16.msra.mxu0 0
        %3158 = vmatprep.subr.bf16.mxu0 0
        %3159 = vmatpush1.bf16.msra.mxu0 0
        %3160 = vmatprep.subr.bf16.mxu0 0
        %3161 = vmatpush1.bf16.msra.mxu0 0
        %3162 = vmatprep.subr.bf16.mxu0 0
        %3163 = vmatpush1.bf16.msra.mxu0 0
        %3164 = vmatprep.subr.bf16.mxu0 0
        %3165 = vmatpush1.bf16.msra.mxu0 0
        %3166 = vmatprep.subr.bf16.mxu0 0
        %3167 = vmatpush1.bf16.msra.mxu0 0
        %3168 = vmatprep.subr.bf16.mxu0 0
        %3169 = vmatpush1.bf16.msra.mxu0 0
        %3170 = vmatprep.subr.bf16.mxu0 0
        %3171 = vmatpush1.bf16.msra.mxu0 0
        %3172 = vmatprep.subr.bf16.mxu0 0
        %3173 = vmatpush1.bf16.msra.mxu0 0
        %3174 = vmatprep.subr.bf16.mxu0 0
        %3175 = vmatpush1.bf16.msra.mxu0 0
        %3176 = vmatprep.mubr.bf16.mxu0 0
        %3177 = vmatmul.mubr.bf16.gmra.mrb[0].mxu0 %v3139
        %v3178 = vpop.f32.mrb[0].mxu0
        %v3179 = vadd.f32 0.0, %v3178
        %v3180 = vpop.f32.mrb[0].mxu0
        %v3181 = vpop.f32.mrb[0].mxu0
        %v3182 = vpop.f32.mrb[0].mxu0
        %3183 = vdwg.mxu0
        %v3184 = vadd.f32 %v3136, %v3179
        %v3185 = vld [vmem:[%s766] sm:$0x3]
        %v3187 = vsel %vm552, %v2974, 0
        %v3190 = vsel %vm556, %v3185, 0
        %3192 = vmatprep.subr.bf16.mxu0 0
        %3193 = vmatpush1.bf16.msra.mxu0 %v3190
        %3194 = vmatprep.subr.bf16.mxu0 0
        %3195 = vmatpush1.bf16.msra.mxu0 0
        %3196 = vmatprep.subr.bf16.mxu0 0
        %3197 = vmatpush1.bf16.msra.mxu0 0
        %3198 = vmatprep.subr.bf16.mxu0 0
        %3199 = vmatpush1.bf16.msra.mxu0 0
        %3200 = vmatprep.subr.bf16.mxu0 0
        %3201 = vmatpush1.bf16.msra.mxu0 0
        %3202 = vmatprep.subr.bf16.mxu0 0
        %3203 = vmatpush1.bf16.msra.mxu0 0
        %3204 = vmatprep.subr.bf16.mxu0 0
        %3205 = vmatpush1.bf16.msra.mxu0 0
        %3206 = vmatprep.subr.bf16.mxu0 0
        %3207 = vmatpush1.bf16.msra.mxu0 0
        %3208 = vmatprep.subr.bf16.mxu0 0
        %3209 = vmatpush1.bf16.msra.mxu0 0
        %3210 = vmatprep.subr.bf16.mxu0 0
        %3211 = vmatpush1.bf16.msra.mxu0 0
        %3212 = vmatprep.subr.bf16.mxu0 0
        %3213 = vmatpush1.bf16.msra.mxu0 0
        %3214 = vmatprep.subr.bf16.mxu0 0
        %3215 = vmatpush1.bf16.msra.mxu0 0
        %3216 = vmatprep.subr.bf16.mxu0 0
        %3217 = vmatpush1.bf16.msra.mxu0 0
        %3218 = vmatprep.subr.bf16.mxu0 0
        %3219 = vmatpush1.bf16.msra.mxu0 0
        %3220 = vmatprep.subr.bf16.mxu0 0
        %3221 = vmatpush1.bf16.msra.mxu0 0
        %3222 = vmatprep.subr.bf16.mxu0 0
        %3223 = vmatpush1.bf16.msra.mxu0 0
        %3224 = vmatprep.mubr.bf16.mxu0 0
        %3225 = vmatmul.mubr.bf16.gmra.mrb[0].mxu0 %v3187
        %v3226 = vpop.f32.mrb[0].mxu0
        %v3227 = vadd.f32 0.0, %v3226
        %v3228 = vpop.f32.mrb[0].mxu0
        %v3229 = vpop.f32.mrb[0].mxu0
        %v3230 = vpop.f32.mrb[0].mxu0
        %3231 = vdwg.mxu0
        %v3232 = vadd.f32 %v3184, %v3227
        %v3233 = vld [vmem:[%s815] sm:$0x3]
        %v3236 = vunpack.c.l.b16 %v2972
        %v3237 = vunpack.c.l.b16 %v2975
        %v3238 = vpack.c.b16 %v3237, %v3236
        %v3240 = vshrl.u32 %v3238, 16
        %v3242 = vshll.u32 %v3238, 16
        %v3244 = vrot.slane %v3242, 1
        %v3245 = vor.u32 %v3240, %v3244
        %v3247 = vsel %vm552, %v3245, 0
        %v3250 = vsel %vm556, %v3233, 0
        %3252 = vmatprep.subr.bf16.mxu0 0
        %3253 = vmatpush1.bf16.msra.mxu0 %v3250
        %3254 = vmatprep.subr.bf16.mxu0 0
        %3255 = vmatpush1.bf16.msra.mxu0 0
        %3256 = vmatprep.subr.bf16.mxu0 0
        %3257 = vmatpush1.bf16.msra.mxu0 0
        %3258 = vmatprep.subr.bf16.mxu0 0
        %3259 = vmatpush1.bf16.msra.mxu0 0
        %3260 = vmatprep.subr.bf16.mxu0 0
        %3261 = vmatpush1.bf16.msra.mxu0 0
        %3262 = vmatprep.subr.bf16.mxu0 0
        %3263 = vmatpush1.bf16.msra.mxu0 0
        %3264 = vmatprep.subr.bf16.mxu0 0
        %3265 = vmatpush1.bf16.msra.mxu0 0
        %3266 = vmatprep.subr.bf16.mxu0 0
        %3267 = vmatpush1.bf16.msra.mxu0 0
        %3268 = vmatprep.subr.bf16.mxu0 0
        %3269 = vmatpush1.bf16.msra.mxu0 0
        %3270 = vmatprep.subr.bf16.mxu0 0
        %3271 = vmatpush1.bf16.msra.mxu0 0
        %3272 = vmatprep.subr.bf16.mxu0 0
        %3273 = vmatpush1.bf16.msra.mxu0 0
        %3274 = vmatprep.subr.bf16.mxu0 0
        %3275 = vmatpush1.bf16.msra.mxu0 0
        %3276 = vmatprep.subr.bf16.mxu0 0
        %3277 = vmatpush1.bf16.msra.mxu0 0
        %3278 = vmatprep.subr.bf16.mxu0 0
        %3279 = vmatpush1.bf16.msra.mxu0 0
        %3280 = vmatprep.subr.bf16.mxu0 0
        %3281 = vmatpush1.bf16.msra.mxu0 0
        %3282 = vmatprep.subr.bf16.mxu0 0
        %3283 = vmatpush1.bf16.msra.mxu0 0
        %3284 = vmatprep.mubr.bf16.mxu0 0
        %3285 = vmatmul.mubr.bf16.gmra.mrb[0].mxu0 %v3247
        %v3286 = vpop.f32.mrb[0].mxu0
        %v3287 = vadd.f32 0.0, %v3286
        %v3288 = vpop.f32.mrb[0].mxu0
        %v3289 = vpop.f32.mrb[0].mxu0
        %v3290 = vpop.f32.mrb[0].mxu0
        %3291 = vdwg.mxu0
        %v3292 = vadd.f32 %v3232, %v3287
        %v3293 = vld [vmem:[%s876] sm:$0x3]
        %v3295 = vsel %vm552, %v2977, 0
        %v3298 = vsel %vm556, %v3293, 0
        %3300 = vmatprep.subr.bf16.mxu0 0
        %3301 = vmatpush1.bf16.msra.mxu0 %v3298
        %3302 = vmatprep.subr.bf16.mxu0 0
        %3303 = vmatpush1.bf16.msra.mxu0 0
        %3304 = vmatprep.subr.bf16.mxu0 0
        %3305 = vmatpush1.bf16.msra.mxu0 0
        %3306 = vmatprep.subr.bf16.mxu0 0
        %3307 = vmatpush1.bf16.msra.mxu0 0
        %3308 = vmatprep.subr.bf16.mxu0 0
        %3309 = vmatpush1.bf16.msra.mxu0 0
        %3310 = vmatprep.subr.bf16.mxu0 0
        %3311 = vmatpush1.bf16.msra.mxu0 0
        %3312 = vmatprep.subr.bf16.mxu0 0
        %3313 = vmatpush1.bf16.msra.mxu0 0
        %3314 = vmatprep.subr.bf16.mxu0 0
        %3315 = vmatpush1.bf16.msra.mxu0 0
        %3316 = vmatprep.subr.bf16.mxu0 0
        %3317 = vmatpush1.bf16.msra.mxu0 0
        %3318 = vmatprep.subr.bf16.mxu0 0
        %3319 = vmatpush1.bf16.msra.mxu0 0
        %3320 = vmatprep.subr.bf16.mxu0 0
        %3321 = vmatpush1.bf16.msra.mxu0 0
        %3322 = vmatprep.subr.bf16.mxu0 0
        %3323 = vmatpush1.bf16.msra.mxu0 0
        %3324 = vmatprep.subr.bf16.mxu0 0
        %3325 = vmatpush1.bf16.msra.mxu0 0
        %3326 = vmatprep.subr.bf16.mxu0 0
        %3327 = vmatpush1.bf16.msra.mxu0 0
        %3328 = vmatprep.subr.bf16.mxu0 0
        %3329 = vmatpush1.bf16.msra.mxu0 0
        %3330 = vmatprep.subr.bf16.mxu0 0
        %3331 = vmatpush1.bf16.msra.mxu0 0
        %3332 = vmatprep.mubr.bf16.mxu0 0
        %3333 = vmatmul.mubr.bf16.gmra.mrb[0].mxu0 %v3295
        %v3334 = vpop.f32.mrb[0].mxu0
        %v3335 = vadd.f32 0.0, %v3334
        %v3336 = vpop.f32.mrb[0].mxu0
        %v3337 = vpop.f32.mrb[0].mxu0
        %v3338 = vpop.f32.mrb[0].mxu0
        %3339 = vdwg.mxu0
        %v3340 = vadd.f32 %v3292, %v3335
        %v3341 = vld [vmem:[%s925] sm:$0x3]
        %v3343 = vsel %vm552, %v2979, 0
        %v3346 = vsel %vm556, %v3341, 0
        %3348 = vmatprep.subr.bf16.mxu0 0
        %3349 = vmatpush1.bf16.msra.mxu0 %v3346
        %3350 = vmatprep.subr.bf16.mxu0 0
        %3351 = vmatpush1.bf16.msra.mxu0 0
        %3352 = vmatprep.subr.bf16.mxu0 0
        %3353 = vmatpush1.bf16.msra.mxu0 0
        %3354 = vmatprep.subr.bf16.mxu0 0
        %3355 = vmatpush1.bf16.msra.mxu0 0
        %3356 = vmatprep.subr.bf16.mxu0 0
        %3357 = vmatpush1.bf16.msra.mxu0 0
        %3358 = vmatprep.subr.bf16.mxu0 0
        %3359 = vmatpush1.bf16.msra.mxu0 0
        %3360 = vmatprep.subr.bf16.mxu0 0
        %3361 = vmatpush1.bf16.msra.mxu0 0
        %3362 = vmatprep.subr.bf16.mxu0 0
        %3363 = vmatpush1.bf16.msra.mxu0 0
        %3364 = vmatprep.subr.bf16.mxu0 0
        %3365 = vmatpush1.bf16.msra.mxu0 0
        %3366 = vmatprep.subr.bf16.mxu0 0
        %3367 = vmatpush1.bf16.msra.mxu0 0
        %3368 = vmatprep.subr.bf16.mxu0 0
        %3369 = vmatpush1.bf16.msra.mxu0 0
        %3370 = vmatprep.subr.bf16.mxu0 0
        %3371 = vmatpush1.bf16.msra.mxu0 0
        %3372 = vmatprep.subr.bf16.mxu0 0
        %3373 = vmatpush1.bf16.msra.mxu0 0
        %3374 = vmatprep.subr.bf16.mxu0 0
        %3375 = vmatpush1.bf16.msra.mxu0 0
        %3376 = vmatprep.subr.bf16.mxu0 0
        %3377 = vmatpush1.bf16.msra.mxu0 0
        %3378 = vmatprep.subr.bf16.mxu0 0
        %3379 = vmatpush1.bf16.msra.mxu0 0
        %3380 = vmatprep.mubr.bf16.mxu0 0
        %3381 = vmatmul.mubr.bf16.gmra.mrb[0].mxu0 %v3343
        %v3382 = vpop.f32.mrb[0].mxu0
        %v3383 = vadd.f32 0.0, %v3382
        %v3384 = vpop.f32.mrb[0].mxu0
        %v3385 = vpop.f32.mrb[0].mxu0
        %v3386 = vpop.f32.mrb[0].mxu0
        %3387 = vdwg.mxu0
        %v3388 = vadd.f32 %v3340, %v3383
        %v3389 = vld [vmem:[%s974] sm:$0x3]
        %v3392 = vunpack.c.l.b16 %v2977
        %v3393 = vunpack.c.l.b16 %v2980
        %v3394 = vpack.c.b16 %v3393, %v3392
        %v3396 = vshrl.u32 %v3394, 16
        %v3398 = vshll.u32 %v3394, 16
        %v3400 = vrot.slane %v3398, 1
        %v3401 = vor.u32 %v3396, %v3400
        %v3403 = vsel %vm552, %v3401, 0
        %v3406 = vsel %vm556, %v3389, 0
        %3408 = vmatprep.subr.bf16.mxu0 0
        %3409 = vmatpush1.bf16.msra.mxu0 %v3406
        %3410 = vmatprep.subr.bf16.mxu0 0
        %3411 = vmatpush1.bf16.msra.mxu0 0
        %3412 = vmatprep.subr.bf16.mxu0 0
        %3413 = vmatpush1.bf16.msra.mxu0 0
        %3414 = vmatprep.subr.bf16.mxu0 0
        %3415 = vmatpush1.bf16.msra.mxu0 0
        %3416 = vmatprep.subr.bf16.mxu0 0
        %3417 = vmatpush1.bf16.msra.mxu0 0
        %3418 = vmatprep.subr.bf16.mxu0 0
        %3419 = vmatpush1.bf16.msra.mxu0 0
        %3420 = vmatprep.subr.bf16.mxu0 0
        %3421 = vmatpush1.bf16.msra.mxu0 0
        %3422 = vmatprep.subr.bf16.mxu0 0
        %3423 = vmatpush1.bf16.msra.mxu0 0
        %3424 = vmatprep.subr.bf16.mxu0 0
        %3425 = vmatpush1.bf16.msra.mxu0 0
        %3426 = vmatprep.subr.bf16.mxu0 0
        %3427 = vmatpush1.bf16.msra.mxu0 0
        %3428 = vmatprep.subr.bf16.mxu0 0
        %3429 = vmatpush1.bf16.msra.mxu0 0
        %3430 = vmatprep.subr.bf16.mxu0 0
        %3431 = vmatpush1.bf16.msra.mxu0 0
        %3432 = vmatprep.subr.bf16.mxu0 0
        %3433 = vmatpush1.bf16.msra.mxu0 0
        %3434 = vmatprep.subr.bf16.mxu0 0
        %3435 = vmatpush1.bf16.msra.mxu0 0
        %3436 = vmatprep.subr.bf16.mxu0 0
        %3437 = vmatpush1.bf16.msra.mxu0 0
        %3438 = vmatprep.subr.bf16.mxu0 0
        %3439 = vmatpush1.bf16.msra.mxu0 0
        %3440 = vmatprep.mubr.bf16.mxu0 0
        %3441 = vmatmul.mubr.bf16.gmra.mrb[0].mxu0 %v3403
        %v3442 = vpop.f32.mrb[0].mxu0
        %v3443 = vadd.f32 0.0, %v3442
        %v3444 = vpop.f32.mrb[0].mxu0
        %v3445 = vpop.f32.mrb[0].mxu0
        %v3446 = vpop.f32.mrb[0].mxu0
        %3447 = vdwg.mxu0
        %v3448 = vadd.f32 %v3388, %v3443
        %s3449 = scalar_lea.vmem %s469, 40 [#allocation2]
        %3450 = vst [vmem:[%s3449] sm:$0xff] %v3448
        %v3451 = vld [vmem:[%s2976] sm:$0xf]
        %v3452 = vld [vmem:[%s2978] sm:$0xf]
        %v3453 = vld [vmem:[%s2976 + $0x4] sm:$0x1]
        %s3454 = scalar_lea.vmem %s500, 48
        %v3455 = vld [vmem:[%s3454] sm:$0xf]
        %s3456 = scalar_lea.vmem %s510, 24
        %v3457 = vld [vmem:[%s3456] sm:$0xf]
        %v3458 = vld [vmem:[%s3454 + $0x4] sm:$0x1]
        %s3459 = scalar_lea.vmem %s479, 56
        %v3460 = vld [vmem:[%s3459] sm:$0xf]
        %s3461 = scalar_lea.vmem %s489, 28
        %v3462 = vld [vmem:[%s3461] sm:$0xf]
        %v3463 = vld [vmem:[%s3459 + $0x4] sm:$0x1]
        %v3464 = vld [vmem:[%s6] sm:$0x3]
        %v3466 = vsel %vm552, %v3451, 0
        %v3469 = vsel %vm556, %v3464, 0
        %3471 = vmatprep.subr.bf16.mxu0 0
        %3472 = vmatpush1.bf16.msra.mxu0 %v3469
        %3473 = vmatprep.subr.bf16.mxu0 0
        %3474 = vmatpush1.bf16.msra.mxu0 0
        %3475 = vmatprep.subr.bf16.mxu0 0
        %3476 = vmatpush1.bf16.msra.mxu0 0
        %3477 = vmatprep.subr.bf16.mxu0 0
        %3478 = vmatpush1.bf16.msra.mxu0 0
        %3479 = vmatprep.subr.bf16.mxu0 0
        %3480 = vmatpush1.bf16.msra.mxu0 0
        %3481 = vmatprep.subr.bf16.mxu0 0
        %3482 = vmatpush1.bf16.msra.mxu0 0
        %3483 = vmatprep.subr.bf16.mxu0 0
        %3484 = vmatpush1.bf16.msra.mxu0 0
        %3485 = vmatprep.subr.bf16.mxu0 0
        %3486 = vmatpush1.bf16.msra.mxu0 0
        %3487 = vmatprep.subr.bf16.mxu0 0
        %3488 = vmatpush1.bf16.msra.mxu0 0
        %3489 = vmatprep.subr.bf16.mxu0 0
        %3490 = vmatpush1.bf16.msra.mxu0 0
        %3491 = vmatprep.subr.bf16.mxu0 0
        %3492 = vmatpush1.bf16.msra.mxu0 0
        %3493 = vmatprep.subr.bf16.mxu0 0
        %3494 = vmatpush1.bf16.msra.mxu0 0
        %3495 = vmatprep.subr.bf16.mxu0 0
        %3496 = vmatpush1.bf16.msra.mxu0 0
        %3497 = vmatprep.subr.bf16.mxu0 0
        %3498 = vmatpush1.bf16.msra.mxu0 0
        %3499 = vmatprep.subr.bf16.mxu0 0
        %3500 = vmatpush1.bf16.msra.mxu0 0
        %3501 = vmatprep.subr.bf16.mxu0 0
        %3502 = vmatpush1.bf16.msra.mxu0 0
        %3503 = vmatprep.mubr.bf16.mxu0 0
        %3504 = vmatmul.mubr.bf16.gmra.mrb[0].mxu0 %v3466
        %v3505 = vpop.f32.mrb[0].mxu0
        %v3506 = vadd.f32 0.0, %v3505
        %v3507 = vpop.f32.mrb[0].mxu0
        %v3508 = vpop.f32.mrb[0].mxu0
        %v3509 = vpop.f32.mrb[0].mxu0
        %3510 = vdwg.mxu0
        %v3511 = vadd.f32 %v604, %v3506
        %v3512 = vld [vmem:[%s607] sm:$0x3]
        %v3514 = vsel %vm552, %v3452, 0
        %v3517 = vsel %vm556, %v3512, 0
        %3519 = vmatprep.subr.bf16.mxu0 0
        %3520 = vmatpush1.bf16.msra.mxu0 %v3517
        %3521 = vmatprep.subr.bf16.mxu0 0
        %3522 = vmatpush1.bf16.msra.mxu0 0
        %3523 = vmatprep.subr.bf16.mxu0 0
        %3524 = vmatpush1.bf16.msra.mxu0 0
        %3525 = vmatprep.subr.bf16.mxu0 0
        %3526 = vmatpush1.bf16.msra.mxu0 0
        %3527 = vmatprep.subr.bf16.mxu0 0
        %3528 = vmatpush1.bf16.msra.mxu0 0
        %3529 = vmatprep.subr.bf16.mxu0 0
        %3530 = vmatpush1.bf16.msra.mxu0 0
        %3531 = vmatprep.subr.bf16.mxu0 0
        %3532 = vmatpush1.bf16.msra.mxu0 0
        %3533 = vmatprep.subr.bf16.mxu0 0
        %3534 = vmatpush1.bf16.msra.mxu0 0
        %3535 = vmatprep.subr.bf16.mxu0 0
        %3536 = vmatpush1.bf16.msra.mxu0 0
        %3537 = vmatprep.subr.bf16.mxu0 0
        %3538 = vmatpush1.bf16.msra.mxu0 0
        %3539 = vmatprep.subr.bf16.mxu0 0
        %3540 = vmatpush1.bf16.msra.mxu0 0
        %3541 = vmatprep.subr.bf16.mxu0 0
        %3542 = vmatpush1.bf16.msra.mxu0 0
        %3543 = vmatprep.subr.bf16.mxu0 0
        %3544 = vmatpush1.bf16.msra.mxu0 0
        %3545 = vmatprep.subr.bf16.mxu0 0
        %3546 = vmatpush1.bf16.msra.mxu0 0
        %3547 = vmatprep.subr.bf16.mxu0 0
        %3548 = vmatpush1.bf16.msra.mxu0 0
        %3549 = vmatprep.subr.bf16.mxu0 0
        %3550 = vmatpush1.bf16.msra.mxu0 0
        %3551 = vmatprep.mubr.bf16.mxu0 0
        %3552 = vmatmul.mubr.bf16.gmra.mrb[0].mxu0 %v3514
        %v3553 = vpop.f32.mrb[0].mxu0
        %v3554 = vadd.f32 0.0, %v3553
        %v3555 = vpop.f32.mrb[0].mxu0
        %v3556 = vpop.f32.mrb[0].mxu0
        %v3557 = vpop.f32.mrb[0].mxu0
        %3558 = vdwg.mxu0
        %v3559 = vadd.f32 %v3511, %v3554
        %v3560 = vld [vmem:[%s656] sm:$0x3]
        %v3563 = vunpack.c.l.b16 %v3451
        %v3564 = vunpack.c.l.b16 %v3453
        %v3565 = vpack.c.b16 %v3564, %v3563
        %v3567 = vshrl.u32 %v3565, 16
        %v3569 = vshll.u32 %v3565, 16
        %v3571 = vrot.slane %v3569, 1
        %v3572 = vor.u32 %v3567, %v3571
        %v3574 = vsel %vm552, %v3572, 0
        %v3577 = vsel %vm556, %v3560, 0
        %3579 = vmatprep.subr.bf16.mxu0 0
        %3580 = vmatpush1.bf16.msra.mxu0 %v3577
        %3581 = vmatprep.subr.bf16.mxu0 0
        %3582 = vmatpush1.bf16.msra.mxu0 0
        %3583 = vmatprep.subr.bf16.mxu0 0
        %3584 = vmatpush1.bf16.msra.mxu0 0
        %3585 = vmatprep.subr.bf16.mxu0 0
        %3586 = vmatpush1.bf16.msra.mxu0 0
        %3587 = vmatprep.subr.bf16.mxu0 0
        %3588 = vmatpush1.bf16.msra.mxu0 0
        %3589 = vmatprep.subr.bf16.mxu0 0
        %3590 = vmatpush1.bf16.msra.mxu0 0
        %3591 = vmatprep.subr.bf16.mxu0 0
        %3592 = vmatpush1.bf16.msra.mxu0 0
        %3593 = vmatprep.subr.bf16.mxu0 0
        %3594 = vmatpush1.bf16.msra.mxu0 0
        %3595 = vmatprep.subr.bf16.mxu0 0
        %3596 = vmatpush1.bf16.msra.mxu0 0
        %3597 = vmatprep.subr.bf16.mxu0 0
        %3598 = vmatpush1.bf16.msra.mxu0 0
        %3599 = vmatprep.subr.bf16.mxu0 0
        %3600 = vmatpush1.bf16.msra.mxu0 0
        %3601 = vmatprep.subr.bf16.mxu0 0
        %3602 = vmatpush1.bf16.msra.mxu0 0
        %3603 = vmatprep.subr.bf16.mxu0 0
        %3604 = vmatpush1.bf16.msra.mxu0 0
        %3605 = vmatprep.subr.bf16.mxu0 0
        %3606 = vmatpush1.bf16.msra.mxu0 0
        %3607 = vmatprep.subr.bf16.mxu0 0
        %3608 = vmatpush1.bf16.msra.mxu0 0
        %3609 = vmatprep.subr.bf16.mxu0 0
        %3610 = vmatpush1.bf16.msra.mxu0 0
        %3611 = vmatprep.mubr.bf16.mxu0 0
        %3612 = vmatmul.mubr.bf16.gmra.mrb[0].mxu0 %v3574
        %v3613 = vpop.f32.mrb[0].mxu0
        %v3614 = vadd.f32 0.0, %v3613
        %v3615 = vpop.f32.mrb[0].mxu0
        %v3616 = vpop.f32.mrb[0].mxu0
        %v3617 = vpop.f32.mrb[0].mxu0
        %3618 = vdwg.mxu0
        %v3619 = vadd.f32 %v3559, %v3614
        %v3620 = vld [vmem:[%s717] sm:$0x3]
        %v3622 = vsel %vm552, %v3455, 0
        %v3625 = vsel %vm556, %v3620, 0
        %3627 = vmatprep.subr.bf16.mxu0 0
        %3628 = vmatpush1.bf16.msra.mxu0 %v3625
        %3629 = vmatprep.subr.bf16.mxu0 0
        %3630 = vmatpush1.bf16.msra.mxu0 0
        %3631 = vmatprep.subr.bf16.mxu0 0
        %3632 = vmatpush1.bf16.msra.mxu0 0
        %3633 = vmatprep.subr.bf16.mxu0 0
        %3634 = vmatpush1.bf16.msra.mxu0 0
        %3635 = vmatprep.subr.bf16.mxu0 0
        %3636 = vmatpush1.bf16.msra.mxu0 0
        %3637 = vmatprep.subr.bf16.mxu0 0
        %3638 = vmatpush1.bf16.msra.mxu0 0
        %3639 = vmatprep.subr.bf16.mxu0 0
        %3640 = vmatpush1.bf16.msra.mxu0 0
        %3641 = vmatprep.subr.bf16.mxu0 0
        %3642 = vmatpush1.bf16.msra.mxu0 0
        %3643 = vmatprep.subr.bf16.mxu0 0
        %3644 = vmatpush1.bf16.msra.mxu0 0
        %3645 = vmatprep.subr.bf16.mxu0 0
        %3646 = vmatpush1.bf16.msra.mxu0 0
        %3647 = vmatprep.subr.bf16.mxu0 0
        %3648 = vmatpush1.bf16.msra.mxu0 0
        %3649 = vmatprep.subr.bf16.mxu0 0
        %3650 = vmatpush1.bf16.msra.mxu0 0
        %3651 = vmatprep.subr.bf16.mxu0 0
        %3652 = vmatpush1.bf16.msra.mxu0 0
        %3653 = vmatprep.subr.bf16.mxu0 0
        %3654 = vmatpush1.bf16.msra.mxu0 0
        %3655 = vmatprep.subr.bf16.mxu0 0
        %3656 = vmatpush1.bf16.msra.mxu0 0
        %3657 = vmatprep.subr.bf16.mxu0 0
        %3658 = vmatpush1.bf16.msra.mxu0 0
        %3659 = vmatprep.mubr.bf16.mxu0 0
        %3660 = vmatmul.mubr.bf16.gmra.mrb[0].mxu0 %v3622
        %v3661 = vpop.f32.mrb[0].mxu0
        %v3662 = vadd.f32 0.0, %v3661
        %v3663 = vpop.f32.mrb[0].mxu0
        %v3664 = vpop.f32.mrb[0].mxu0
        %v3665 = vpop.f32.mrb[0].mxu0
        %3666 = vdwg.mxu0
        %v3667 = vadd.f32 %v3619, %v3662
        %v3668 = vld [vmem:[%s766] sm:$0x3]
        %v3670 = vsel %vm552, %v3457, 0
        %v3673 = vsel %vm556, %v3668, 0
        %3675 = vmatprep.subr.bf16.mxu0 0
        %3676 = vmatpush1.bf16.msra.mxu0 %v3673
        %3677 = vmatprep.subr.bf16.mxu0 0
        %3678 = vmatpush1.bf16.msra.mxu0 0
        %3679 = vmatprep.subr.bf16.mxu0 0
        %3680 = vmatpush1.bf16.msra.mxu0 0
        %3681 = vmatprep.subr.bf16.mxu0 0
        %3682 = vmatpush1.bf16.msra.mxu0 0
        %3683 = vmatprep.subr.bf16.mxu0 0
        %3684 = vmatpush1.bf16.msra.mxu0 0
        %3685 = vmatprep.subr.bf16.mxu0 0
        %3686 = vmatpush1.bf16.msra.mxu0 0
        %3687 = vmatprep.subr.bf16.mxu0 0
        %3688 = vmatpush1.bf16.msra.mxu0 0
        %3689 = vmatprep.subr.bf16.mxu0 0
        %3690 = vmatpush1.bf16.msra.mxu0 0
        %3691 = vmatprep.subr.bf16.mxu0 0
        %3692 = vmatpush1.bf16.msra.mxu0 0
        %3693 = vmatprep.subr.bf16.mxu0 0
        %3694 = vmatpush1.bf16.msra.mxu0 0
        %3695 = vmatprep.subr.bf16.mxu0 0
        %3696 = vmatpush1.bf16.msra.mxu0 0
        %3697 = vmatprep.subr.bf16.mxu0 0
        %3698 = vmatpush1.bf16.msra.mxu0 0
        %3699 = vmatprep.subr.bf16.mxu0 0
        %3700 = vmatpush1.bf16.msra.mxu0 0
        %3701 = vmatprep.subr.bf16.mxu0 0
        %3702 = vmatpush1.bf16.msra.mxu0 0
        %3703 = vmatprep.subr.bf16.mxu0 0
        %3704 = vmatpush1.bf16.msra.mxu0 0
        %3705 = vmatprep.subr.bf16.mxu0 0
        %3706 = vmatpush1.bf16.msra.mxu0 0
        %3707 = vmatprep.mubr.bf16.mxu0 0
        %3708 = vmatmul.mubr.bf16.gmra.mrb[0].mxu0 %v3670
        %v3709 = vpop.f32.mrb[0].mxu0
        %v3710 = vadd.f32 0.0, %v3709
        %v3711 = vpop.f32.mrb[0].mxu0
        %v3712 = vpop.f32.mrb[0].mxu0
        %v3713 = vpop.f32.mrb[0].mxu0
        %3714 = vdwg.mxu0
        %v3715 = vadd.f32 %v3667, %v3710
        %v3716 = vld [vmem:[%s815] sm:$0x3]
        %v3719 = vunpack.c.l.b16 %v3455
        %v3720 = vunpack.c.l.b16 %v3458
        %v3721 = vpack.c.b16 %v3720, %v3719
        %v3723 = vshrl.u32 %v3721, 16
        %v3725 = vshll.u32 %v3721, 16
        %v3727 = vrot.slane %v3725, 1
        %v3728 = vor.u32 %v3723, %v3727
        %v3730 = vsel %vm552, %v3728, 0
        %v3733 = vsel %vm556, %v3716, 0
        %3735 = vmatprep.subr.bf16.mxu0 0
        %3736 = vmatpush1.bf16.msra.mxu0 %v3733
        %3737 = vmatprep.subr.bf16.mxu0 0
        %3738 = vmatpush1.bf16.msra.mxu0 0
        %3739 = vmatprep.subr.bf16.mxu0 0
        %3740 = vmatpush1.bf16.msra.mxu0 0
        %3741 = vmatprep.subr.bf16.mxu0 0
        %3742 = vmatpush1.bf16.msra.mxu0 0
        %3743 = vmatprep.subr.bf16.mxu0 0
        %3744 = vmatpush1.bf16.msra.mxu0 0
        %3745 = vmatprep.subr.bf16.mxu0 0
        %3746 = vmatpush1.bf16.msra.mxu0 0
        %3747 = vmatprep.subr.bf16.mxu0 0
        %3748 = vmatpush1.bf16.msra.mxu0 0
        %3749 = vmatprep.subr.bf16.mxu0 0
        %3750 = vmatpush1.bf16.msra.mxu0 0
        %3751 = vmatprep.subr.bf16.mxu0 0
        %3752 = vmatpush1.bf16.msra.mxu0 0
        %3753 = vmatprep.subr.bf16.mxu0 0
        %3754 = vmatpush1.bf16.msra.mxu0 0
        %3755 = vmatprep.subr.bf16.mxu0 0
        %3756 = vmatpush1.bf16.msra.mxu0 0
        %3757 = vmatprep.subr.bf16.mxu0 0
        %3758 = vmatpush1.bf16.msra.mxu0 0
        %3759 = vmatprep.subr.bf16.mxu0 0
        %3760 = vmatpush1.bf16.msra.mxu0 0
        %3761 = vmatprep.subr.bf16.mxu0 0
        %3762 = vmatpush1.bf16.msra.mxu0 0
        %3763 = vmatprep.subr.bf16.mxu0 0
        %3764 = vmatpush1.bf16.msra.mxu0 0
        %3765 = vmatprep.subr.bf16.mxu0 0
        %3766 = vmatpush1.bf16.msra.mxu0 0
        %3767 = vmatprep.mubr.bf16.mxu0 0
        %3768 = vmatmul.mubr.bf16.gmra.mrb[0].mxu0 %v3730
        %v3769 = vpop.f32.mrb[0].mxu0
        %v3770 = vadd.f32 0.0, %v3769
        %v3771 = vpop.f32.mrb[0].mxu0
        %v3772 = vpop.f32.mrb[0].mxu0
        %v3773 = vpop.f32.mrb[0].mxu0
        %3774 = vdwg.mxu0
        %v3775 = vadd.f32 %v3715, %v3770
        %v3776 = vld [vmem:[%s876] sm:$0x3]
        %v3778 = vsel %vm552, %v3460, 0
        %v3781 = vsel %vm556, %v3776, 0
        %3783 = vmatprep.subr.bf16.mxu0 0
        %3784 = vmatpush1.bf16.msra.mxu0 %v3781
        %3785 = vmatprep.subr.bf16.mxu0 0
        %3786 = vmatpush1.bf16.msra.mxu0 0
        %3787 = vmatprep.subr.bf16.mxu0 0
        %3788 = vmatpush1.bf16.msra.mxu0 0
        %3789 = vmatprep.subr.bf16.mxu0 0
        %3790 = vmatpush1.bf16.msra.mxu0 0
        %3791 = vmatprep.subr.bf16.mxu0 0
        %3792 = vmatpush1.bf16.msra.mxu0 0
        %3793 = vmatprep.subr.bf16.mxu0 0
        %3794 = vmatpush1.bf16.msra.mxu0 0
        %3795 = vmatprep.subr.bf16.mxu0 0
        %3796 = vmatpush1.bf16.msra.mxu0 0
        %3797 = vmatprep.subr.bf16.mxu0 0
        %3798 = vmatpush1.bf16.msra.mxu0 0
        %3799 = vmatprep.subr.bf16.mxu0 0
        %3800 = vmatpush1.bf16.msra.mxu0 0
        %3801 = vmatprep.subr.bf16.mxu0 0
        %3802 = vmatpush1.bf16.msra.mxu0 0
        %3803 = vmatprep.subr.bf16.mxu0 0
        %3804 = vmatpush1.bf16.msra.mxu0 0
        %3805 = vmatprep.subr.bf16.mxu0 0
        %3806 = vmatpush1.bf16.msra.mxu0 0
        %3807 = vmatprep.subr.bf16.mxu0 0
        %3808 = vmatpush1.bf16.msra.mxu0 0
        %3809 = vmatprep.subr.bf16.mxu0 0
        %3810 = vmatpush1.bf16.msra.mxu0 0
        %3811 = vmatprep.subr.bf16.mxu0 0
        %3812 = vmatpush1.bf16.msra.mxu0 0
        %3813 = vmatprep.subr.bf16.mxu0 0
        %3814 = vmatpush1.bf16.msra.mxu0 0
        %3815 = vmatprep.mubr.bf16.mxu0 0
        %3816 = vmatmul.mubr.bf16.gmra.mrb[0].mxu0 %v3778
        %v3817 = vpop.f32.mrb[0].mxu0
        %v3818 = vadd.f32 0.0, %v3817
        %v3819 = vpop.f32.mrb[0].mxu0
        %v3820 = vpop.f32.mrb[0].mxu0
        %v3821 = vpop.f32.mrb[0].mxu0
        %3822 = vdwg.mxu0
        %v3823 = vadd.f32 %v3775, %v3818
        %v3824 = vld [vmem:[%s925] sm:$0x3]
        %v3826 = vsel %vm552, %v3462, 0
        %v3829 = vsel %vm556, %v3824, 0
        %3831 = vmatprep.subr.bf16.mxu0 0
        %3832 = vmatpush1.bf16.msra.mxu0 %v3829
        %3833 = vmatprep.subr.bf16.mxu0 0
        %3834 = vmatpush1.bf16.msra.mxu0 0
        %3835 = vmatprep.subr.bf16.mxu0 0
        %3836 = vmatpush1.bf16.msra.mxu0 0
        %3837 = vmatprep.subr.bf16.mxu0 0
        %3838 = vmatpush1.bf16.msra.mxu0 0
        %3839 = vmatprep.subr.bf16.mxu0 0
        %3840 = vmatpush1.bf16.msra.mxu0 0
        %3841 = vmatprep.subr.bf16.mxu0 0
        %3842 = vmatpush1.bf16.msra.mxu0 0
        %3843 = vmatprep.subr.bf16.mxu0 0
        %3844 = vmatpush1.bf16.msra.mxu0 0
        %3845 = vmatprep.subr.bf16.mxu0 0
        %3846 = vmatpush1.bf16.msra.mxu0 0
        %3847 = vmatprep.subr.bf16.mxu0 0
        %3848 = vmatpush1.bf16.msra.mxu0 0
        %3849 = vmatprep.subr.bf16.mxu0 0
        %3850 = vmatpush1.bf16.msra.mxu0 0
        %3851 = vmatprep.subr.bf16.mxu0 0
        %3852 = vmatpush1.bf16.msra.mxu0 0
        %3853 = vmatprep.subr.bf16.mxu0 0
        %3854 = vmatpush1.bf16.msra.mxu0 0
        %3855 = vmatprep.subr.bf16.mxu0 0
        %3856 = vmatpush1.bf16.msra.mxu0 0
        %3857 = vmatprep.subr.bf16.mxu0 0
        %3858 = vmatpush1.bf16.msra.mxu0 0
        %3859 = vmatprep.subr.bf16.mxu0 0
        %3860 = vmatpush1.bf16.msra.mxu0 0
        %3861 = vmatprep.subr.bf16.mxu0 0
        %3862 = vmatpush1.bf16.msra.mxu0 0
        %3863 = vmatprep.mubr.bf16.mxu0 0
        %3864 = vmatmul.mubr.bf16.gmra.mrb[0].mxu0 %v3826
        %v3865 = vpop.f32.mrb[0].mxu0
        %v3866 = vadd.f32 0.0, %v3865
        %v3867 = vpop.f32.mrb[0].mxu0
        %v3868 = vpop.f32.mrb[0].mxu0
        %v3869 = vpop.f32.mrb[0].mxu0
        %3870 = vdwg.mxu0
        %v3871 = vadd.f32 %v3823, %v3866
        %v3872 = vld [vmem:[%s974] sm:$0x3]
        %v3875 = vunpack.c.l.b16 %v3460
        %v3876 = vunpack.c.l.b16 %v3463
        %v3877 = vpack.c.b16 %v3876, %v3875
        %v3879 = vshrl.u32 %v3877, 16
        %v3881 = vshll.u32 %v3877, 16
        %v3883 = vrot.slane %v3881, 1
        %v3884 = vor.u32 %v3879, %v3883
        %v3886 = vsel %vm552, %v3884, 0
        %v3889 = vsel %vm556, %v3872, 0
        %3891 = vmatprep.subr.bf16.mxu0 0
        %3892 = vmatpush1.bf16.msra.mxu0 %v3889
        %3893 = vmatprep.subr.bf16.mxu0 0
        %3894 = vmatpush1.bf16.msra.mxu0 0
        %3895 = vmatprep.subr.bf16.mxu0 0
        %3896 = vmatpush1.bf16.msra.mxu0 0
        %3897 = vmatprep.subr.bf16.mxu0 0
        %3898 = vmatpush1.bf16.msra.mxu0 0
        %3899 = vmatprep.subr.bf16.mxu0 0
        %3900 = vmatpush1.bf16.msra.mxu0 0
        %3901 = vmatprep.subr.bf16.mxu0 0
        %3902 = vmatpush1.bf16.msra.mxu0 0
        %3903 = vmatprep.subr.bf16.mxu0 0
        %3904 = vmatpush1.bf16.msra.mxu0 0
        %3905 = vmatprep.subr.bf16.mxu0 0
        %3906 = vmatpush1.bf16.msra.mxu0 0
        %3907 = vmatprep.subr.bf16.mxu0 0
        %3908 = vmatpush1.bf16.msra.mxu0 0
        %3909 = vmatprep.subr.bf16.mxu0 0
        %3910 = vmatpush1.bf16.msra.mxu0 0
        %3911 = vmatprep.subr.bf16.mxu0 0
        %3912 = vmatpush1.bf16.msra.mxu0 0
        %3913 = vmatprep.subr.bf16.mxu0 0
        %3914 = vmatpush1.bf16.msra.mxu0 0
        %3915 = vmatprep.subr.bf16.mxu0 0
        %3916 = vmatpush1.bf16.msra.mxu0 0
        %3917 = vmatprep.subr.bf16.mxu0 0
        %3918 = vmatpush1.bf16.msra.mxu0 0
        %3919 = vmatprep.subr.bf16.mxu0 0
        %3920 = vmatpush1.bf16.msra.mxu0 0
        %3921 = vmatprep.subr.bf16.mxu0 0
        %3922 = vmatpush1.bf16.msra.mxu0 0
        %3923 = vmatprep.mubr.bf16.mxu0 0
        %3924 = vmatmul.mubr.bf16.gmra.mrb[0].mxu0 %v3886
        %v3925 = vpop.f32.mrb[0].mxu0
        %v3926 = vadd.f32 0.0, %v3925
        %v3927 = vpop.f32.mrb[0].mxu0
        %v3928 = vpop.f32.mrb[0].mxu0
        %v3929 = vpop.f32.mrb[0].mxu0
        %3930 = vdwg.mxu0
        %v3931 = vadd.f32 %v3871, %v3926
        %s3932 = scalar_lea.vmem %s469, 48 [#allocation2]
        %3933 = vst [vmem:[%s3932] sm:$0xff] %v3931
        %v3934 = vld [vmem:[%s3459] sm:$0xf]
        %v3935 = vld [vmem:[%s3461] sm:$0xf]
        %v3936 = vld [vmem:[%s3459 + $0x4] sm:$0x1]
        %s3937 = scalar_lea.vmem %s500, 56
        %v3938 = vld [vmem:[%s3937] sm:$0xf]
        %s3939 = scalar_lea.vmem %s510, 28
        %v3940 = vld [vmem:[%s3939] sm:$0xf]
        %v3941 = vld [vmem:[%s3937 + $0x4] sm:$0x1]
        %v3942 = vld [vmem:[%s522] sm:$0xf]
        %v3943 = vld [vmem:[%s534] sm:$0xf]
        %v3944 = vld [vmem:[%s522 + $0x4] sm:$0x1]
        %v3945 = vld [vmem:[%s6] sm:$0x3]
        %v3947 = vsel %vm552, %v3934, 0
        %v3950 = vsel %vm556, %v3945, 0
        %3952 = vmatprep.subr.bf16.mxu0 0
        %3953 = vmatpush1.bf16.msra.mxu0 %v3950
        %3954 = vmatprep.subr.bf16.mxu0 0
        %3955 = vmatpush1.bf16.msra.mxu0 0
        %3956 = vmatprep.subr.bf16.mxu0 0
        %3957 = vmatpush1.bf16.msra.mxu0 0
        %3958 = vmatprep.subr.bf16.mxu0 0
        %3959 = vmatpush1.bf16.msra.mxu0 0
        %3960 = vmatprep.subr.bf16.mxu0 0
        %3961 = vmatpush1.bf16.msra.mxu0 0
        %3962 = vmatprep.subr.bf16.mxu0 0
        %3963 = vmatpush1.bf16.msra.mxu0 0
        %3964 = vmatprep.subr.bf16.mxu0 0
        %3965 = vmatpush1.bf16.msra.mxu0 0
        %3966 = vmatprep.subr.bf16.mxu0 0
        %3967 = vmatpush1.bf16.msra.mxu0 0
        %3968 = vmatprep.subr.bf16.mxu0 0
        %3969 = vmatpush1.bf16.msra.mxu0 0
        %3970 = vmatprep.subr.bf16.mxu0 0
        %3971 = vmatpush1.bf16.msra.mxu0 0
        %3972 = vmatprep.subr.bf16.mxu0 0
        %3973 = vmatpush1.bf16.msra.mxu0 0
        %3974 = vmatprep.subr.bf16.mxu0 0
        %3975 = vmatpush1.bf16.msra.mxu0 0
        %3976 = vmatprep.subr.bf16.mxu0 0
        %3977 = vmatpush1.bf16.msra.mxu0 0
        %3978 = vmatprep.subr.bf16.mxu0 0
        %3979 = vmatpush1.bf16.msra.mxu0 0
        %3980 = vmatprep.subr.bf16.mxu0 0
        %3981 = vmatpush1.bf16.msra.mxu0 0
        %3982 = vmatprep.subr.bf16.mxu0 0
        %3983 = vmatpush1.bf16.msra.mxu0 0
        %3984 = vmatprep.mubr.bf16.mxu0 0
        %3985 = vmatmul.mubr.bf16.gmra.mrb[0].mxu0 %v3947
        %v3986 = vpop.f32.mrb[0].mxu0
        %v3987 = vadd.f32 0.0, %v3986
        %v3988 = vpop.f32.mrb[0].mxu0
        %v3989 = vpop.f32.mrb[0].mxu0
        %v3990 = vpop.f32.mrb[0].mxu0
        %3991 = vdwg.mxu0
        %v3992 = vadd.f32 %v604, %v3987
        %v3993 = vld [vmem:[%s607] sm:$0x3]
        %v3995 = vsel %vm552, %v3935, 0
        %v3998 = vsel %vm556, %v3993, 0
        %4000 = vmatprep.subr.bf16.mxu0 0
        %4001 = vmatpush1.bf16.msra.mxu0 %v3998
        %4002 = vmatprep.subr.bf16.mxu0 0
        %4003 = vmatpush1.bf16.msra.mxu0 0
        %4004 = vmatprep.subr.bf16.mxu0 0
        %4005 = vmatpush1.bf16.msra.mxu0 0
        %4006 = vmatprep.subr.bf16.mxu0 0
        %4007 = vmatpush1.bf16.msra.mxu0 0
        %4008 = vmatprep.subr.bf16.mxu0 0
        %4009 = vmatpush1.bf16.msra.mxu0 0
        %4010 = vmatprep.subr.bf16.mxu0 0
        %4011 = vmatpush1.bf16.msra.mxu0 0
        %4012 = vmatprep.subr.bf16.mxu0 0
        %4013 = vmatpush1.bf16.msra.mxu0 0
        %4014 = vmatprep.subr.bf16.mxu0 0
        %4015 = vmatpush1.bf16.msra.mxu0 0
        %4016 = vmatprep.subr.bf16.mxu0 0
        %4017 = vmatpush1.bf16.msra.mxu0 0
        %4018 = vmatprep.subr.bf16.mxu0 0
        %4019 = vmatpush1.bf16.msra.mxu0 0
        %4020 = vmatprep.subr.bf16.mxu0 0
        %4021 = vmatpush1.bf16.msra.mxu0 0
        %4022 = vmatprep.subr.bf16.mxu0 0
        %4023 = vmatpush1.bf16.msra.mxu0 0
        %4024 = vmatprep.subr.bf16.mxu0 0
        %4025 = vmatpush1.bf16.msra.mxu0 0
        %4026 = vmatprep.subr.bf16.mxu0 0
        %4027 = vmatpush1.bf16.msra.mxu0 0
        %4028 = vmatprep.subr.bf16.mxu0 0
        %4029 = vmatpush1.bf16.msra.mxu0 0
        %4030 = vmatprep.subr.bf16.mxu0 0
        %4031 = vmatpush1.bf16.msra.mxu0 0
        %4032 = vmatprep.mubr.bf16.mxu0 0
        %4033 = vmatmul.mubr.bf16.gmra.mrb[0].mxu0 %v3995
        %v4034 = vpop.f32.mrb[0].mxu0
        %v4035 = vadd.f32 0.0, %v4034
        %v4036 = vpop.f32.mrb[0].mxu0
        %v4037 = vpop.f32.mrb[0].mxu0
        %v4038 = vpop.f32.mrb[0].mxu0
        %4039 = vdwg.mxu0
        %v4040 = vadd.f32 %v3992, %v4035
        %v4041 = vld [vmem:[%s656] sm:$0x3]
        %v4044 = vunpack.c.l.b16 %v3934
        %v4045 = vunpack.c.l.b16 %v3936
        %v4046 = vpack.c.b16 %v4045, %v4044
        %v4048 = vshrl.u32 %v4046, 16
        %v4050 = vshll.u32 %v4046, 16
        %v4052 = vrot.slane %v4050, 1
        %v4053 = vor.u32 %v4048, %v4052
        %v4055 = vsel %vm552, %v4053, 0
        %v4058 = vsel %vm556, %v4041, 0
        %4060 = vmatprep.subr.bf16.mxu0 0
        %4061 = vmatpush1.bf16.msra.mxu0 %v4058
        %4062 = vmatprep.subr.bf16.mxu0 0
        %4063 = vmatpush1.bf16.msra.mxu0 0
        %4064 = vmatprep.subr.bf16.mxu0 0
        %4065 = vmatpush1.bf16.msra.mxu0 0
        %4066 = vmatprep.subr.bf16.mxu0 0
        %4067 = vmatpush1.bf16.msra.mxu0 0
        %4068 = vmatprep.subr.bf16.mxu0 0
        %4069 = vmatpush1.bf16.msra.mxu0 0
        %4070 = vmatprep.subr.bf16.mxu0 0
        %4071 = vmatpush1.bf16.msra.mxu0 0
        %4072 = vmatprep.subr.bf16.mxu0 0
        %4073 = vmatpush1.bf16.msra.mxu0 0
        %4074 = vmatprep.subr.bf16.mxu0 0
        %4075 = vmatpush1.bf16.msra.mxu0 0
        %4076 = vmatprep.subr.bf16.mxu0 0
        %4077 = vmatpush1.bf16.msra.mxu0 0
        %4078 = vmatprep.subr.bf16.mxu0 0
        %4079 = vmatpush1.bf16.msra.mxu0 0
        %4080 = vmatprep.subr.bf16.mxu0 0
        %4081 = vmatpush1.bf16.msra.mxu0 0
        %4082 = vmatprep.subr.bf16.mxu0 0
        %4083 = vmatpush1.bf16.msra.mxu0 0
        %4084 = vmatprep.subr.bf16.mxu0 0
        %4085 = vmatpush1.bf16.msra.mxu0 0
        %4086 = vmatprep.subr.bf16.mxu0 0
        %4087 = vmatpush1.bf16.msra.mxu0 0
        %4088 = vmatprep.subr.bf16.mxu0 0
        %4089 = vmatpush1.bf16.msra.mxu0 0
        %4090 = vmatprep.subr.bf16.mxu0 0
        %4091 = vmatpush1.bf16.msra.mxu0 0
        %4092 = vmatprep.mubr.bf16.mxu0 0
        %4093 = vmatmul.mubr.bf16.gmra.mrb[0].mxu0 %v4055
        %v4094 = vpop.f32.mrb[0].mxu0
        %v4095 = vadd.f32 0.0, %v4094
        %v4096 = vpop.f32.mrb[0].mxu0
        %v4097 = vpop.f32.mrb[0].mxu0
        %v4098 = vpop.f32.mrb[0].mxu0
        %4099 = vdwg.mxu0
        %v4100 = vadd.f32 %v4040, %v4095
        %v4101 = vld [vmem:[%s717] sm:$0x3]
        %v4103 = vsel %vm552, %v3938, 0
        %v4106 = vsel %vm556, %v4101, 0
        %4108 = vmatprep.subr.bf16.mxu0 0
        %4109 = vmatpush1.bf16.msra.mxu0 %v4106
        %4110 = vmatprep.subr.bf16.mxu0 0
        %4111 = vmatpush1.bf16.msra.mxu0 0
        %4112 = vmatprep.subr.bf16.mxu0 0
        %4113 = vmatpush1.bf16.msra.mxu0 0
        %4114 = vmatprep.subr.bf16.mxu0 0
        %4115 = vmatpush1.bf16.msra.mxu0 0
        %4116 = vmatprep.subr.bf16.mxu0 0
        %4117 = vmatpush1.bf16.msra.mxu0 0
        %4118 = vmatprep.subr.bf16.mxu0 0
        %4119 = vmatpush1.bf16.msra.mxu0 0
        %4120 = vmatprep.subr.bf16.mxu0 0
        %4121 = vmatpush1.bf16.msra.mxu0 0
        %4122 = vmatprep.subr.bf16.mxu0 0
        %4123 = vmatpush1.bf16.msra.mxu0 0
        %4124 = vmatprep.subr.bf16.mxu0 0
        %4125 = vmatpush1.bf16.msra.mxu0 0
        %4126 = vmatprep.subr.bf16.mxu0 0
        %4127 = vmatpush1.bf16.msra.mxu0 0
        %4128 = vmatprep.subr.bf16.mxu0 0
        %4129 = vmatpush1.bf16.msra.mxu0 0
        %4130 = vmatprep.subr.bf16.mxu0 0
        %4131 = vmatpush1.bf16.msra.mxu0 0
        %4132 = vmatprep.subr.bf16.mxu0 0
        %4133 = vmatpush1.bf16.msra.mxu0 0
        %4134 = vmatprep.subr.bf16.mxu0 0
        %4135 = vmatpush1.bf16.msra.mxu0 0
        %4136 = vmatprep.subr.bf16.mxu0 0
        %4137 = vmatpush1.bf16.msra.mxu0 0
        %4138 = vmatprep.subr.bf16.mxu0 0
        %4139 = vmatpush1.bf16.msra.mxu0 0
        %4140 = vmatprep.mubr.bf16.mxu0 0
        %4141 = vmatmul.mubr.bf16.gmra.mrb[0].mxu0 %v4103
        %v4142 = vpop.f32.mrb[0].mxu0
        %v4143 = vadd.f32 0.0, %v4142
        %v4144 = vpop.f32.mrb[0].mxu0
        %v4145 = vpop.f32.mrb[0].mxu0
        %v4146 = vpop.f32.mrb[0].mxu0
        %4147 = vdwg.mxu0
        %v4148 = vadd.f32 %v4100, %v4143
        %v4149 = vld [vmem:[%s766] sm:$0x3]
        %v4151 = vsel %vm552, %v3940, 0
        %v4154 = vsel %vm556, %v4149, 0
        %4156 = vmatprep.subr.bf16.mxu0 0
        %4157 = vmatpush1.bf16.msra.mxu0 %v4154
        %4158 = vmatprep.subr.bf16.mxu0 0
        %4159 = vmatpush1.bf16.msra.mxu0 0
        %4160 = vmatprep.subr.bf16.mxu0 0
        %4161 = vmatpush1.bf16.msra.mxu0 0
        %4162 = vmatprep.subr.bf16.mxu0 0
        %4163 = vmatpush1.bf16.msra.mxu0 0
        %4164 = vmatprep.subr.bf16.mxu0 0
        %4165 = vmatpush1.bf16.msra.mxu0 0
        %4166 = vmatprep.subr.bf16.mxu0 0
        %4167 = vmatpush1.bf16.msra.mxu0 0
        %4168 = vmatprep.subr.bf16.mxu0 0
        %4169 = vmatpush1.bf16.msra.mxu0 0
        %4170 = vmatprep.subr.bf16.mxu0 0
        %4171 = vmatpush1.bf16.msra.mxu0 0
        %4172 = vmatprep.subr.bf16.mxu0 0
        %4173 = vmatpush1.bf16.msra.mxu0 0
        %4174 = vmatprep.subr.bf16.mxu0 0
        %4175 = vmatpush1.bf16.msra.mxu0 0
        %4176 = vmatprep.subr.bf16.mxu0 0
        %4177 = vmatpush1.bf16.msra.mxu0 0
        %4178 = vmatprep.subr.bf16.mxu0 0
        %4179 = vmatpush1.bf16.msra.mxu0 0
        %4180 = vmatprep.subr.bf16.mxu0 0
        %4181 = vmatpush1.bf16.msra.mxu0 0
        %4182 = vmatprep.subr.bf16.mxu0 0
        %4183 = vmatpush1.bf16.msra.mxu0 0
        %4184 = vmatprep.subr.bf16.mxu0 0
        %4185 = vmatpush1.bf16.msra.mxu0 0
        %4186 = vmatprep.subr.bf16.mxu0 0
        %4187 = vmatpush1.bf16.msra.mxu0 0
        %4188 = vmatprep.mubr.bf16.mxu0 0
        %4189 = vmatmul.mubr.bf16.gmra.mrb[0].mxu0 %v4151
        %v4190 = vpop.f32.mrb[0].mxu0
        %v4191 = vadd.f32 0.0, %v4190
        %v4192 = vpop.f32.mrb[0].mxu0
        %v4193 = vpop.f32.mrb[0].mxu0
        %v4194 = vpop.f32.mrb[0].mxu0
        %4195 = vdwg.mxu0
        %v4196 = vadd.f32 %v4148, %v4191
        %v4197 = vld [vmem:[%s815] sm:$0x3]
        %v4200 = vunpack.c.l.b16 %v3938
        %v4201 = vunpack.c.l.b16 %v3941
        %v4202 = vpack.c.b16 %v4201, %v4200
        %v4204 = vshrl.u32 %v4202, 16
        %v4206 = vshll.u32 %v4202, 16
        %v4208 = vrot.slane %v4206, 1
        %v4209 = vor.u32 %v4204, %v4208
        %v4211 = vsel %vm552, %v4209, 0
        %v4214 = vsel %vm556, %v4197, 0
        %4216 = vmatprep.subr.bf16.mxu0 0
        %4217 = vmatpush1.bf16.msra.mxu0 %v4214
        %4218 = vmatprep.subr.bf16.mxu0 0
        %4219 = vmatpush1.bf16.msra.mxu0 0
        %4220 = vmatprep.subr.bf16.mxu0 0
        %4221 = vmatpush1.bf16.msra.mxu0 0
        %4222 = vmatprep.subr.bf16.mxu0 0
        %4223 = vmatpush1.bf16.msra.mxu0 0
        %4224 = vmatprep.subr.bf16.mxu0 0
        %4225 = vmatpush1.bf16.msra.mxu0 0
        %4226 = vmatprep.subr.bf16.mxu0 0
        %4227 = vmatpush1.bf16.msra.mxu0 0
        %4228 = vmatprep.subr.bf16.mxu0 0
        %4229 = vmatpush1.bf16.msra.mxu0 0
        %4230 = vmatprep.subr.bf16.mxu0 0
        %4231 = vmatpush1.bf16.msra.mxu0 0
        %4232 = vmatprep.subr.bf16.mxu0 0
        %4233 = vmatpush1.bf16.msra.mxu0 0
        %4234 = vmatprep.subr.bf16.mxu0 0
        %4235 = vmatpush1.bf16.msra.mxu0 0
        %4236 = vmatprep.subr.bf16.mxu0 0
        %4237 = vmatpush1.bf16.msra.mxu0 0
        %4238 = vmatprep.subr.bf16.mxu0 0
        %4239 = vmatpush1.bf16.msra.mxu0 0
        %4240 = vmatprep.subr.bf16.mxu0 0
        %4241 = vmatpush1.bf16.msra.mxu0 0
        %4242 = vmatprep.subr.bf16.mxu0 0
        %4243 = vmatpush1.bf16.msra.mxu0 0
        %4244 = vmatprep.subr.bf16.mxu0 0
        %4245 = vmatpush1.bf16.msra.mxu0 0
        %4246 = vmatprep.subr.bf16.mxu0 0
        %4247 = vmatpush1.bf16.msra.mxu0 0
        %4248 = vmatprep.mubr.bf16.mxu0 0
        %4249 = vmatmul.mubr.bf16.gmra.mrb[0].mxu0 %v4211
        %v4250 = vpop.f32.mrb[0].mxu0
        %v4251 = vadd.f32 0.0, %v4250
        %v4252 = vpop.f32.mrb[0].mxu0
        %v4253 = vpop.f32.mrb[0].mxu0
        %v4254 = vpop.f32.mrb[0].mxu0
        %4255 = vdwg.mxu0
        %v4256 = vadd.f32 %v4196, %v4251
        %v4257 = vld [vmem:[%s876] sm:$0x3]
        %v4259 = vsel %vm552, %v3942, 0
        %v4262 = vsel %vm556, %v4257, 0
        %4264 = vmatprep.subr.bf16.mxu0 0
        %4265 = vmatpush1.bf16.msra.mxu0 %v4262
        %4266 = vmatprep.subr.bf16.mxu0 0
        %4267 = vmatpush1.bf16.msra.mxu0 0
        %4268 = vmatprep.subr.bf16.mxu0 0
        %4269 = vmatpush1.bf16.msra.mxu0 0
        %4270 = vmatprep.subr.bf16.mxu0 0
        %4271 = vmatpush1.bf16.msra.mxu0 0
        %4272 = vmatprep.subr.bf16.mxu0 0
        %4273 = vmatpush1.bf16.msra.mxu0 0
        %4274 = vmatprep.subr.bf16.mxu0 0
        %4275 = vmatpush1.bf16.msra.mxu0 0
        %4276 = vmatprep.subr.bf16.mxu0 0
        %4277 = vmatpush1.bf16.msra.mxu0 0
        %4278 = vmatprep.subr.bf16.mxu0 0
        %4279 = vmatpush1.bf16.msra.mxu0 0
        %4280 = vmatprep.subr.bf16.mxu0 0
        %4281 = vmatpush1.bf16.msra.mxu0 0
        %4282 = vmatprep.subr.bf16.mxu0 0
        %4283 = vmatpush1.bf16.msra.mxu0 0
        %4284 = vmatprep.subr.bf16.mxu0 0
        %4285 = vmatpush1.bf16.msra.mxu0 0
        %4286 = vmatprep.subr.bf16.mxu0 0
        %4287 = vmatpush1.bf16.msra.mxu0 0
        %4288 = vmatprep.subr.bf16.mxu0 0
        %4289 = vmatpush1.bf16.msra.mxu0 0
        %4290 = vmatprep.subr.bf16.mxu0 0
        %4291 = vmatpush1.bf16.msra.mxu0 0
        %4292 = vmatprep.subr.bf16.mxu0 0
        %4293 = vmatpush1.bf16.msra.mxu0 0
        %4294 = vmatprep.subr.bf16.mxu0 0
        %4295 = vmatpush1.bf16.msra.mxu0 0
        %4296 = vmatprep.mubr.bf16.mxu0 0
        %4297 = vmatmul.mubr.bf16.gmra.mrb[0].mxu0 %v4259
        %v4298 = vpop.f32.mrb[0].mxu0
        %v4299 = vadd.f32 0.0, %v4298
        %v4300 = vpop.f32.mrb[0].mxu0
        %v4301 = vpop.f32.mrb[0].mxu0
        %v4302 = vpop.f32.mrb[0].mxu0
        %4303 = vdwg.mxu0
        %v4304 = vadd.f32 %v4256, %v4299
        %v4305 = vld [vmem:[%s925] sm:$0x3]
        %v4307 = vsel %vm552, %v3943, 0
        %v4310 = vsel %vm556, %v4305, 0
        %4312 = vmatprep.subr.bf16.mxu0 0
        %4313 = vmatpush1.bf16.msra.mxu0 %v4310
        %4314 = vmatprep.subr.bf16.mxu0 0
        %4315 = vmatpush1.bf16.msra.mxu0 0
        %4316 = vmatprep.subr.bf16.mxu0 0
        %4317 = vmatpush1.bf16.msra.mxu0 0
        %4318 = vmatprep.subr.bf16.mxu0 0
        %4319 = vmatpush1.bf16.msra.mxu0 0
        %4320 = vmatprep.subr.bf16.mxu0 0
        %4321 = vmatpush1.bf16.msra.mxu0 0
        %4322 = vmatprep.subr.bf16.mxu0 0
        %4323 = vmatpush1.bf16.msra.mxu0 0
        %4324 = vmatprep.subr.bf16.mxu0 0
        %4325 = vmatpush1.bf16.msra.mxu0 0
        %4326 = vmatprep.subr.bf16.mxu0 0
        %4327 = vmatpush1.bf16.msra.mxu0 0
        %4328 = vmatprep.subr.bf16.mxu0 0
        %4329 = vmatpush1.bf16.msra.mxu0 0
        %4330 = vmatprep.subr.bf16.mxu0 0
        %4331 = vmatpush1.bf16.msra.mxu0 0
        %4332 = vmatprep.subr.bf16.mxu0 0
        %4333 = vmatpush1.bf16.msra.mxu0 0
        %4334 = vmatprep.subr.bf16.mxu0 0
        %4335 = vmatpush1.bf16.msra.mxu0 0
        %4336 = vmatprep.subr.bf16.mxu0 0
        %4337 = vmatpush1.bf16.msra.mxu0 0
        %4338 = vmatprep.subr.bf16.mxu0 0
        %4339 = vmatpush1.bf16.msra.mxu0 0
        %4340 = vmatprep.subr.bf16.mxu0 0
        %4341 = vmatpush1.bf16.msra.mxu0 0
        %4342 = vmatprep.subr.bf16.mxu0 0
        %4343 = vmatpush1.bf16.msra.mxu0 0
        %4344 = vmatprep.mubr.bf16.mxu0 0
        %4345 = vmatmul.mubr.bf16.gmra.mrb[0].mxu0 %v4307
        %v4346 = vpop.f32.mrb[0].mxu0
        %v4347 = vadd.f32 0.0, %v4346
        %v4348 = vpop.f32.mrb[0].mxu0
        %v4349 = vpop.f32.mrb[0].mxu0
        %v4350 = vpop.f32.mrb[0].mxu0
        %4351 = vdwg.mxu0
        %v4352 = vadd.f32 %v4304, %v4347
        %v4353 = vld [vmem:[%s974] sm:$0x3]
        %v4356 = vunpack.c.l.b16 %v3942
        %v4357 = vunpack.c.l.b16 %v3944
        %v4358 = vpack.c.b16 %v4357, %v4356
        %v4360 = vshrl.u32 %v4358, 16
        %v4362 = vshll.u32 %v4358, 16
        %v4364 = vrot.slane %v4362, 1
        %v4365 = vor.u32 %v4360, %v4364
        %v4367 = vsel %vm552, %v4365, 0
        %v4370 = vsel %vm556, %v4353, 0
        %4372 = vmatprep.subr.bf16.mxu0 0
        %4373 = vmatpush1.bf16.msra.mxu0 %v4370
        %4374 = vmatprep.subr.bf16.mxu0 0
        %4375 = vmatpush1.bf16.msra.mxu0 0
        %4376 = vmatprep.subr.bf16.mxu0 0
        %4377 = vmatpush1.bf16.msra.mxu0 0
        %4378 = vmatprep.subr.bf16.mxu0 0
        %4379 = vmatpush1.bf16.msra.mxu0 0
        %4380 = vmatprep.subr.bf16.mxu0 0
        %4381 = vmatpush1.bf16.msra.mxu0 0
        %4382 = vmatprep.subr.bf16.mxu0 0
        %4383 = vmatpush1.bf16.msra.mxu0 0
        %4384 = vmatprep.subr.bf16.mxu0 0
        %4385 = vmatpush1.bf16.msra.mxu0 0
        %4386 = vmatprep.subr.bf16.mxu0 0
        %4387 = vmatpush1.bf16.msra.mxu0 0
        %4388 = vmatprep.subr.bf16.mxu0 0
        %4389 = vmatpush1.bf16.msra.mxu0 0
        %4390 = vmatprep.subr.bf16.mxu0 0
        %4391 = vmatpush1.bf16.msra.mxu0 0
        %4392 = vmatprep.subr.bf16.mxu0 0
        %4393 = vmatpush1.bf16.msra.mxu0 0
        %4394 = vmatprep.subr.bf16.mxu0 0
        %4395 = vmatpush1.bf16.msra.mxu0 0
        %4396 = vmatprep.subr.bf16.mxu0 0
        %4397 = vmatpush1.bf16.msra.mxu0 0
        %4398 = vmatprep.subr.bf16.mxu0 0
        %4399 = vmatpush1.bf16.msra.mxu0 0
        %4400 = vmatprep.subr.bf16.mxu0 0
        %4401 = vmatpush1.bf16.msra.mxu0 0
        %4402 = vmatprep.subr.bf16.mxu0 0
        %4403 = vmatpush1.bf16.msra.mxu0 0
        %4404 = vmatprep.mubr.bf16.mxu0 0
        %4405 = vmatmul.mubr.bf16.gmra.mrb[0].mxu0 %v4367
        %v4406 = vpop.f32.mrb[0].mxu0
        %v4407 = vadd.f32 0.0, %v4406
        %v4408 = vpop.f32.mrb[0].mxu0
        %v4409 = vpop.f32.mrb[0].mxu0
        %v4410 = vpop.f32.mrb[0].mxu0
        %4411 = vdwg.mxu0
        %v4412 = vadd.f32 %v4352, %v4407
        %s4413 = scalar_lea.vmem %s469, 56 [#allocation2]
        %4414 = vst [vmem:[%s4413] sm:$0xff] %v4412
        %s4415 = sand.u32 %s258, 1
        %s4416 = scalar_lea.sflag [#allocation3], %s4415
        %s4417 = sand.u32 %s258, 1
        %s4418 = smul.addr %s4417, 64
        %s4419 = scalar_lea.vmem [#allocation2], %s4418
        // Predicated region
        $region53: #{tpu_custom_call.1} parent=51 // pred_check
          %p4420 = pneg %p268
        $region54: #{tpu_custom_call.1} parent=51 // pred_check_branch
          %4422 = sbr.rel (%p4420) target = $region56
        $region55: #{tpu_custom_call.1} parent=51 // pred_region
          %s4423 = smul.u32 8, %s27
          %s4425 = ssub.s32 1024, 1024
          %4426 = vsyncadd %s4416, %s4425
          %s4427 = smul.addr %s26, 8
          %s4428 = sadd.s32 %s4423, %s4427
          %s4429 = smul.addr %s4428, 128
          %s4430 = scalar_lea.hbm %s8, %s4429
          %s4431 = sshll.u32 %s4419, 4
          %s4432 = int_to_ptr.vmem [resolvable:$true] %s4431
          %4437 = dma.vmem_to_hbm [thread:$0]  %s4432, 1024, %s4430, %s4416, 128, 128, 8
        $region56: #{tpu_custom_call.1} parent=51 // pred_fallthru
          _
      $region52: #{tpu_custom_call.1} parent=5 // pred_fallthru
        _
      %p4438 = scmp.le.s32.totalorder 2, %s17
      // Predicated region
      $region57: #{tpu_custom_call.1} parent=5 // pred_check
        %p4439 = pneg %p4438
      $region58: #{tpu_custom_call.1} parent=5 // pred_check_branch
        %4441 = sbr.rel (%p4439) target = $region60
      $region59: #{tpu_custom_call.1} parent=5 // pred_region
        %s4442 = ssub.s32 %s17, 2
        // Predicated region
        $region61: #{tpu_custom_call.1} parent=59 // pred_check
          %p4443 = pneg %p274
        $region62: #{tpu_custom_call.1} parent=59 // pred_check_branch
          %4445 = sbr.rel (%p4443) target = $region64
        $region63: #{tpu_custom_call.1} parent=59 // pred_region
          %s4446 = sand.u32 %s259, 1
          %s4447 = scalar_lea.sflag [#allocation3], %s4446
          %s4448 = sand.u32 %s259, 1
          %s4449 = smul.addr %s4448, 64
          %s4450 = scalar_lea.vmem [#allocation2], %s4449
          %4451 = dma.done %s4447, 1024
        $region64: #{tpu_custom_call.1} parent=59 // pred_fallthru
          _
      $region60: #{tpu_custom_call.1} parent=5 // pred_fallthru
        _
    $region6: #{tpu_custom_call.1} parent=1 // loop_footer
      %s21 = sadd.s32 1, %s17
    $region7: #{tpu_custom_call.1} parent=1 // loop_footer_branch
      %16 = sbr.rel target = $region3
    $region8: #{tpu_custom_call.1} parent=1 // loop_exit
      _
    %4452 = vsyncpa [#allocation3], 1
    %s4453 = scalar_lea.sflag [#allocation3], 1
    %4454 = vsyncpa %s4453, 1

</llo_original>
